<compile_context>
chip_gen: v7x
topology: tpu7x:2x2x1
jax: 0.10.0
libtpu: 0.0.40
codegen_flags: <defaults>
</compile_context>

<pallas_src>
import jax
import jax.numpy as jnp
import numpy as np
from jax.experimental import pallas as pl
from jax.experimental.pallas import tpu as pltpu

BN_EPS = 1e-5
K = 7
PAD = (K - 1) // 2  # 3


def spatial_gate_kernel(bias_ref, w_ref, x_ref, o_ref):
    """Fused ChannelPool + 7x7 conv (banded MXU matmuls, BN folded) + sigmoid + gate.

    bias_ref : (1,)          f32 SMEM  -- folded BatchNorm bias (scalar prefetch)
    w_ref    : (2*K, W, W)   f32 VMEM  -- banded conv matrices, BN scale folded
    x_ref    : (Nb, C, H, W)      VMEM
    o_ref    : (Nb, C, H, W)      VMEM
    """
    nb, C, H, W = x_ref.shape
    bias = bias_ref[0]

    # Row-validity masks for the 6 non-zero vertical tap offsets, hoisted once
    # per grid step (shared by all Nb images and both pooled maps).
    row = jax.lax.broadcasted_iota(jnp.int32, (H, W), 0)
    row_valid = {dh: (row + dh >= 0) & (row + dh < H)
                 for dh in range(-PAD, PAD + 1) if dh != 0}

    # TODO(synk): for large C convert these unrolled channel loops into
    # lax.fori_loop (small unroll) so only the accumulators stay vreg-resident.
    for n in range(nb):
        # ---- ChannelPool: max & mean over channels (pure VPU work) ----------
        x0 = x_ref[n, 0].astype(jnp.float32)
        cmax = x0
        csum = x0
        for c in range(1, C):
            xc = x_ref[n, c].astype(jnp.float32)
            cmax = jnp.maximum(cmax, xc)
            csum = csum + xc
        cmean = csum * (1.0 / C)

        # ---- 7x7 conv on the MXU ---------------------------------------------
        # For each (pooled map, kh): shift rows with a sublane roll (XLU) plus a
        # hoisted mask, then ONE (H,W)x(W,W) banded matmul applies all 7
        # horizontal taps and the W-edge zero padding implicitly.
        # 12 rolls + 14 tiny matmuls per image; zero per-tap VPU MACs/selects.
        acc = jnp.zeros((H, W), jnp.float32)
        for m, pooled in enumerate((cmax, cmean)):
            for kh in range(K):
                dh = kh - PAD
                if dh == 0:
                    band = pooled
                else:
                    band = jnp.where(row_valid[dh],
                                     pltpu.roll(pooled, shift=(-dh) % H, axis=0),
                                     0.0)
                acc = acc + jnp.dot(band, w_ref[m * K + kh],
                                    preferred_element_type=jnp.float32)

        # ---- folded BN bias + sigmoid: exp and reciprocal both on the EUP ----
        # (approx reciprocal rel-err ~2^-14..2^-12; fine for a gate value)
        gate = pl.reciprocal(1.0 + jnp.exp(-(acc + bias)), approx=True)

        # ---- gate every channel; x stays in VMEM, single HBM write of out ----
        # TODO(synk): with bf16 activations keep the gating multiply/store in
        # bf16 on v6e/v7x (bf16 VALU) and only accumulate pool/conv in f32.
        for c in range(C):
            o_ref[n, c] = (x_ref[n, c].astype(jnp.float32) * gate).astype(o_ref.dtype)


def _images_per_block(n, c, h, w, itemsize, target_bytes=2 << 20):
    """Largest divisor of n whose (nb, C, H, W) block stays under target_bytes."""
    per_image = c * h * w * itemsize
    nb = int(max(1, min(n, target_bytes // max(per_image, 1))))
    while n % nb:
        nb -= 1
    return nb


@jax.jit
def spatial_gate_forward(x, conv_w, bn_gamma, bn_beta, bn_mean, bn_var):
    """x: (N, C, H, W); conv_w: (1, 2, 7, 7); bn_*: (1,) BatchNorm2d(1) params."""
    N, C, H, W = x.shape
    itemsize = x.dtype.itemsize

    # ---- Fold eval-mode BN into the conv taps (scale) and one scalar bias ----
    inv_std = 1.0 / jnp.sqrt(bn_var + BN_EPS)
    scale = (bn_gamma * inv_std)[0]
    bias = jnp.reshape(bn_beta - bn_mean * bn_gamma * inv_std, (1,)).astype(jnp.float32)

    # ---- Banded (W, W) conv matrices:
    #   M[m*K+kh, w_in, w_out] = scale * conv_w[0, m, kh, w_in - w_out + PAD]
    #   for |w_in - w_out| <= PAD, else 0  (zeros realize the W-edge padding).
    taps = conv_w.reshape(2 * K, K).astype(jnp.float32) * scale           # (14, K)
    delta = jnp.arange(W)[:, None] - jnp.arange(W)[None, :]               # w_in - w_out
    kw_idx = jnp.clip(delta + PAD, 0, K - 1)
    band_mats = jnp.where((jnp.abs(delta) <= PAD)[None, :, :],
                          taps[:, kw_idx], 0.0)                           # (14, W, W)

    # ---- Pack several images per grid step so each HBM transfer is MiB-scale.
    nb = _images_per_block(N, C, H, W, itemsize)
    block_bytes = nb * C * H * W * itemsize
    w_bytes = int(band_mats.size) * 4
    # in + out blocks are each double-buffered; budget 2x for the weights too.
    vmem_limit = int(min(64 << 20,
                         max(16 << 20, 4 * block_bytes + 2 * w_bytes + (2 << 20))))

    cost = pl.CostEstimate(
        flops=int(N * (2 * C * H * W                 # channel max + sum
                       + 2 * (2 * K) * H * W * W     # 14 banded matmuls
                       + (C + 6) * H * W)),          # gate + sigmoid misc
        transcendentals=int(N * H * W),              # exp per gate pixel
        bytes_accessed=int(2 * N * C * H * W * itemsize + w_bytes + 4),
    )

    # TODO(synk): for W not a multiple of 128, present a lane-dense last dim to
    # the kernel (e.g. pool/gate on a (C, H*W) view) instead of relying on W.
    return pl.pallas_call(
        spatial_gate_kernel,
        out_shape=jax.ShapeDtypeStruct((N, C, H, W), x.dtype),
        grid_spec=pltpu.PrefetchScalarGridSpec(
            num_scalar_prefetch=1,
            grid=(N // nb,),
            in_specs=[
                pl.BlockSpec((2 * K, W, W), lambda i, b: (0, 0, 0)),      # weights (invariant)
                pl.BlockSpec((nb, C, H, W), lambda i, b: (i, 0, 0, 0)),   # x block
            ],
            out_specs=pl.BlockSpec((nb, C, H, W), lambda i, b: (i, 0, 0, 0)),
        ),
        compiler_params=pltpu.CompilerParams(
            dimension_semantics=("parallel",),
            vmem_limit_bytes=vmem_limit,
        ),
        cost_estimate=cost,
    )(bias, band_mats, x)


# ---------------------------------------------------------------------------
# Pure-JAX reference (for sanity checking the kernel)
# ---------------------------------------------------------------------------
def spatial_gate_ref(x, conv_w, bn_gamma, bn_beta, bn_mean, bn_var):
    cmax = jnp.max(x, axis=1, keepdims=True)
    cmean = jnp.mean(x, axis=1, keepdims=True)
    comp = jnp.concatenate([cmax, cmean], axis=1)          # (N, 2, H, W)
    conv = jax.lax.conv_general_dilated(
        comp, conv_w, window_strides=(1, 1),
        padding=((PAD, PAD), (PAD, PAD)),
        dimension_numbers=("NCHW", "OIHW", "NCHW"))
    inv_std = 1.0 / jnp.sqrt(bn_var + BN_EPS)
    bn = (conv * (bn_gamma * inv_std).reshape(1, 1, 1, 1)
          + (bn_beta - bn_mean * bn_gamma * inv_std).reshape(1, 1, 1, 1))
    return x * jax.nn.sigmoid(bn)


if __name__ == "__main__":
    # Small deterministic shapes; W=128 keeps HBM loads/stores lane-dense.
    N, C, H, W = 2, 8, 16, 128

    key = jax.random.PRNGKey(0)
    k1, k2 = jax.random.split(key)
    x = jax.random.normal(k1, (N, C, H, W), dtype=jnp.float32)
    conv_w = jax.random.normal(k2, (1, 2, K, K), dtype=jnp.float32) * 0.1

    # BatchNorm2d(1) fresh init (eval-mode stats): gamma=1, beta=0, mean=0, var=1
    bn_gamma = jnp.ones((1,), jnp.float32)
    bn_beta = jnp.zeros((1,), jnp.float32)
    bn_mean = jnp.zeros((1,), jnp.float32)
    bn_var = jnp.ones((1,), jnp.float32)

    out = jax.block_until_ready(
        spatial_gate_forward(x, conv_w, bn_gamma, bn_beta, bn_mean, bn_var))
    ref = jax.block_until_ready(
        spatial_gate_ref(x, conv_w, bn_gamma, bn_beta, bn_mean, bn_var))

    assert out.shape == (N, C, H, W), out.shape
    # Tolerance relaxed from 1e-5: pl.reciprocal(approx=True) in the sigmoid has
    # ~2^-14..2^-12 relative error on the gate; structural bugs would be O(1e-1).
    np.testing.assert_allclose(np.asarray(out), np.asarray(ref), rtol=2e-3, atol=2e-3)

    print("KERNEL_OK")
</pallas_src>

<mosaic_0001>
module attributes {stable_mosaic.version = 11 : i64} {
  func.func @spatial_gate_kernel(%arg0: i32, %arg1: memref<1xf32, #tpu.memory_space<smem>>, %arg2: memref<14x128x128xf32, #tpu.memory_space<vmem>>, %arg3: memref<2x8x16x128xf32, #tpu.memory_space<vmem>>, %arg4: memref<2x8x16x128xf32, #tpu.memory_space<vmem>>) attributes {dimension_semantics = [#tpu.dimension_semantics<parallel>], iteration_bounds = array<i64: 1>, scalar_prefetch = 1 : i64, scratch_operands = 0 : i64, tpu.core_type = #tpu.core_type<tc>, window_params = [{pipeline_mode = #tpu.pipeline_mode<synchronous>, transform_indices = @transform_0, window_bounds = array<i64: 14, 128, 128>}, {transform_indices = @transform_1, window_bounds = array<i64: 2, 8, 16, 128>}, {transform_indices = @transform_2, window_bounds = array<i64: 2, 8, 16, 128>}]} {
    %c0 = arith.constant 0 : index
    %0 = memref.load %arg1[%c0] : memref<1xf32, #tpu.memory_space<smem>>
    %1 = tpu.iota {dimensions = array<i32: 0>} : vector<16x128xi32>
    %c-3_i32 = arith.constant -3 : i32
    %2 = vector.broadcast %c-3_i32 : i32 to vector<16x128xi32>
    %3 = arith.addi %1, %2 : vector<16x128xi32>
    %c0_i32 = arith.constant 0 : i32
    %4 = vector.broadcast %c0_i32 : i32 to vector<16x128xi32>
    %5 = arith.cmpi sge, %3, %4 : vector<16x128xi32>
    %c-3_i32_0 = arith.constant -3 : i32
    %6 = vector.broadcast %c-3_i32_0 : i32 to vector<16x128xi32>
    %7 = arith.addi %1, %6 : vector<16x128xi32>
    %c16_i32 = arith.constant 16 : i32
    %8 = vector.broadcast %c16_i32 : i32 to vector<16x128xi32>
    %9 = arith.cmpi slt, %7, %8 : vector<16x128xi32>
    %10 = arith.andi %5, %9 : vector<16x128xi1>
    %c-2_i32 = arith.constant -2 : i32
    %11 = vector.broadcast %c-2_i32 : i32 to vector<16x128xi32>
    %12 = arith.addi %1, %11 : vector<16x128xi32>
    %c0_i32_1 = arith.constant 0 : i32
    %13 = vector.broadcast %c0_i32_1 : i32 to vector<16x128xi32>
    %14 = arith.cmpi sge, %12, %13 : vector<16x128xi32>
    %c-2_i32_2 = arith.constant -2 : i32
    %15 = vector.broadcast %c-2_i32_2 : i32 to vector<16x128xi32>
    %16 = arith.addi %1, %15 : vector<16x128xi32>
    %c16_i32_3 = arith.constant 16 : i32
    %17 = vector.broadcast %c16_i32_3 : i32 to vector<16x128xi32>
    %18 = arith.cmpi slt, %16, %17 : vector<16x128xi32>
    %19 = arith.andi %14, %18 : vector<16x128xi1>
    %c-1_i32 = arith.constant -1 : i32
    %20 = vector.broadcast %c-1_i32 : i32 to vector<16x128xi32>
    %21 = arith.addi %1, %20 : vector<16x128xi32>
    %c0_i32_4 = arith.constant 0 : i32
    %22 = vector.broadcast %c0_i32_4 : i32 to vector<16x128xi32>
    %23 = arith.cmpi sge, %21, %22 : vector<16x128xi32>
    %c-1_i32_5 = arith.constant -1 : i32
    %24 = vector.broadcast %c-1_i32_5 : i32 to vector<16x128xi32>
    %25 = arith.addi %1, %24 : vector<16x128xi32>
    %c16_i32_6 = arith.constant 16 : i32
    %26 = vector.broadcast %c16_i32_6 : i32 to vector<16x128xi32>
    %27 = arith.cmpi slt, %25, %26 : vector<16x128xi32>
    %28 = arith.andi %23, %27 : vector<16x128xi1>
    %c1_i32 = arith.constant 1 : i32
    %29 = vector.broadcast %c1_i32 : i32 to vector<16x128xi32>
    %30 = arith.addi %1, %29 : vector<16x128xi32>
    %c0_i32_7 = arith.constant 0 : i32
    %31 = vector.broadcast %c0_i32_7 : i32 to vector<16x128xi32>
    %32 = arith.cmpi sge, %30, %31 : vector<16x128xi32>
    %c1_i32_8 = arith.constant 1 : i32
    %33 = vector.broadcast %c1_i32_8 : i32 to vector<16x128xi32>
    %34 = arith.addi %1, %33 : vector<16x128xi32>
    %c16_i32_9 = arith.constant 16 : i32
    %35 = vector.broadcast %c16_i32_9 : i32 to vector<16x128xi32>
    %36 = arith.cmpi slt, %34, %35 : vector<16x128xi32>
    %37 = arith.andi %32, %36 : vector<16x128xi1>
    %c2_i32 = arith.constant 2 : i32
    %38 = vector.broadcast %c2_i32 : i32 to vector<16x128xi32>
    %39 = arith.addi %1, %38 : vector<16x128xi32>
    %c0_i32_10 = arith.constant 0 : i32
    %40 = vector.broadcast %c0_i32_10 : i32 to vector<16x128xi32>
    %41 = arith.cmpi sge, %39, %40 : vector<16x128xi32>
    %c2_i32_11 = arith.constant 2 : i32
    %42 = vector.broadcast %c2_i32_11 : i32 to vector<16x128xi32>
    %43 = arith.addi %1, %42 : vector<16x128xi32>
    %c16_i32_12 = arith.constant 16 : i32
    %44 = vector.broadcast %c16_i32_12 : i32 to vector<16x128xi32>
    %45 = arith.cmpi slt, %43, %44 : vector<16x128xi32>
    %46 = arith.andi %41, %45 : vector<16x128xi1>
    %c3_i32 = arith.constant 3 : i32
    %47 = vector.broadcast %c3_i32 : i32 to vector<16x128xi32>
    %48 = arith.addi %1, %47 : vector<16x128xi32>
    %c0_i32_13 = arith.constant 0 : i32
    %49 = vector.broadcast %c0_i32_13 : i32 to vector<16x128xi32>
    %50 = arith.cmpi sge, %48, %49 : vector<16x128xi32>
    %c3_i32_14 = arith.constant 3 : i32
    %51 = vector.broadcast %c3_i32_14 : i32 to vector<16x128xi32>
    %52 = arith.addi %1, %51 : vector<16x128xi32>
    %c16_i32_15 = arith.constant 16 : i32
    %53 = vector.broadcast %c16_i32_15 : i32 to vector<16x128xi32>
    %54 = arith.cmpi slt, %52, %53 : vector<16x128xi32>
    %55 = arith.andi %50, %54 : vector<16x128xi1>
    %c0_16 = arith.constant 0 : index
    %c0_17 = arith.constant 0 : index
    %c0_18 = arith.constant 0 : index
    %c0_19 = arith.constant 0 : index
    %56 = vector.load %arg3[%c0_16, %c0_17, %c0_18, %c0_19] : memref<2x8x16x128xf32, #tpu.memory_space<vmem>>, vector<1x1x16x128xf32>
    %57 = vector.shape_cast %56 : vector<1x1x16x128xf32> to vector<16x128xf32>
    %c0_20 = arith.constant 0 : index
    %c1 = arith.constant 1 : index
    %c0_21 = arith.constant 0 : index
    %c0_22 = arith.constant 0 : index
    %58 = vector.load %arg3[%c0_20, %c1, %c0_21, %c0_22] : memref<2x8x16x128xf32, #tpu.memory_space<vmem>>, vector<1x1x16x128xf32>
    %59 = vector.shape_cast %58 : vector<1x1x16x128xf32> to vector<16x128xf32>
    %60 = arith.maximumf %57, %59 : vector<16x128xf32>
    %61 = arith.addf %57, %59 : vector<16x128xf32>
    %c0_23 = arith.constant 0 : index
    %c2 = arith.constant 2 : index
    %c0_24 = arith.constant 0 : index
    %c0_25 = arith.constant 0 : index
    %62 = vector.load %arg3[%c0_23, %c2, %c0_24, %c0_25] : memref<2x8x16x128xf32, #tpu.memory_space<vmem>>, vector<1x1x16x128xf32>
    %63 = vector.shape_cast %62 : vector<1x1x16x128xf32> to vector<16x128xf32>
    %64 = arith.maximumf %60, %63 : vector<16x128xf32>
    %65 = arith.addf %61, %63 : vector<16x128xf32>
    %c0_26 = arith.constant 0 : index
    %c3 = arith.constant 3 : index
    %c0_27 = arith.constant 0 : index
    %c0_28 = arith.constant 0 : index
    %66 = vector.load %arg3[%c0_26, %c3, %c0_27, %c0_28] : memref<2x8x16x128xf32, #tpu.memory_space<vmem>>, vector<1x1x16x128xf32>
    %67 = vector.shape_cast %66 : vector<1x1x16x128xf32> to vector<16x128xf32>
    %68 = arith.maximumf %64, %67 : vector<16x128xf32>
    %69 = arith.addf %65, %67 : vector<16x128xf32>
    %c0_29 = arith.constant 0 : index
    %c4 = arith.constant 4 : index
    %c0_30 = arith.constant 0 : index
    %c0_31 = arith.constant 0 : index
    %70 = vector.load %arg3[%c0_29, %c4, %c0_30, %c0_31] : memref<2x8x16x128xf32, #tpu.memory_space<vmem>>, vector<1x1x16x128xf32>
    %71 = vector.shape_cast %70 : vector<1x1x16x128xf32> to vector<16x128xf32>
    %72 = arith.maximumf %68, %71 : vector<16x128xf32>
    %73 = arith.addf %69, %71 : vector<16x128xf32>
    %c0_32 = arith.constant 0 : index
    %c5 = arith.constant 5 : index
    %c0_33 = arith.constant 0 : index
    %c0_34 = arith.constant 0 : index
    %74 = vector.load %arg3[%c0_32, %c5, %c0_33, %c0_34] : memref<2x8x16x128xf32, #tpu.memory_space<vmem>>, vector<1x1x16x128xf32>
    %75 = vector.shape_cast %74 : vector<1x1x16x128xf32> to vector<16x128xf32>
    %76 = arith.maximumf %72, %75 : vector<16x128xf32>
    %77 = arith.addf %73, %75 : vector<16x128xf32>
    %c0_35 = arith.constant 0 : index
    %c6 = arith.constant 6 : index
    %c0_36 = arith.constant 0 : index
    %c0_37 = arith.constant 0 : index
    %78 = vector.load %arg3[%c0_35, %c6, %c0_36, %c0_37] : memref<2x8x16x128xf32, #tpu.memory_space<vmem>>, vector<1x1x16x128xf32>
    %79 = vector.shape_cast %78 : vector<1x1x16x128xf32> to vector<16x128xf32>
    %80 = arith.maximumf %76, %79 : vector<16x128xf32>
    %81 = arith.addf %77, %79 : vector<16x128xf32>
    %c0_38 = arith.constant 0 : index
    %c7 = arith.constant 7 : index
    %c0_39 = arith.constant 0 : index
    %c0_40 = arith.constant 0 : index
    %82 = vector.load %arg3[%c0_38, %c7, %c0_39, %c0_40] : memref<2x8x16x128xf32, #tpu.memory_space<vmem>>, vector<1x1x16x128xf32>
    %83 = vector.shape_cast %82 : vector<1x1x16x128xf32> to vector<16x128xf32>
    %84 = arith.maximumf %80, %83 : vector<16x128xf32>
    %85 = arith.addf %81, %83 : vector<16x128xf32>
    %cst = arith.constant 1.250000e-01 : f32
    %86 = vector.broadcast %cst : f32 to vector<16x128xf32>
    %87 = arith.mulf %85, %86 : vector<16x128xf32>
    %cst_41 = arith.constant 0.000000e+00 : f32
    %88 = vector.broadcast %cst_41 : f32 to vector<16x128xf32>
    %c3_i32_42 = arith.constant 3 : i32
    %89 = tpu.dynamic_rotate %84 by %c3_i32_42 dim 0 : vector<16x128xf32>, i32 -> vector<16x128xf32>
    %cst_43 = arith.constant 0.000000e+00 : f32
    %90 = vector.broadcast %cst_43 : f32 to vector<16x128xf32>
    %91 = arith.select %10, %89, %90 : vector<16x128xi1>, vector<16x128xf32>
    %c0_44 = arith.constant 0 : index
    %c0_45 = arith.constant 0 : index
    %c0_46 = arith.constant 0 : index
    %92 = vector.load %arg2[%c0_44, %c0_45, %c0_46] : memref<14x128x128xf32, #tpu.memory_space<vmem>>, vector<1x128x128xf32>
    %93 = vector.shape_cast %92 : vector<1x128x128xf32> to vector<128x128xf32>
    %cst_47 = arith.constant dense<0.000000e+00> : vector<16x128xf32>
    %94 = tpu.matmul %91, %93, %cst_47 {dimension_numbers = #tpu.dot_dimension_numbers<[1], [0], [0], [1], [0, 0, 1, 1], [], []>} : vector<16x128xf32>, vector<128x128xf32>, vector<16x128xf32> -> vector<16x128xf32>
    %95 = arith.addf %88, %94 : vector<16x128xf32>
    %c2_i32_48 = arith.constant 2 : i32
    %96 = tpu.dynamic_rotate %84 by %c2_i32_48 dim 0 : vector<16x128xf32>, i32 -> vector<16x128xf32>
    %cst_49 = arith.constant 0.000000e+00 : f32
    %97 = vector.broadcast %cst_49 : f32 to vector<16x128xf32>
    %98 = arith.select %19, %96, %97 : vector<16x128xi1>, vector<16x128xf32>
    %c1_50 = arith.constant 1 : index
    %c0_51 = arith.constant 0 : index
    %c0_52 = arith.constant 0 : index
    %99 = vector.load %arg2[%c1_50, %c0_51, %c0_52] : memref<14x128x128xf32, #tpu.memory_space<vmem>>, vector<1x128x128xf32>
    %100 = vector.shape_cast %99 : vector<1x128x128xf32> to vector<128x128xf32>
    %cst_53 = arith.constant dense<0.000000e+00> : vector<16x128xf32>
    %101 = tpu.matmul %98, %100, %cst_53 {dimension_numbers = #tpu.dot_dimension_numbers<[1], [0], [0], [1], [0, 0, 1, 1], [], []>} : vector<16x128xf32>, vector<128x128xf32>, vector<16x128xf32> -> vector<16x128xf32>
    %102 = arith.addf %95, %101 : vector<16x128xf32>
    %c1_i32_54 = arith.constant 1 : i32
    %103 = tpu.dynamic_rotate %84 by %c1_i32_54 dim 0 : vector<16x128xf32>, i32 -> vector<16x128xf32>
    %cst_55 = arith.constant 0.000000e+00 : f32
    %104 = vector.broadcast %cst_55 : f32 to vector<16x128xf32>
    %105 = arith.select %28, %103, %104 : vector<16x128xi1>, vector<16x128xf32>
    %c2_56 = arith.constant 2 : index
    %c0_57 = arith.constant 0 : index
    %c0_58 = arith.constant 0 : index
    %106 = vector.load %arg2[%c2_56, %c0_57, %c0_58] : memref<14x128x128xf32, #tpu.memory_space<vmem>>, vector<1x128x128xf32>
    %107 = vector.shape_cast %106 : vector<1x128x128xf32> to vector<128x128xf32>
    %cst_59 = arith.constant dense<0.000000e+00> : vector<16x128xf32>
    %108 = tpu.matmul %105, %107, %cst_59 {dimension_numbers = #tpu.dot_dimension_numbers<[1], [0], [0], [1], [0, 0, 1, 1], [], []>} : vector<16x128xf32>, vector<128x128xf32>, vector<16x128xf32> -> vector<16x128xf32>
    %109 = arith.addf %102, %108 : vector<16x128xf32>
    %c3_60 = arith.constant 3 : index
    %c0_61 = arith.constant 0 : index
    %c0_62 = arith.constant 0 : index
    %110 = vector.load %arg2[%c3_60, %c0_61, %c0_62] : memref<14x128x128xf32, #tpu.memory_space<vmem>>, vector<1x128x128xf32>
    %111 = vector.shape_cast %110 : vector<1x128x128xf32> to vector<128x128xf32>
    %cst_63 = arith.constant dense<0.000000e+00> : vector<16x128xf32>
    %112 = tpu.matmul %84, %111, %cst_63 {dimension_numbers = #tpu.dot_dimension_numbers<[1], [0], [0], [1], [0, 0, 1, 1], [], []>} : vector<16x128xf32>, vector<128x128xf32>, vector<16x128xf32> -> vector<16x128xf32>
    %113 = arith.addf %109, %112 : vector<16x128xf32>
    %c15_i32 = arith.constant 15 : i32
    %114 = tpu.dynamic_rotate %84 by %c15_i32 dim 0 : vector<16x128xf32>, i32 -> vector<16x128xf32>
    %cst_64 = arith.constant 0.000000e+00 : f32
    %115 = vector.broadcast %cst_64 : f32 to vector<16x128xf32>
    %116 = arith.select %37, %114, %115 : vector<16x128xi1>, vector<16x128xf32>
    %c4_65 = arith.constant 4 : index
    %c0_66 = arith.constant 0 : index
    %c0_67 = arith.constant 0 : index
    %117 = vector.load %arg2[%c4_65, %c0_66, %c0_67] : memref<14x128x128xf32, #tpu.memory_space<vmem>>, vector<1x128x128xf32>
    %118 = vector.shape_cast %117 : vector<1x128x128xf32> to vector<128x128xf32>
    %cst_68 = arith.constant dense<0.000000e+00> : vector<16x128xf32>
    %119 = tpu.matmul %116, %118, %cst_68 {dimension_numbers = #tpu.dot_dimension_numbers<[1], [0], [0], [1], [0, 0, 1, 1], [], []>} : vector<16x128xf32>, vector<128x128xf32>, vector<16x128xf32> -> vector<16x128xf32>
    %120 = arith.addf %113, %119 : vector<16x128xf32>
    %c14_i32 = arith.constant 14 : i32
    %121 = tpu.dynamic_rotate %84 by %c14_i32 dim 0 : vector<16x128xf32>, i32 -> vector<16x128xf32>
    %cst_69 = arith.constant 0.000000e+00 : f32
    %122 = vector.broadcast %cst_69 : f32 to vector<16x128xf32>
    %123 = arith.select %46, %121, %122 : vector<16x128xi1>, vector<16x128xf32>
    %c5_70 = arith.constant 5 : index
    %c0_71 = arith.constant 0 : index
    %c0_72 = arith.constant 0 : index
    %124 = vector.load %arg2[%c5_70, %c0_71, %c0_72] : memref<14x128x128xf32, #tpu.memory_space<vmem>>, vector<1x128x128xf32>
    %125 = vector.shape_cast %124 : vector<1x128x128xf32> to vector<128x128xf32>
    %cst_73 = arith.constant dense<0.000000e+00> : vector<16x128xf32>
    %126 = tpu.matmul %123, %125, %cst_73 {dimension_numbers = #tpu.dot_dimension_numbers<[1], [0], [0], [1], [0, 0, 1, 1], [], []>} : vector<16x128xf32>, vector<128x128xf32>, vector<16x128xf32> -> vector<16x128xf32>
    %127 = arith.addf %120, %126 : vector<16x128xf32>
    %c13_i32 = arith.constant 13 : i32
    %128 = tpu.dynamic_rotate %84 by %c13_i32 dim 0 : vector<16x128xf32>, i32 -> vector<16x128xf32>
    %cst_74 = arith.constant 0.000000e+00 : f32
    %129 = vector.broadcast %cst_74 : f32 to vector<16x128xf32>
    %130 = arith.select %55, %128, %129 : vector<16x128xi1>, vector<16x128xf32>
    %c6_75 = arith.constant 6 : index
    %c0_76 = arith.constant 0 : index
    %c0_77 = arith.constant 0 : index
    %131 = vector.load %arg2[%c6_75, %c0_76, %c0_77] : memref<14x128x128xf32, #tpu.memory_space<vmem>>, vector<1x128x128xf32>
    %132 = vector.shape_cast %131 : vector<1x128x128xf32> to vector<128x128xf32>
    %cst_78 = arith.constant dense<0.000000e+00> : vector<16x128xf32>
    %133 = tpu.matmul %130, %132, %cst_78 {dimension_numbers = #tpu.dot_dimension_numbers<[1], [0], [0], [1], [0, 0, 1, 1], [], []>} : vector<16x128xf32>, vector<128x128xf32>, vector<16x128xf32> -> vector<16x128xf32>
    %134 = arith.addf %127, %133 : vector<16x128xf32>
    %c3_i32_79 = arith.constant 3 : i32
    %135 = tpu.dynamic_rotate %87 by %c3_i32_79 dim 0 : vector<16x128xf32>, i32 -> vector<16x128xf32>
    %cst_80 = arith.constant 0.000000e+00 : f32
    %136 = vector.broadcast %cst_80 : f32 to vector<16x128xf32>
    %137 = arith.select %10, %135, %136 : vector<16x128xi1>, vector<16x128xf32>
    %c7_81 = arith.constant 7 : index
    %c0_82 = arith.constant 0 : index
    %c0_83 = arith.constant 0 : index
    %138 = vector.load %arg2[%c7_81, %c0_82, %c0_83] : memref<14x128x128xf32, #tpu.memory_space<vmem>>, vector<1x128x128xf32>
    %139 = vector.shape_cast %138 : vector<1x128x128xf32> to vector<128x128xf32>
    %cst_84 = arith.constant dense<0.000000e+00> : vector<16x128xf32>
    %140 = tpu.matmul %137, %139, %cst_84 {dimension_numbers = #tpu.dot_dimension_numbers<[1], [0], [0], [1], [0, 0, 1, 1], [], []>} : vector<16x128xf32>, vector<128x128xf32>, vector<16x128xf32> -> vector<16x128xf32>
    %141 = arith.addf %134, %140 : vector<16x128xf32>
    %c2_i32_85 = arith.constant 2 : i32
    %142 = tpu.dynamic_rotate %87 by %c2_i32_85 dim 0 : vector<16x128xf32>, i32 -> vector<16x128xf32>
    %cst_86 = arith.constant 0.000000e+00 : f32
    %143 = vector.broadcast %cst_86 : f32 to vector<16x128xf32>
    %144 = arith.select %19, %142, %143 : vector<16x128xi1>, vector<16x128xf32>
    %c8 = arith.constant 8 : index
    %c0_87 = arith.constant 0 : index
    %c0_88 = arith.constant 0 : index
    %145 = vector.load %arg2[%c8, %c0_87, %c0_88] : memref<14x128x128xf32, #tpu.memory_space<vmem>>, vector<1x128x128xf32>
    %146 = vector.shape_cast %145 : vector<1x128x128xf32> to vector<128x128xf32>
    %cst_89 = arith.constant dense<0.000000e+00> : vector<16x128xf32>
    %147 = tpu.matmul %144, %146, %cst_89 {dimension_numbers = #tpu.dot_dimension_numbers<[1], [0], [0], [1], [0, 0, 1, 1], [], []>} : vector<16x128xf32>, vector<128x128xf32>, vector<16x128xf32> -> vector<16x128xf32>
    %148 = arith.addf %141, %147 : vector<16x128xf32>
    %c1_i32_90 = arith.constant 1 : i32
    %149 = tpu.dynamic_rotate %87 by %c1_i32_90 dim 0 : vector<16x128xf32>, i32 -> vector<16x128xf32>
    %cst_91 = arith.constant 0.000000e+00 : f32
    %150 = vector.broadcast %cst_91 : f32 to vector<16x128xf32>
    %151 = arith.select %28, %149, %150 : vector<16x128xi1>, vector<16x128xf32>
    %c9 = arith.constant 9 : index
    %c0_92 = arith.constant 0 : index
    %c0_93 = arith.constant 0 : index
    %152 = vector.load %arg2[%c9, %c0_92, %c0_93] : memref<14x128x128xf32, #tpu.memory_space<vmem>>, vector<1x128x128xf32>
    %153 = vector.shape_cast %152 : vector<1x128x128xf32> to vector<128x128xf32>
    %cst_94 = arith.constant dense<0.000000e+00> : vector<16x128xf32>
    %154 = tpu.matmul %151, %153, %cst_94 {dimension_numbers = #tpu.dot_dimension_numbers<[1], [0], [0], [1], [0, 0, 1, 1], [], []>} : vector<16x128xf32>, vector<128x128xf32>, vector<16x128xf32> -> vector<16x128xf32>
    %155 = arith.addf %148, %154 : vector<16x128xf32>
    %c10 = arith.constant 10 : index
    %c0_95 = arith.constant 0 : index
    %c0_96 = arith.constant 0 : index
    %156 = vector.load %arg2[%c10, %c0_95, %c0_96] : memref<14x128x128xf32, #tpu.memory_space<vmem>>, vector<1x128x128xf32>
    %157 = vector.shape_cast %156 : vector<1x128x128xf32> to vector<128x128xf32>
    %cst_97 = arith.constant dense<0.000000e+00> : vector<16x128xf32>
    %158 = tpu.matmul %87, %157, %cst_97 {dimension_numbers = #tpu.dot_dimension_numbers<[1], [0], [0], [1], [0, 0, 1, 1], [], []>} : vector<16x128xf32>, vector<128x128xf32>, vector<16x128xf32> -> vector<16x128xf32>
    %159 = arith.addf %155, %158 : vector<16x128xf32>
    %c15_i32_98 = arith.constant 15 : i32
    %160 = tpu.dynamic_rotate %87 by %c15_i32_98 dim 0 : vector<16x128xf32>, i32 -> vector<16x128xf32>
    %cst_99 = arith.constant 0.000000e+00 : f32
    %161 = vector.broadcast %cst_99 : f32 to vector<16x128xf32>
    %162 = arith.select %37, %160, %161 : vector<16x128xi1>, vector<16x128xf32>
    %c11 = arith.constant 11 : index
    %c0_100 = arith.constant 0 : index
    %c0_101 = arith.constant 0 : index
    %163 = vector.load %arg2[%c11, %c0_100, %c0_101] : memref<14x128x128xf32, #tpu.memory_space<vmem>>, vector<1x128x128xf32>
    %164 = vector.shape_cast %163 : vector<1x128x128xf32> to vector<128x128xf32>
    %cst_102 = arith.constant dense<0.000000e+00> : vector<16x128xf32>
    %165 = tpu.matmul %162, %164, %cst_102 {dimension_numbers = #tpu.dot_dimension_numbers<[1], [0], [0], [1], [0, 0, 1, 1], [], []>} : vector<16x128xf32>, vector<128x128xf32>, vector<16x128xf32> -> vector<16x128xf32>
    %166 = arith.addf %159, %165 : vector<16x128xf32>
    %c14_i32_103 = arith.constant 14 : i32
    %167 = tpu.dynamic_rotate %87 by %c14_i32_103 dim 0 : vector<16x128xf32>, i32 -> vector<16x128xf32>
    %cst_104 = arith.constant 0.000000e+00 : f32
    %168 = vector.broadcast %cst_104 : f32 to vector<16x128xf32>
    %169 = arith.select %46, %167, %168 : vector<16x128xi1>, vector<16x128xf32>
    %c12 = arith.constant 12 : index
    %c0_105 = arith.constant 0 : index
    %c0_106 = arith.constant 0 : index
    %170 = vector.load %arg2[%c12, %c0_105, %c0_106] : memref<14x128x128xf32, #tpu.memory_space<vmem>>, vector<1x128x128xf32>
    %171 = vector.shape_cast %170 : vector<1x128x128xf32> to vector<128x128xf32>
    %cst_107 = arith.constant dense<0.000000e+00> : vector<16x128xf32>
    %172 = tpu.matmul %169, %171, %cst_107 {dimension_numbers = #tpu.dot_dimension_numbers<[1], [0], [0], [1], [0, 0, 1, 1], [], []>} : vector<16x128xf32>, vector<128x128xf32>, vector<16x128xf32> -> vector<16x128xf32>
    %173 = arith.addf %166, %172 : vector<16x128xf32>
    %c13_i32_108 = arith.constant 13 : i32
    %174 = tpu.dynamic_rotate %87 by %c13_i32_108 dim 0 : vector<16x128xf32>, i32 -> vector<16x128xf32>
    %cst_109 = arith.constant 0.000000e+00 : f32
    %175 = vector.broadcast %cst_109 : f32 to vector<16x128xf32>
    %176 = arith.select %55, %174, %175 : vector<16x128xi1>, vector<16x128xf32>
    %c13 = arith.constant 13 : index
    %c0_110 = arith.constant 0 : index
    %c0_111 = arith.constant 0 : index
    %177 = vector.load %arg2[%c13, %c0_110, %c0_111] : memref<14x128x128xf32, #tpu.memory_space<vmem>>, vector<1x128x128xf32>
    %178 = vector.shape_cast %177 : vector<1x128x128xf32> to vector<128x128xf32>
    %cst_112 = arith.constant dense<0.000000e+00> : vector<16x128xf32>
    %179 = tpu.matmul %176, %178, %cst_112 {dimension_numbers = #tpu.dot_dimension_numbers<[1], [0], [0], [1], [0, 0, 1, 1], [], []>} : vector<16x128xf32>, vector<128x128xf32>, vector<16x128xf32> -> vector<16x128xf32>
    %180 = arith.addf %173, %179 : vector<16x128xf32>
    %181 = vector.broadcast %0 : f32 to vector<16x128xf32>
    %182 = arith.addf %180, %181 : vector<16x128xf32>
    %cst_113 = arith.constant 0.000000e+00 : f32
    %183 = vector.broadcast %cst_113 : f32 to vector<16x128xf32>
    %184 = arith.subf %183, %182 : vector<16x128xf32>
    %185 = math.exp %184 : vector<16x128xf32>
    %cst_114 = arith.constant 1.000000e+00 : f32
    %186 = vector.broadcast %cst_114 : f32 to vector<16x128xf32>
    %187 = arith.addf %186, %185 : vector<16x128xf32>
    %188 = tpu.reciprocal %187 {approx = true} : vector<16x128xf32> -> vector<16x128xf32>
    %c0_115 = arith.constant 0 : index
    %c0_116 = arith.constant 0 : index
    %c0_117 = arith.constant 0 : index
    %c0_118 = arith.constant 0 : index
    %189 = vector.load %arg3[%c0_115, %c0_116, %c0_117, %c0_118] : memref<2x8x16x128xf32, #tpu.memory_space<vmem>>, vector<1x1x16x128xf32>
    %190 = vector.shape_cast %189 : vector<1x1x16x128xf32> to vector<16x128xf32>
    %191 = arith.mulf %190, %188 : vector<16x128xf32>
    %c0_119 = arith.constant 0 : index
    %c0_120 = arith.constant 0 : index
    %c0_121 = arith.constant 0 : index
    %c0_122 = arith.constant 0 : index
    %192 = vector.load %arg4[%c0_119, %c0_120, %c0_121, %c0_122] : memref<2x8x16x128xf32, #tpu.memory_space<vmem>>, vector<1x1x16x128xf32>
    %193 = vector.shape_cast %192 : vector<1x1x16x128xf32> to vector<16x128xf32>
    %194 = vector.shape_cast %191 : vector<16x128xf32> to vector<1x1x16x128xf32>
    tpu.vector_store %arg4[%c0_119, %c0_120, %c0_121, %c0_122], %194 {strides = array<i32>} : memref<2x8x16x128xf32, #tpu.memory_space<vmem>>, vector<1x1x16x128xf32>,
    %c0_123 = arith.constant 0 : index
    %c1_124 = arith.constant 1 : index
    %c0_125 = arith.constant 0 : index
    %c0_126 = arith.constant 0 : index
    %195 = vector.load %arg3[%c0_123, %c1_124, %c0_125, %c0_126] : memref<2x8x16x128xf32, #tpu.memory_space<vmem>>, vector<1x1x16x128xf32>
    %196 = vector.shape_cast %195 : vector<1x1x16x128xf32> to vector<16x128xf32>
    %197 = arith.mulf %196, %188 : vector<16x128xf32>
    %c0_127 = arith.constant 0 : index
    %c1_128 = arith.constant 1 : index
    %c0_129 = arith.constant 0 : index
    %c0_130 = arith.constant 0 : index
    %198 = vector.load %arg4[%c0_127, %c1_128, %c0_129, %c0_130] : memref<2x8x16x128xf32, #tpu.memory_space<vmem>>, vector<1x1x16x128xf32>
    %199 = vector.shape_cast %198 : vector<1x1x16x128xf32> to vector<16x128xf32>
    %200 = vector.shape_cast %197 : vector<16x128xf32> to vector<1x1x16x128xf32>
    tpu.vector_store %arg4[%c0_127, %c1_128, %c0_129, %c0_130], %200 {strides = array<i32>} : memref<2x8x16x128xf32, #tpu.memory_space<vmem>>, vector<1x1x16x128xf32>,
    %c0_131 = arith.constant 0 : index
    %c2_132 = arith.constant 2 : index
    %c0_133 = arith.constant 0 : index
    %c0_134 = arith.constant 0 : index
    %201 = vector.load %arg3[%c0_131, %c2_132, %c0_133, %c0_134] : memref<2x8x16x128xf32, #tpu.memory_space<vmem>>, vector<1x1x16x128xf32>
    %202 = vector.shape_cast %201 : vector<1x1x16x128xf32> to vector<16x128xf32>
    %203 = arith.mulf %202, %188 : vector<16x128xf32>
    %c0_135 = arith.constant 0 : index
    %c2_136 = arith.constant 2 : index
    %c0_137 = arith.constant 0 : index
    %c0_138 = arith.constant 0 : index
    %204 = vector.load %arg4[%c0_135, %c2_136, %c0_137, %c0_138] : memref<2x8x16x128xf32, #tpu.memory_space<vmem>>, vector<1x1x16x128xf32>
    %205 = vector.shape_cast %204 : vector<1x1x16x128xf32> to vector<16x128xf32>
    %206 = vector.shape_cast %203 : vector<16x128xf32> to vector<1x1x16x128xf32>
    tpu.vector_store %arg4[%c0_135, %c2_136, %c0_137, %c0_138], %206 {strides = array<i32>} : memref<2x8x16x128xf32, #tpu.memory_space<vmem>>, vector<1x1x16x128xf32>,
    %c0_139 = arith.constant 0 : index
    %c3_140 = arith.constant 3 : index
    %c0_141 = arith.constant 0 : index
    %c0_142 = arith.constant 0 : index
    %207 = vector.load %arg3[%c0_139, %c3_140, %c0_141, %c0_142] : memref<2x8x16x128xf32, #tpu.memory_space<vmem>>, vector<1x1x16x128xf32>
    %208 = vector.shape_cast %207 : vector<1x1x16x128xf32> to vector<16x128xf32>
    %209 = arith.mulf %208, %188 : vector<16x128xf32>
    %c0_143 = arith.constant 0 : index
    %c3_144 = arith.constant 3 : index
    %c0_145 = arith.constant 0 : index
    %c0_146 = arith.constant 0 : index
    %210 = vector.load %arg4[%c0_143, %c3_144, %c0_145, %c0_146] : memref<2x8x16x128xf32, #tpu.memory_space<vmem>>, vector<1x1x16x128xf32>
    %211 = vector.shape_cast %210 : vector<1x1x16x128xf32> to vector<16x128xf32>
    %212 = vector.shape_cast %209 : vector<16x128xf32> to vector<1x1x16x128xf32>
    tpu.vector_store %arg4[%c0_143, %c3_144, %c0_145, %c0_146], %212 {strides = array<i32>} : memref<2x8x16x128xf32, #tpu.memory_space<vmem>>, vector<1x1x16x128xf32>,
    %c0_147 = arith.constant 0 : index
    %c4_148 = arith.constant 4 : index
    %c0_149 = arith.constant 0 : index
    %c0_150 = arith.constant 0 : index
    %213 = vector.load %arg3[%c0_147, %c4_148, %c0_149, %c0_150] : memref<2x8x16x128xf32, #tpu.memory_space<vmem>>, vector<1x1x16x128xf32>
    %214 = vector.shape_cast %213 : vector<1x1x16x128xf32> to vector<16x128xf32>
    %215 = arith.mulf %214, %188 : vector<16x128xf32>
    %c0_151 = arith.constant 0 : index
    %c4_152 = arith.constant 4 : index
    %c0_153 = arith.constant 0 : index
    %c0_154 = arith.constant 0 : index
    %216 = vector.load %arg4[%c0_151, %c4_152, %c0_153, %c0_154] : memref<2x8x16x128xf32, #tpu.memory_space<vmem>>, vector<1x1x16x128xf32>
    %217 = vector.shape_cast %216 : vector<1x1x16x128xf32> to vector<16x128xf32>
    %218 = vector.shape_cast %215 : vector<16x128xf32> to vector<1x1x16x128xf32>
    tpu.vector_store %arg4[%c0_151, %c4_152, %c0_153, %c0_154], %218 {strides = array<i32>} : memref<2x8x16x128xf32, #tpu.memory_space<vmem>>, vector<1x1x16x128xf32>,
    %c0_155 = arith.constant 0 : index
    %c5_156 = arith.constant 5 : index
    %c0_157 = arith.constant 0 : index
    %c0_158 = arith.constant 0 : index
    %219 = vector.load %arg3[%c0_155, %c5_156, %c0_157, %c0_158] : memref<2x8x16x128xf32, #tpu.memory_space<vmem>>, vector<1x1x16x128xf32>
    %220 = vector.shape_cast %219 : vector<1x1x16x128xf32> to vector<16x128xf32>
    %221 = arith.mulf %220, %188 : vector<16x128xf32>
    %c0_159 = arith.constant 0 : index
    %c5_160 = arith.constant 5 : index
    %c0_161 = arith.constant 0 : index
    %c0_162 = arith.constant 0 : index
    %222 = vector.load %arg4[%c0_159, %c5_160, %c0_161, %c0_162] : memref<2x8x16x128xf32, #tpu.memory_space<vmem>>, vector<1x1x16x128xf32>
    %223 = vector.shape_cast %222 : vector<1x1x16x128xf32> to vector<16x128xf32>
    %224 = vector.shape_cast %221 : vector<16x128xf32> to vector<1x1x16x128xf32>
    tpu.vector_store %arg4[%c0_159, %c5_160, %c0_161, %c0_162], %224 {strides = array<i32>} : memref<2x8x16x128xf32, #tpu.memory_space<vmem>>, vector<1x1x16x128xf32>,
    %c0_163 = arith.constant 0 : index
    %c6_164 = arith.constant 6 : index
    %c0_165 = arith.constant 0 : index
    %c0_166 = arith.constant 0 : index
    %225 = vector.load %arg3[%c0_163, %c6_164, %c0_165, %c0_166] : memref<2x8x16x128xf32, #tpu.memory_space<vmem>>, vector<1x1x16x128xf32>
    %226 = vector.shape_cast %225 : vector<1x1x16x128xf32> to vector<16x128xf32>
    %227 = arith.mulf %226, %188 : vector<16x128xf32>
    %c0_167 = arith.constant 0 : index
    %c6_168 = arith.constant 6 : index
    %c0_169 = arith.constant 0 : index
    %c0_170 = arith.constant 0 : index
    %228 = vector.load %arg4[%c0_167, %c6_168, %c0_169, %c0_170] : memref<2x8x16x128xf32, #tpu.memory_space<vmem>>, vector<1x1x16x128xf32>
    %229 = vector.shape_cast %228 : vector<1x1x16x128xf32> to vector<16x128xf32>
    %230 = vector.shape_cast %227 : vector<16x128xf32> to vector<1x1x16x128xf32>
    tpu.vector_store %arg4[%c0_167, %c6_168, %c0_169, %c0_170], %230 {strides = array<i32>} : memref<2x8x16x128xf32, #tpu.memory_space<vmem>>, vector<1x1x16x128xf32>,
    %c0_171 = arith.constant 0 : index
    %c7_172 = arith.constant 7 : index
    %c0_173 = arith.constant 0 : index
    %c0_174 = arith.constant 0 : index
    %231 = vector.load %arg3[%c0_171, %c7_172, %c0_173, %c0_174] : memref<2x8x16x128xf32, #tpu.memory_space<vmem>>, vector<1x1x16x128xf32>
    %232 = vector.shape_cast %231 : vector<1x1x16x128xf32> to vector<16x128xf32>
    %233 = arith.mulf %232, %188 : vector<16x128xf32>
    %c0_175 = arith.constant 0 : index
    %c7_176 = arith.constant 7 : index
    %c0_177 = arith.constant 0 : index
    %c0_178 = arith.constant 0 : index
    %234 = vector.load %arg4[%c0_175, %c7_176, %c0_177, %c0_178] : memref<2x8x16x128xf32, #tpu.memory_space<vmem>>, vector<1x1x16x128xf32>
    %235 = vector.shape_cast %234 : vector<1x1x16x128xf32> to vector<16x128xf32>
    %236 = vector.shape_cast %233 : vector<16x128xf32> to vector<1x1x16x128xf32>
    tpu.vector_store %arg4[%c0_175, %c7_176, %c0_177, %c0_178], %236 {strides = array<i32>} : memref<2x8x16x128xf32, #tpu.memory_space<vmem>>, vector<1x1x16x128xf32>,
    %c1_179 = arith.constant 1 : index
    %c0_180 = arith.constant 0 : index
    %c0_181 = arith.constant 0 : index
    %c0_182 = arith.constant 0 : index
    %237 = vector.load %arg3[%c1_179, %c0_180, %c0_181, %c0_182] : memref<2x8x16x128xf32, #tpu.memory_space<vmem>>, vector<1x1x16x128xf32>
    %238 = vector.shape_cast %237 : vector<1x1x16x128xf32> to vector<16x128xf32>
    %c1_183 = arith.constant 1 : index
    %c1_184 = arith.constant 1 : index
    %c0_185 = arith.constant 0 : index
    %c0_186 = arith.constant 0 : index
    %239 = vector.load %arg3[%c1_183, %c1_184, %c0_185, %c0_186] : memref<2x8x16x128xf32, #tpu.memory_space<vmem>>, vector<1x1x16x128xf32>
    %240 = vector.shape_cast %239 : vector<1x1x16x128xf32> to vector<16x128xf32>
    %241 = arith.maximumf %238, %240 : vector<16x128xf32>
    %242 = arith.addf %238, %240 : vector<16x128xf32>
    %c1_187 = arith.constant 1 : index
    %c2_188 = arith.constant 2 : index
    %c0_189 = arith.constant 0 : index
    %c0_190 = arith.constant 0 : index
    %243 = vector.load %arg3[%c1_187, %c2_188, %c0_189, %c0_190] : memref<2x8x16x128xf32, #tpu.memory_space<vmem>>, vector<1x1x16x128xf32>
    %244 = vector.shape_cast %243 : vector<1x1x16x128xf32> to vector<16x128xf32>
    %245 = arith.maximumf %241, %244 : vector<16x128xf32>
    %246 = arith.addf %242, %244 : vector<16x128xf32>
    %c1_191 = arith.constant 1 : index
    %c3_192 = arith.constant 3 : index
    %c0_193 = arith.constant 0 : index
    %c0_194 = arith.constant 0 : index
    %247 = vector.load %arg3[%c1_191, %c3_192, %c0_193, %c0_194] : memref<2x8x16x128xf32, #tpu.memory_space<vmem>>, vector<1x1x16x128xf32>
    %248 = vector.shape_cast %247 : vector<1x1x16x128xf32> to vector<16x128xf32>
    %249 = arith.maximumf %245, %248 : vector<16x128xf32>
    %250 = arith.addf %246, %248 : vector<16x128xf32>
    %c1_195 = arith.constant 1 : index
    %c4_196 = arith.constant 4 : index
    %c0_197 = arith.constant 0 : index
    %c0_198 = arith.constant 0 : index
    %251 = vector.load %arg3[%c1_195, %c4_196, %c0_197, %c0_198] : memref<2x8x16x128xf32, #tpu.memory_space<vmem>>, vector<1x1x16x128xf32>
    %252 = vector.shape_cast %251 : vector<1x1x16x128xf32> to vector<16x128xf32>
    %253 = arith.maximumf %249, %252 : vector<16x128xf32>
    %254 = arith.addf %250, %252 : vector<16x128xf32>
    %c1_199 = arith.constant 1 : index
    %c5_200 = arith.constant 5 : index
    %c0_201 = arith.constant 0 : index
    %c0_202 = arith.constant 0 : index
    %255 = vector.load %arg3[%c1_199, %c5_200, %c0_201, %c0_202] : memref<2x8x16x128xf32, #tpu.memory_space<vmem>>, vector<1x1x16x128xf32>
    %256 = vector.shape_cast %255 : vector<1x1x16x128xf32> to vector<16x128xf32>
    %257 = arith.maximumf %253, %256 : vector<16x128xf32>
    %258 = arith.addf %254, %256 : vector<16x128xf32>
    %c1_203 = arith.constant 1 : index
    %c6_204 = arith.constant 6 : index
    %c0_205 = arith.constant 0 : index
    %c0_206 = arith.constant 0 : index
    %259 = vector.load %arg3[%c1_203, %c6_204, %c0_205, %c0_206] : memref<2x8x16x128xf32, #tpu.memory_space<vmem>>, vector<1x1x16x128xf32>
    %260 = vector.shape_cast %259 : vector<1x1x16x128xf32> to vector<16x128xf32>
    %261 = arith.maximumf %257, %260 : vector<16x128xf32>
    %262 = arith.addf %258, %260 : vector<16x128xf32>
    %c1_207 = arith.constant 1 : index
    %c7_208 = arith.constant 7 : index
    %c0_209 = arith.constant 0 : index
    %c0_210 = arith.constant 0 : index
    %263 = vector.load %arg3[%c1_207, %c7_208, %c0_209, %c0_210] : memref<2x8x16x128xf32, #tpu.memory_space<vmem>>, vector<1x1x16x128xf32>
    %264 = vector.shape_cast %263 : vector<1x1x16x128xf32> to vector<16x128xf32>
    %265 = arith.maximumf %261, %264 : vector<16x128xf32>
    %266 = arith.addf %262, %264 : vector<16x128xf32>
    %cst_211 = arith.constant 1.250000e-01 : f32
    %267 = vector.broadcast %cst_211 : f32 to vector<16x128xf32>
    %268 = arith.mulf %266, %267 : vector<16x128xf32>
    %cst_212 = arith.constant 0.000000e+00 : f32
    %269 = vector.broadcast %cst_212 : f32 to vector<16x128xf32>
    %c3_i32_213 = arith.constant 3 : i32
    %270 = tpu.dynamic_rotate %265 by %c3_i32_213 dim 0 : vector<16x128xf32>, i32 -> vector<16x128xf32>
    %cst_214 = arith.constant 0.000000e+00 : f32
    %271 = vector.broadcast %cst_214 : f32 to vector<16x128xf32>
    %272 = arith.select %10, %270, %271 : vector<16x128xi1>, vector<16x128xf32>
    %c0_215 = arith.constant 0 : index
    %c0_216 = arith.constant 0 : index
    %c0_217 = arith.constant 0 : index
    %273 = vector.load %arg2[%c0_215, %c0_216, %c0_217] : memref<14x128x128xf32, #tpu.memory_space<vmem>>, vector<1x128x128xf32>
    %274 = vector.shape_cast %273 : vector<1x128x128xf32> to vector<128x128xf32>
    %cst_218 = arith.constant dense<0.000000e+00> : vector<16x128xf32>
    %275 = tpu.matmul %272, %274, %cst_218 {dimension_numbers = #tpu.dot_dimension_numbers<[1], [0], [0], [1], [0, 0, 1, 1], [], []>} : vector<16x128xf32>, vector<128x128xf32>, vector<16x128xf32> -> vector<16x128xf32>
    %276 = arith.addf %269, %275 : vector<16x128xf32>
    %c2_i32_219 = arith.constant 2 : i32
    %277 = tpu.dynamic_rotate %265 by %c2_i32_219 dim 0 : vector<16x128xf32>, i32 -> vector<16x128xf32>
    %cst_220 = arith.constant 0.000000e+00 : f32
    %278 = vector.broadcast %cst_220 : f32 to vector<16x128xf32>
    %279 = arith.select %19, %277, %278 : vector<16x128xi1>, vector<16x128xf32>
    %c1_221 = arith.constant 1 : index
    %c0_222 = arith.constant 0 : index
    %c0_223 = arith.constant 0 : index
    %280 = vector.load %arg2[%c1_221, %c0_222, %c0_223] : memref<14x128x128xf32, #tpu.memory_space<vmem>>, vector<1x128x128xf32>
    %281 = vector.shape_cast %280 : vector<1x128x128xf32> to vector<128x128xf32>
    %cst_224 = arith.constant dense<0.000000e+00> : vector<16x128xf32>
    %282 = tpu.matmul %279, %281, %cst_224 {dimension_numbers = #tpu.dot_dimension_numbers<[1], [0], [0], [1], [0, 0, 1, 1], [], []>} : vector<16x128xf32>, vector<128x128xf32>, vector<16x128xf32> -> vector<16x128xf32>
    %283 = arith.addf %276, %282 : vector<16x128xf32>
    %c1_i32_225 = arith.constant 1 : i32
    %284 = tpu.dynamic_rotate %265 by %c1_i32_225 dim 0 : vector<16x128xf32>, i32 -> vector<16x128xf32>
    %cst_226 = arith.constant 0.000000e+00 : f32
    %285 = vector.broadcast %cst_226 : f32 to vector<16x128xf32>
    %286 = arith.select %28, %284, %285 : vector<16x128xi1>, vector<16x128xf32>
    %c2_227 = arith.constant 2 : index
    %c0_228 = arith.constant 0 : index
    %c0_229 = arith.constant 0 : index
    %287 = vector.load %arg2[%c2_227, %c0_228, %c0_229] : memref<14x128x128xf32, #tpu.memory_space<vmem>>, vector<1x128x128xf32>
    %288 = vector.shape_cast %287 : vector<1x128x128xf32> to vector<128x128xf32>
    %cst_230 = arith.constant dense<0.000000e+00> : vector<16x128xf32>
    %289 = tpu.matmul %286, %288, %cst_230 {dimension_numbers = #tpu.dot_dimension_numbers<[1], [0], [0], [1], [0, 0, 1, 1], [], []>} : vector<16x128xf32>, vector<128x128xf32>, vector<16x128xf32> -> vector<16x128xf32>
    %290 = arith.addf %283, %289 : vector<16x128xf32>
    %c3_231 = arith.constant 3 : index
    %c0_232 = arith.constant 0 : index
    %c0_233 = arith.constant 0 : index
    %291 = vector.load %arg2[%c3_231, %c0_232, %c0_233] : memref<14x128x128xf32, #tpu.memory_space<vmem>>, vector<1x128x128xf32>
    %292 = vector.shape_cast %291 : vector<1x128x128xf32> to vector<128x128xf32>
    %cst_234 = arith.constant dense<0.000000e+00> : vector<16x128xf32>
    %293 = tpu.matmul %265, %292, %cst_234 {dimension_numbers = #tpu.dot_dimension_numbers<[1], [0], [0], [1], [0, 0, 1, 1], [], []>} : vector<16x128xf32>, vector<128x128xf32>, vector<16x128xf32> -> vector<16x128xf32>
    %294 = arith.addf %290, %293 : vector<16x128xf32>
    %c15_i32_235 = arith.constant 15 : i32
    %295 = tpu.dynamic_rotate %265 by %c15_i32_235 dim 0 : vector<16x128xf32>, i32 -> vector<16x128xf32>
    %cst_236 = arith.constant 0.000000e+00 : f32
    %296 = vector.broadcast %cst_236 : f32 to vector<16x128xf32>
    %297 = arith.select %37, %295, %296 : vector<16x128xi1>, vector<16x128xf32>
    %c4_237 = arith.constant 4 : index
    %c0_238 = arith.constant 0 : index
    %c0_239 = arith.constant 0 : index
    %298 = vector.load %arg2[%c4_237, %c0_238, %c0_239] : memref<14x128x128xf32, #tpu.memory_space<vmem>>, vector<1x128x128xf32>
    %299 = vector.shape_cast %298 : vector<1x128x128xf32> to vector<128x128xf32>
    %cst_240 = arith.constant dense<0.000000e+00> : vector<16x128xf32>
    %300 = tpu.matmul %297, %299, %cst_240 {dimension_numbers = #tpu.dot_dimension_numbers<[1], [0], [0], [1], [0, 0, 1, 1], [], []>} : vector<16x128xf32>, vector<128x128xf32>, vector<16x128xf32> -> vector<16x128xf32>
    %301 = arith.addf %294, %300 : vector<16x128xf32>
    %c14_i32_241 = arith.constant 14 : i32
    %302 = tpu.dynamic_rotate %265 by %c14_i32_241 dim 0 : vector<16x128xf32>, i32 -> vector<16x128xf32>
    %cst_242 = arith.constant 0.000000e+00 : f32
    %303 = vector.broadcast %cst_242 : f32 to vector<16x128xf32>
    %304 = arith.select %46, %302, %303 : vector<16x128xi1>, vector<16x128xf32>
    %c5_243 = arith.constant 5 : index
    %c0_244 = arith.constant 0 : index
    %c0_245 = arith.constant 0 : index
    %305 = vector.load %arg2[%c5_243, %c0_244, %c0_245] : memref<14x128x128xf32, #tpu.memory_space<vmem>>, vector<1x128x128xf32>
    %306 = vector.shape_cast %305 : vector<1x128x128xf32> to vector<128x128xf32>
    %cst_246 = arith.constant dense<0.000000e+00> : vector<16x128xf32>
    %307 = tpu.matmul %304, %306, %cst_246 {dimension_numbers = #tpu.dot_dimension_numbers<[1], [0], [0], [1], [0, 0, 1, 1], [], []>} : vector<16x128xf32>, vector<128x128xf32>, vector<16x128xf32> -> vector<16x128xf32>
    %308 = arith.addf %301, %307 : vector<16x128xf32>
    %c13_i32_247 = arith.constant 13 : i32
    %309 = tpu.dynamic_rotate %265 by %c13_i32_247 dim 0 : vector<16x128xf32>, i32 -> vector<16x128xf32>
    %cst_248 = arith.constant 0.000000e+00 : f32
    %310 = vector.broadcast %cst_248 : f32 to vector<16x128xf32>
    %311 = arith.select %55, %309, %310 : vector<16x128xi1>, vector<16x128xf32>
    %c6_249 = arith.constant 6 : index
    %c0_250 = arith.constant 0 : index
    %c0_251 = arith.constant 0 : index
    %312 = vector.load %arg2[%c6_249, %c0_250, %c0_251] : memref<14x128x128xf32, #tpu.memory_space<vmem>>, vector<1x128x128xf32>
    %313 = vector.shape_cast %312 : vector<1x128x128xf32> to vector<128x128xf32>
    %cst_252 = arith.constant dense<0.000000e+00> : vector<16x128xf32>
    %314 = tpu.matmul %311, %313, %cst_252 {dimension_numbers = #tpu.dot_dimension_numbers<[1], [0], [0], [1], [0, 0, 1, 1], [], []>} : vector<16x128xf32>, vector<128x128xf32>, vector<16x128xf32> -> vector<16x128xf32>
    %315 = arith.addf %308, %314 : vector<16x128xf32>
    %c3_i32_253 = arith.constant 3 : i32
    %316 = tpu.dynamic_rotate %268 by %c3_i32_253 dim 0 : vector<16x128xf32>, i32 -> vector<16x128xf32>
    %cst_254 = arith.constant 0.000000e+00 : f32
    %317 = vector.broadcast %cst_254 : f32 to vector<16x128xf32>
    %318 = arith.select %10, %316, %317 : vector<16x128xi1>, vector<16x128xf32>
    %c7_255 = arith.constant 7 : index
    %c0_256 = arith.constant 0 : index
    %c0_257 = arith.constant 0 : index
    %319 = vector.load %arg2[%c7_255, %c0_256, %c0_257] : memref<14x128x128xf32, #tpu.memory_space<vmem>>, vector<1x128x128xf32>
    %320 = vector.shape_cast %319 : vector<1x128x128xf32> to vector<128x128xf32>
    %cst_258 = arith.constant dense<0.000000e+00> : vector<16x128xf32>
    %321 = tpu.matmul %318, %320, %cst_258 {dimension_numbers = #tpu.dot_dimension_numbers<[1], [0], [0], [1], [0, 0, 1, 1], [], []>} : vector<16x128xf32>, vector<128x128xf32>, vector<16x128xf32> -> vector<16x128xf32>
    %322 = arith.addf %315, %321 : vector<16x128xf32>
    %c2_i32_259 = arith.constant 2 : i32
    %323 = tpu.dynamic_rotate %268 by %c2_i32_259 dim 0 : vector<16x128xf32>, i32 -> vector<16x128xf32>
    %cst_260 = arith.constant 0.000000e+00 : f32
    %324 = vector.broadcast %cst_260 : f32 to vector<16x128xf32>
    %325 = arith.select %19, %323, %324 : vector<16x128xi1>, vector<16x128xf32>
    %c8_261 = arith.constant 8 : index
    %c0_262 = arith.constant 0 : index
    %c0_263 = arith.constant 0 : index
    %326 = vector.load %arg2[%c8_261, %c0_262, %c0_263] : memref<14x128x128xf32, #tpu.memory_space<vmem>>, vector<1x128x128xf32>
    %327 = vector.shape_cast %326 : vector<1x128x128xf32> to vector<128x128xf32>
    %cst_264 = arith.constant dense<0.000000e+00> : vector<16x128xf32>
    %328 = tpu.matmul %325, %327, %cst_264 {dimension_numbers = #tpu.dot_dimension_numbers<[1], [0], [0], [1], [0, 0, 1, 1], [], []>} : vector<16x128xf32>, vector<128x128xf32>, vector<16x128xf32> -> vector<16x128xf32>
    %329 = arith.addf %322, %328 : vector<16x128xf32>
    %c1_i32_265 = arith.constant 1 : i32
    %330 = tpu.dynamic_rotate %268 by %c1_i32_265 dim 0 : vector<16x128xf32>, i32 -> vector<16x128xf32>
    %cst_266 = arith.constant 0.000000e+00 : f32
    %331 = vector.broadcast %cst_266 : f32 to vector<16x128xf32>
    %332 = arith.select %28, %330, %331 : vector<16x128xi1>, vector<16x128xf32>
    %c9_267 = arith.constant 9 : index
    %c0_268 = arith.constant 0 : index
    %c0_269 = arith.constant 0 : index
    %333 = vector.load %arg2[%c9_267, %c0_268, %c0_269] : memref<14x128x128xf32, #tpu.memory_space<vmem>>, vector<1x128x128xf32>
    %334 = vector.shape_cast %333 : vector<1x128x128xf32> to vector<128x128xf32>
    %cst_270 = arith.constant dense<0.000000e+00> : vector<16x128xf32>
    %335 = tpu.matmul %332, %334, %cst_270 {dimension_numbers = #tpu.dot_dimension_numbers<[1], [0], [0], [1], [0, 0, 1, 1], [], []>} : vector<16x128xf32>, vector<128x128xf32>, vector<16x128xf32> -> vector<16x128xf32>
    %336 = arith.addf %329, %335 : vector<16x128xf32>
    %c10_271 = arith.constant 10 : index
    %c0_272 = arith.constant 0 : index
    %c0_273 = arith.constant 0 : index
    %337 = vector.load %arg2[%c10_271, %c0_272, %c0_273] : memref<14x128x128xf32, #tpu.memory_space<vmem>>, vector<1x128x128xf32>
    %338 = vector.shape_cast %337 : vector<1x128x128xf32> to vector<128x128xf32>
    %cst_274 = arith.constant dense<0.000000e+00> : vector<16x128xf32>
    %339 = tpu.matmul %268, %338, %cst_274 {dimension_numbers = #tpu.dot_dimension_numbers<[1], [0], [0], [1], [0, 0, 1, 1], [], []>} : vector<16x128xf32>, vector<128x128xf32>, vector<16x128xf32> -> vector<16x128xf32>
    %340 = arith.addf %336, %339 : vector<16x128xf32>
    %c15_i32_275 = arith.constant 15 : i32
    %341 = tpu.dynamic_rotate %268 by %c15_i32_275 dim 0 : vector<16x128xf32>, i32 -> vector<16x128xf32>
    %cst_276 = arith.constant 0.000000e+00 : f32
    %342 = vector.broadcast %cst_276 : f32 to vector<16x128xf32>
    %343 = arith.select %37, %341, %342 : vector<16x128xi1>, vector<16x128xf32>
    %c11_277 = arith.constant 11 : index
    %c0_278 = arith.constant 0 : index
    %c0_279 = arith.constant 0 : index
    %344 = vector.load %arg2[%c11_277, %c0_278, %c0_279] : memref<14x128x128xf32, #tpu.memory_space<vmem>>, vector<1x128x128xf32>
    %345 = vector.shape_cast %344 : vector<1x128x128xf32> to vector<128x128xf32>
    %cst_280 = arith.constant dense<0.000000e+00> : vector<16x128xf32>
    %346 = tpu.matmul %343, %345, %cst_280 {dimension_numbers = #tpu.dot_dimension_numbers<[1], [0], [0], [1], [0, 0, 1, 1], [], []>} : vector<16x128xf32>, vector<128x128xf32>, vector<16x128xf32> -> vector<16x128xf32>
    %347 = arith.addf %340, %346 : vector<16x128xf32>
    %c14_i32_281 = arith.constant 14 : i32
    %348 = tpu.dynamic_rotate %268 by %c14_i32_281 dim 0 : vector<16x128xf32>, i32 -> vector<16x128xf32>
    %cst_282 = arith.constant 0.000000e+00 : f32
    %349 = vector.broadcast %cst_282 : f32 to vector<16x128xf32>
    %350 = arith.select %46, %348, %349 : vector<16x128xi1>, vector<16x128xf32>
    %c12_283 = arith.constant 12 : index
    %c0_284 = arith.constant 0 : index
    %c0_285 = arith.constant 0 : index
    %351 = vector.load %arg2[%c12_283, %c0_284, %c0_285] : memref<14x128x128xf32, #tpu.memory_space<vmem>>, vector<1x128x128xf32>
    %352 = vector.shape_cast %351 : vector<1x128x128xf32> to vector<128x128xf32>
    %cst_286 = arith.constant dense<0.000000e+00> : vector<16x128xf32>
    %353 = tpu.matmul %350, %352, %cst_286 {dimension_numbers = #tpu.dot_dimension_numbers<[1], [0], [0], [1], [0, 0, 1, 1], [], []>} : vector<16x128xf32>, vector<128x128xf32>, vector<16x128xf32> -> vector<16x128xf32>
    %354 = arith.addf %347, %353 : vector<16x128xf32>
    %c13_i32_287 = arith.constant 13 : i32
    %355 = tpu.dynamic_rotate %268 by %c13_i32_287 dim 0 : vector<16x128xf32>, i32 -> vector<16x128xf32>
    %cst_288 = arith.constant 0.000000e+00 : f32
    %356 = vector.broadcast %cst_288 : f32 to vector<16x128xf32>
    %357 = arith.select %55, %355, %356 : vector<16x128xi1>, vector<16x128xf32>
    %c13_289 = arith.constant 13 : index
    %c0_290 = arith.constant 0 : index
    %c0_291 = arith.constant 0 : index
    %358 = vector.load %arg2[%c13_289, %c0_290, %c0_291] : memref<14x128x128xf32, #tpu.memory_space<vmem>>, vector<1x128x128xf32>
    %359 = vector.shape_cast %358 : vector<1x128x128xf32> to vector<128x128xf32>
    %cst_292 = arith.constant dense<0.000000e+00> : vector<16x128xf32>
    %360 = tpu.matmul %357, %359, %cst_292 {dimension_numbers = #tpu.dot_dimension_numbers<[1], [0], [0], [1], [0, 0, 1, 1], [], []>} : vector<16x128xf32>, vector<128x128xf32>, vector<16x128xf32> -> vector<16x128xf32>
    %361 = arith.addf %354, %360 : vector<16x128xf32>
    %362 = vector.broadcast %0 : f32 to vector<16x128xf32>
    %363 = arith.addf %361, %362 : vector<16x128xf32>
    %cst_293 = arith.constant 0.000000e+00 : f32
    %364 = vector.broadcast %cst_293 : f32 to vector<16x128xf32>
    %365 = arith.subf %364, %363 : vector<16x128xf32>
    %366 = math.exp %365 : vector<16x128xf32>
    %cst_294 = arith.constant 1.000000e+00 : f32
    %367 = vector.broadcast %cst_294 : f32 to vector<16x128xf32>
    %368 = arith.addf %367, %366 : vector<16x128xf32>
    %369 = tpu.reciprocal %368 {approx = true} : vector<16x128xf32> -> vector<16x128xf32>
    %c1_295 = arith.constant 1 : index
    %c0_296 = arith.constant 0 : index
    %c0_297 = arith.constant 0 : index
    %c0_298 = arith.constant 0 : index
    %370 = vector.load %arg3[%c1_295, %c0_296, %c0_297, %c0_298] : memref<2x8x16x128xf32, #tpu.memory_space<vmem>>, vector<1x1x16x128xf32>
    %371 = vector.shape_cast %370 : vector<1x1x16x128xf32> to vector<16x128xf32>
    %372 = arith.mulf %371, %369 : vector<16x128xf32>
    %c1_299 = arith.constant 1 : index
    %c0_300 = arith.constant 0 : index
    %c0_301 = arith.constant 0 : index
    %c0_302 = arith.constant 0 : index
    %373 = vector.load %arg4[%c1_299, %c0_300, %c0_301, %c0_302] : memref<2x8x16x128xf32, #tpu.memory_space<vmem>>, vector<1x1x16x128xf32>
    %374 = vector.shape_cast %373 : vector<1x1x16x128xf32> to vector<16x128xf32>
    %375 = vector.shape_cast %372 : vector<16x128xf32> to vector<1x1x16x128xf32>
    tpu.vector_store %arg4[%c1_299, %c0_300, %c0_301, %c0_302], %375 {strides = array<i32>} : memref<2x8x16x128xf32, #tpu.memory_space<vmem>>, vector<1x1x16x128xf32>,
    %c1_303 = arith.constant 1 : index
    %c1_304 = arith.constant 1 : index
    %c0_305 = arith.constant 0 : index
    %c0_306 = arith.constant 0 : index
    %376 = vector.load %arg3[%c1_303, %c1_304, %c0_305, %c0_306] : memref<2x8x16x128xf32, #tpu.memory_space<vmem>>, vector<1x1x16x128xf32>
    %377 = vector.shape_cast %376 : vector<1x1x16x128xf32> to vector<16x128xf32>
    %378 = arith.mulf %377, %369 : vector<16x128xf32>
    %c1_307 = arith.constant 1 : index
    %c1_308 = arith.constant 1 : index
    %c0_309 = arith.constant 0 : index
    %c0_310 = arith.constant 0 : index
    %379 = vector.load %arg4[%c1_307, %c1_308, %c0_309, %c0_310] : memref<2x8x16x128xf32, #tpu.memory_space<vmem>>, vector<1x1x16x128xf32>
    %380 = vector.shape_cast %379 : vector<1x1x16x128xf32> to vector<16x128xf32>
    %381 = vector.shape_cast %378 : vector<16x128xf32> to vector<1x1x16x128xf32>
    tpu.vector_store %arg4[%c1_307, %c1_308, %c0_309, %c0_310], %381 {strides = array<i32>} : memref<2x8x16x128xf32, #tpu.memory_space<vmem>>, vector<1x1x16x128xf32>,
    %c1_311 = arith.constant 1 : index
    %c2_312 = arith.constant 2 : index
    %c0_313 = arith.constant 0 : index
    %c0_314 = arith.constant 0 : index
    %382 = vector.load %arg3[%c1_311, %c2_312, %c0_313, %c0_314] : memref<2x8x16x128xf32, #tpu.memory_space<vmem>>, vector<1x1x16x128xf32>
    %383 = vector.shape_cast %382 : vector<1x1x16x128xf32> to vector<16x128xf32>
    %384 = arith.mulf %383, %369 : vector<16x128xf32>
    %c1_315 = arith.constant 1 : index
    %c2_316 = arith.constant 2 : index
    %c0_317 = arith.constant 0 : index
    %c0_318 = arith.constant 0 : index
    %385 = vector.load %arg4[%c1_315, %c2_316, %c0_317, %c0_318] : memref<2x8x16x128xf32, #tpu.memory_space<vmem>>, vector<1x1x16x128xf32>
    %386 = vector.shape_cast %385 : vector<1x1x16x128xf32> to vector<16x128xf32>
    %387 = vector.shape_cast %384 : vector<16x128xf32> to vector<1x1x16x128xf32>
    tpu.vector_store %arg4[%c1_315, %c2_316, %c0_317, %c0_318], %387 {strides = array<i32>} : memref<2x8x16x128xf32, #tpu.memory_space<vmem>>, vector<1x1x16x128xf32>,
    %c1_319 = arith.constant 1 : index
    %c3_320 = arith.constant 3 : index
    %c0_321 = arith.constant 0 : index
    %c0_322 = arith.constant 0 : index
    %388 = vector.load %arg3[%c1_319, %c3_320, %c0_321, %c0_322] : memref<2x8x16x128xf32, #tpu.memory_space<vmem>>, vector<1x1x16x128xf32>
    %389 = vector.shape_cast %388 : vector<1x1x16x128xf32> to vector<16x128xf32>
    %390 = arith.mulf %389, %369 : vector<16x128xf32>
    %c1_323 = arith.constant 1 : index
    %c3_324 = arith.constant 3 : index
    %c0_325 = arith.constant 0 : index
    %c0_326 = arith.constant 0 : index
    %391 = vector.load %arg4[%c1_323, %c3_324, %c0_325, %c0_326] : memref<2x8x16x128xf32, #tpu.memory_space<vmem>>, vector<1x1x16x128xf32>
    %392 = vector.shape_cast %391 : vector<1x1x16x128xf32> to vector<16x128xf32>
    %393 = vector.shape_cast %390 : vector<16x128xf32> to vector<1x1x16x128xf32>
    tpu.vector_store %arg4[%c1_323, %c3_324, %c0_325, %c0_326], %393 {strides = array<i32>} : memref<2x8x16x128xf32, #tpu.memory_space<vmem>>, vector<1x1x16x128xf32>,
    %c1_327 = arith.constant 1 : index
    %c4_328 = arith.constant 4 : index
    %c0_329 = arith.constant 0 : index
    %c0_330 = arith.constant 0 : index
    %394 = vector.load %arg3[%c1_327, %c4_328, %c0_329, %c0_330] : memref<2x8x16x128xf32, #tpu.memory_space<vmem>>, vector<1x1x16x128xf32>
    %395 = vector.shape_cast %394 : vector<1x1x16x128xf32> to vector<16x128xf32>
    %396 = arith.mulf %395, %369 : vector<16x128xf32>
    %c1_331 = arith.constant 1 : index
    %c4_332 = arith.constant 4 : index
    %c0_333 = arith.constant 0 : index
    %c0_334 = arith.constant 0 : index
    %397 = vector.load %arg4[%c1_331, %c4_332, %c0_333, %c0_334] : memref<2x8x16x128xf32, #tpu.memory_space<vmem>>, vector<1x1x16x128xf32>
    %398 = vector.shape_cast %397 : vector<1x1x16x128xf32> to vector<16x128xf32>
    %399 = vector.shape_cast %396 : vector<16x128xf32> to vector<1x1x16x128xf32>
    tpu.vector_store %arg4[%c1_331, %c4_332, %c0_333, %c0_334], %399 {strides = array<i32>} : memref<2x8x16x128xf32, #tpu.memory_space<vmem>>, vector<1x1x16x128xf32>,
    %c1_335 = arith.constant 1 : index
    %c5_336 = arith.constant 5 : index
    %c0_337 = arith.constant 0 : index
    %c0_338 = arith.constant 0 : index
    %400 = vector.load %arg3[%c1_335, %c5_336, %c0_337, %c0_338] : memref<2x8x16x128xf32, #tpu.memory_space<vmem>>, vector<1x1x16x128xf32>
    %401 = vector.shape_cast %400 : vector<1x1x16x128xf32> to vector<16x128xf32>
    %402 = arith.mulf %401, %369 : vector<16x128xf32>
    %c1_339 = arith.constant 1 : index
    %c5_340 = arith.constant 5 : index
    %c0_341 = arith.constant 0 : index
    %c0_342 = arith.constant 0 : index
    %403 = vector.load %arg4[%c1_339, %c5_340, %c0_341, %c0_342] : memref<2x8x16x128xf32, #tpu.memory_space<vmem>>, vector<1x1x16x128xf32>
    %404 = vector.shape_cast %403 : vector<1x1x16x128xf32> to vector<16x128xf32>
    %405 = vector.shape_cast %402 : vector<16x128xf32> to vector<1x1x16x128xf32>
    tpu.vector_store %arg4[%c1_339, %c5_340, %c0_341, %c0_342], %405 {strides = array<i32>} : memref<2x8x16x128xf32, #tpu.memory_space<vmem>>, vector<1x1x16x128xf32>,
    %c1_343 = arith.constant 1 : index
    %c6_344 = arith.constant 6 : index
    %c0_345 = arith.constant 0 : index
    %c0_346 = arith.constant 0 : index
    %406 = vector.load %arg3[%c1_343, %c6_344, %c0_345, %c0_346] : memref<2x8x16x128xf32, #tpu.memory_space<vmem>>, vector<1x1x16x128xf32>
    %407 = vector.shape_cast %406 : vector<1x1x16x128xf32> to vector<16x128xf32>
    %408 = arith.mulf %407, %369 : vector<16x128xf32>
    %c1_347 = arith.constant 1 : index
    %c6_348 = arith.constant 6 : index
    %c0_349 = arith.constant 0 : index
    %c0_350 = arith.constant 0 : index
    %409 = vector.load %arg4[%c1_347, %c6_348, %c0_349, %c0_350] : memref<2x8x16x128xf32, #tpu.memory_space<vmem>>, vector<1x1x16x128xf32>
    %410 = vector.shape_cast %409 : vector<1x1x16x128xf32> to vector<16x128xf32>
    %411 = vector.shape_cast %408 : vector<16x128xf32> to vector<1x1x16x128xf32>
    tpu.vector_store %arg4[%c1_347, %c6_348, %c0_349, %c0_350], %411 {strides = array<i32>} : memref<2x8x16x128xf32, #tpu.memory_space<vmem>>, vector<1x1x16x128xf32>,
    %c1_351 = arith.constant 1 : index
    %c7_352 = arith.constant 7 : index
    %c0_353 = arith.constant 0 : index
    %c0_354 = arith.constant 0 : index
    %412 = vector.load %arg3[%c1_351, %c7_352, %c0_353, %c0_354] : memref<2x8x16x128xf32, #tpu.memory_space<vmem>>, vector<1x1x16x128xf32>
    %413 = vector.shape_cast %412 : vector<1x1x16x128xf32> to vector<16x128xf32>
    %414 = arith.mulf %413, %369 : vector<16x128xf32>
    %c1_355 = arith.constant 1 : index
    %c7_356 = arith.constant 7 : index
    %c0_357 = arith.constant 0 : index
    %c0_358 = arith.constant 0 : index
    %415 = vector.load %arg4[%c1_355, %c7_356, %c0_357, %c0_358] : memref<2x8x16x128xf32, #tpu.memory_space<vmem>>, vector<1x1x16x128xf32>
    %416 = vector.shape_cast %415 : vector<1x1x16x128xf32> to vector<16x128xf32>
    %417 = vector.shape_cast %414 : vector<16x128xf32> to vector<1x1x16x128xf32>
    tpu.vector_store %arg4[%c1_355, %c7_356, %c0_357, %c0_358], %417 {strides = array<i32>} : memref<2x8x16x128xf32, #tpu.memory_space<vmem>>, vector<1x1x16x128xf32>,
    return
  }
  func.func @transform_0(%arg0: i32, %arg1: memref<1xf32, #tpu.memory_space<smem>>) -> (i32, i32, i32) {
    %c0_i32 = arith.constant 0 : i32
    %c0_i32_0 = arith.constant 0 : i32
    %c0_i32_1 = arith.constant 0 : i32
    %c0_i32_2 = arith.constant 0 : i32
    return %c0_i32, %c0_i32_0, %c0_i32_1 : i32, i32, i32
  }
  func.func @transform_1(%arg0: i32, %arg1: memref<1xf32, #tpu.memory_space<smem>>) -> (i32, i32, i32, i32) {
    %c0_i32 = arith.constant 0 : i32
    %c0_i32_0 = arith.constant 0 : i32
    %c0_i32_1 = arith.constant 0 : i32
    %c0_i32_2 = arith.constant 0 : i32
    return %arg0, %c0_i32, %c0_i32_0, %c0_i32_1 : i32, i32, i32, i32
  }
  func.func @transform_2(%arg0: i32, %arg1: memref<1xf32, #tpu.memory_space<smem>>) -> (i32, i32, i32, i32) {
    %c0_i32 = arith.constant 0 : i32
    %c0_i32_0 = arith.constant 0 : i32
    %c0_i32_1 = arith.constant 0 : i32
    %c0_i32_2 = arith.constant 0 : i32
    return %arg0, %c0_i32, %c0_i32_0, %c0_i32_1 : i32, i32, i32, i32
  }
}

</mosaic_0001>

<llo_original>
// kernel: spatial_gate_forward.1
$region0: #{spatial_gate_forward.1}
  #allocation0 [shape = 'u32[]', space=smem, size = 0x4, offset = 0x4, fixed_abs, tag = 'smem constant byte address 0x4 - core index']
  #allocation1 [shape = 'u32[144,128]{1,0:T(1,128)}', space=vmem, size = 0x12000, scoped, tag = 'internal scratch']
  #allocation2 [shape = 's32[1]{0}', space=sflag, size = 0x4, scoped, tag = 'scoped memory for spatial_gate_forward.1']
  #allocation3 [shape = 'f32[1]{0:T(128)S(6)}', space=smem, size = 0x200, scoped, tag = 'prefetched SMEM operand 0']
  %s0 = inlined_call_operand.<no memory space> [shape: f32[1], index: 0, kind: input, shape index: {}]
  %s1 = inlined_call_operand.vmem [shape: f32[14,128,128], index: 1, kind: input, shape index: {}]
  %s2 = inlined_call_operand.vmem [shape: f32[2,8,16,128], index: 2, kind: input, shape index: {}]
  %s3 = inlined_call_operand.hbm [shape: f32[2,8,16,128], index: 3, kind: output, shape index: {}]
  %s4 = sld [smem:[#allocation0]]
  $region18: #{spatial_gate_forward.1} parent=0
    _
  %s6 = ssub.s32 1, %s4
  %s7 = scalar_select 0, %s6, %s4
  %8 = sst [smem:[#allocation3]] %s0
  $region1: #{spatial_gate_forward.1} parent=0
    #allocation4 [shape = 'u8[131072]{0}', space=vmem, size = 0x20000, scoped, tag = 'output window, operand 0, single buffered']
    #allocation5 [shape = 's32[1]{0}', space=sflag, size = 0x4, scoped, tag = 'scoped memory for spatial_gate_forward.1']
    %9 = vsyncpa [#allocation5], 0
    // Predicated region
    $region2: #{spatial_gate_forward.1} parent=1 // pred_check
      _
    $region3: #{spatial_gate_forward.1} parent=1 // pred_check_branch
      %11 = sbr.rel (0) target = $region5
    $region4: #{spatial_gate_forward.1} parent=1 // pred_region
      _
    $region5: #{spatial_gate_forward.1} parent=1 // pred_fallthru
      _
    // Predicated region
    $region6: #{spatial_gate_forward.1} parent=1 // pred_check
      _
    $region7: #{spatial_gate_forward.1} parent=1 // pred_check_branch
      %13 = sbr.rel (0) target = $region9
    $region8: #{spatial_gate_forward.1} parent=1 // pred_region
      _
    $region9: #{spatial_gate_forward.1} parent=1 // pred_fallthru
      _
    %s14 = sld [smem:[#allocation3]]
    %v15 = vlaneseq
    %v16 = vshrl.u32 %v15, 7
    %v17 = vadd.s32 %v16, 8
    %v18 = vadd.s32 %v16, 4294967293
    %v19 = vadd.s32 %v17, 4294967293
    %vm20 = vcmp.ge.s32.totalorder %v18, 0
    %vm21 = vcmp.ge.s32.totalorder %v19, 0
    %vm22 = vcmp.lt.s32.totalorder %v18, 16
    %vm23 = vcmp.lt.s32.totalorder %v19, 16
    %vm24 = vmand %vm20, %vm22
    %vm25 = vmand %vm21, %vm23
    %v26 = vadd.s32 %v16, 4294967294
    %v27 = vadd.s32 %v17, 4294967294
    %vm28 = vcmp.ge.s32.totalorder %v26, 0
    %vm29 = vcmp.ge.s32.totalorder %v27, 0
    %vm30 = vcmp.lt.s32.totalorder %v26, 16
    %vm31 = vcmp.lt.s32.totalorder %v27, 16
    %vm32 = vmand %vm28, %vm30
    %vm33 = vmand %vm29, %vm31
    %v34 = vadd.s32 %v16, 4294967295
    %v35 = vadd.s32 %v17, 4294967295
    %vm36 = vcmp.ge.s32.totalorder %v34, 0
    %vm37 = vcmp.ge.s32.totalorder %v35, 0
    %vm38 = vcmp.lt.s32.totalorder %v34, 16
    %vm39 = vcmp.lt.s32.totalorder %v35, 16
    %vm40 = vmand %vm36, %vm38
    %vm41 = vmand %vm37, %vm39
    %v42 = vadd.s32 %v16, 1
    %v43 = vadd.s32 %v17, 1
    %vm44 = vcmp.ge.s32.totalorder %v42, 0
    %vm45 = vcmp.ge.s32.totalorder %v43, 0
    %vm46 = vcmp.lt.s32.totalorder %v42, 16
    %vm47 = vcmp.lt.s32.totalorder %v43, 16
    %vm48 = vmand %vm44, %vm46
    %vm49 = vmand %vm45, %vm47
    %v50 = vadd.s32 %v16, 2
    %v51 = vadd.s32 %v17, 2
    %vm52 = vcmp.ge.s32.totalorder %v50, 0
    %vm53 = vcmp.ge.s32.totalorder %v51, 0
    %vm54 = vcmp.lt.s32.totalorder %v50, 16
    %vm55 = vcmp.lt.s32.totalorder %v51, 16
    %vm56 = vmand %vm52, %vm54
    %vm57 = vmand %vm53, %vm55
    %v58 = vadd.s32 %v16, 3
    %v59 = vadd.s32 %v17, 3
    %vm60 = vcmp.ge.s32.totalorder %v58, 0
    %vm61 = vcmp.ge.s32.totalorder %v59, 0
    %vm62 = vcmp.lt.s32.totalorder %v58, 16
    %vm63 = vcmp.lt.s32.totalorder %v59, 16
    %vm64 = vmand %vm60, %vm62
    %vm65 = vmand %vm61, %vm63
    %v66 = vld [vmem:[%s2] sm:$0xff]
    %v67 = vld [vmem:[%s2 + $0x8] sm:$0xff]
    %s68 = scalar_lea.vmem %s2, 16
    %v69 = vld [vmem:[%s68] sm:$0xff]
    %v70 = vld [vmem:[%s68 + $0x8] sm:$0xff]
    %v71 = vmax.f32 %v66, %v69
    %v72 = vmax.f32 %v67, %v70
    %v73 = vadd.f32 %v66, %v69
    %v74 = vadd.f32 %v67, %v70
    %s75 = scalar_lea.vmem %s2, 32
    %v76 = vld [vmem:[%s75] sm:$0xff]
    %v77 = vld [vmem:[%s75 + $0x8] sm:$0xff]
    %v78 = vmax.f32 %v71, %v76
    %v79 = vmax.f32 %v72, %v77
    %v80 = vadd.f32 %v73, %v76
    %v81 = vadd.f32 %v74, %v77
    %s82 = scalar_lea.vmem %s2, 48
    %v83 = vld [vmem:[%s82] sm:$0xff]
    %v84 = vld [vmem:[%s82 + $0x8] sm:$0xff]
    %v85 = vmax.f32 %v78, %v83
    %v86 = vmax.f32 %v79, %v84
    %v87 = vadd.f32 %v80, %v83
    %v88 = vadd.f32 %v81, %v84
    %s89 = scalar_lea.vmem %s2, 64
    %v90 = vld [vmem:[%s89] sm:$0xff]
    %v91 = vld [vmem:[%s89 + $0x8] sm:$0xff]
    %v92 = vmax.f32 %v85, %v90
    %v93 = vmax.f32 %v86, %v91
    %v94 = vadd.f32 %v87, %v90
    %v95 = vadd.f32 %v88, %v91
    %s96 = scalar_lea.vmem %s2, 80
    %v97 = vld [vmem:[%s96] sm:$0xff]
    %v98 = vld [vmem:[%s96 + $0x8] sm:$0xff]
    %v99 = vmax.f32 %v92, %v97
    %v100 = vmax.f32 %v93, %v98
    %v101 = vadd.f32 %v94, %v97
    %v102 = vadd.f32 %v95, %v98
    %s103 = scalar_lea.vmem %s2, 96
    %v104 = vld [vmem:[%s103] sm:$0xff]
    %v105 = vld [vmem:[%s103 + $0x8] sm:$0xff]
    %v106 = vmax.f32 %v99, %v104
    %v107 = vmax.f32 %v100, %v105
    %v108 = vadd.f32 %v101, %v104
    %v109 = vadd.f32 %v102, %v105
    %s110 = scalar_lea.vmem %s2, 112
    %v111 = vld [vmem:[%s110] sm:$0xff]
    %v112 = vld [vmem:[%s110 + $0x8] sm:$0xff]
    %v113 = vmax.f32 %v106, %v111
    %v114 = vmax.f32 %v107, %v112
    %v115 = vadd.f32 %v108, %v111
    %v116 = vadd.f32 %v109, %v112
    %v117 = vmul.f32 %v115, 0.125
    %v118 = vmul.f32 %v116, 0.125
    %v119 = vrot.slane %v113, 5
    %v120 = vrot.slane %v114, 5
    %vm121 = vcmp.lt.s32.totalorder %v16, 3
    %v122 = vsel %vm121, %v119, %v120
    %v123 = vsel %vm121, %v120, %v119
    %v124 = vsel %vm24, %v123, 0.0
    %v125 = vsel %vm25, %v122, 0.0
    %v126 = vld [vmem:[%s1] sm:$0xff]
    %v127 = vld [vmem:[%s1 + $0x8] sm:$0xff]
    %v128 = vld [vmem:[%s1 + $0x10] sm:$0xff]
    %v129 = vld [vmem:[%s1 + $0x18] sm:$0xff]
    %v130 = vld [vmem:[%s1 + $0x20] sm:$0xff]
    %v131 = vld [vmem:[%s1 + $0x28] sm:$0xff]
    %v132 = vld [vmem:[%s1 + $0x30] sm:$0xff]
    %v133 = vld [vmem:[%s1 + $0x38] sm:$0xff]
    %v134 = vld [vmem:[%s1 + $0x40] sm:$0xff]
    %v135 = vld [vmem:[%s1 + $0x48] sm:$0xff]
    %v136 = vld [vmem:[%s1 + $0x50] sm:$0xff]
    %v137 = vld [vmem:[%s1 + $0x58] sm:$0xff]
    %v138 = vld [vmem:[%s1 + $0x60] sm:$0xff]
    %v139 = vld [vmem:[%s1 + $0x68] sm:$0xff]
    %v140 = vld [vmem:[%s1 + $0x70] sm:$0xff]
    %v141 = vld [vmem:[%s1 + $0x78] sm:$0xff]
    %v142 = vrot.slane %v113, 6
    %v143 = vrot.slane %v114, 6
    %vm144 = vcmp.lt.s32.totalorder %v16, 2
    %v145 = vsel %vm144, %v142, %v143
    %v146 = vsel %vm144, %v143, %v142
    %v147 = vsel %vm32, %v146, 0.0
    %v148 = vsel %vm33, %v145, 0.0
    %s149 = scalar_lea.vmem %s1, 128
    %v150 = vld [vmem:[%s149] sm:$0xff]
    %v151 = vld [vmem:[%s149 + $0x8] sm:$0xff]
    %v152 = vld [vmem:[%s149 + $0x10] sm:$0xff]
    %v153 = vld [vmem:[%s149 + $0x18] sm:$0xff]
    %v154 = vld [vmem:[%s149 + $0x20] sm:$0xff]
    %v155 = vld [vmem:[%s149 + $0x28] sm:$0xff]
    %v156 = vld [vmem:[%s149 + $0x30] sm:$0xff]
    %v157 = vld [vmem:[%s149 + $0x38] sm:$0xff]
    %v158 = vld [vmem:[%s149 + $0x40] sm:$0xff]
    %v159 = vld [vmem:[%s149 + $0x48] sm:$0xff]
    %v160 = vld [vmem:[%s149 + $0x50] sm:$0xff]
    %v161 = vld [vmem:[%s149 + $0x58] sm:$0xff]
    %v162 = vld [vmem:[%s149 + $0x60] sm:$0xff]
    %v163 = vld [vmem:[%s149 + $0x68] sm:$0xff]
    %v164 = vld [vmem:[%s149 + $0x70] sm:$0xff]
    %v165 = vld [vmem:[%s149 + $0x78] sm:$0xff]
    %166 = vmatprep.subr.mxu0 0.0
    %167 = vmatpush1.msra.mxu0 %v150
    %168 = vmatprep.subr.mxu0 0.0
    %169 = vmatpush1.msra.mxu0 %v151
    %170 = vmatprep.subr.mxu0 0.0
    %171 = vmatpush1.msra.mxu0 %v152
    %172 = vmatprep.subr.mxu0 0.0
    %173 = vmatpush1.msra.mxu0 %v153
    %174 = vmatprep.subr.mxu0 0.0
    %175 = vmatpush1.msra.mxu0 %v154
    %176 = vmatprep.subr.mxu0 0.0
    %177 = vmatpush1.msra.mxu0 %v155
    %178 = vmatprep.subr.mxu0 0.0
    %179 = vmatpush1.msra.mxu0 %v156
    %180 = vmatprep.subr.mxu0 0.0
    %181 = vmatpush1.msra.mxu0 %v157
    %182 = vmatprep.subr.mxu0 0.0
    %183 = vmatpush1.msra.mxu0 %v158
    %184 = vmatprep.subr.mxu0 0.0
    %185 = vmatpush1.msra.mxu0 %v159
    %186 = vmatprep.subr.mxu0 0.0
    %187 = vmatpush1.msra.mxu0 %v160
    %188 = vmatprep.subr.mxu0 0.0
    %189 = vmatpush1.msra.mxu0 %v161
    %190 = vmatprep.subr.mxu0 0.0
    %191 = vmatpush1.msra.mxu0 %v162
    %192 = vmatprep.subr.mxu0 0.0
    %193 = vmatpush1.msra.mxu0 %v163
    %194 = vmatprep.subr.mxu0 0.0
    %195 = vmatpush1.msra.mxu0 %v164
    %196 = vmatprep.subr.mxu0 0.0
    %197 = vmatpush1.msra.mxu0 %v165
    %198 = vmatprep.subr.mxu0 0.0
    %199 = vmatpush1.msra.mxu0 0.0
    %200 = vmatprep.subr.mxu0 0.0
    %201 = vmatpush1.msra.mxu0 0.0
    %202 = vmatprep.subr.mxu0 0.0
    %203 = vmatpush1.msra.mxu0 0.0
    %204 = vmatprep.subr.mxu0 0.0
    %205 = vmatpush1.msra.mxu0 0.0
    %206 = vmatprep.subr.mxu0 0.0
    %207 = vmatpush1.msra.mxu0 0.0
    %208 = vmatprep.subr.mxu0 0.0
    %209 = vmatpush1.msra.mxu0 0.0
    %210 = vmatprep.subr.mxu0 0.0
    %211 = vmatpush1.msra.mxu0 0.0
    %212 = vmatprep.subr.mxu0 0.0
    %213 = vmatpush1.msra.mxu0 0.0
    %214 = vmatprep.subr.mxu0 0.0
    %215 = vmatpush1.msra.mxu0 0.0
    %216 = vmatprep.subr.mxu0 0.0
    %217 = vmatpush1.msra.mxu0 0.0
    %218 = vmatprep.subr.mxu0 0.0
    %219 = vmatpush1.msra.mxu0 0.0
    %220 = vmatprep.subr.mxu0 0.0
    %221 = vmatpush1.msra.mxu0 0.0
    %222 = vmatprep.subr.mxu0 0.0
    %223 = vmatpush1.msra.mxu0 0.0
    %224 = vmatprep.subr.mxu0 0.0
    %225 = vmatpush1.msra.mxu0 0.0
    %226 = vmatprep.subr.mxu0 0.0
    %227 = vmatpush1.msra.mxu0 0.0
    %228 = vmatprep.subr.mxu0 0.0
    %229 = vmatpush1.msra.mxu0 0.0
    %230 = vmatprep.mubr.f32.mxu0 0.0
    %231 = vmatmul.mubr.f32.gmra.mrb[0].mxu0 %v147
    %v232 = vpop.f32.mrb[0].mxu0
    %v233 = vadd.f32 0.0, %v232
    %v234 = vpop.f32.mrb[0].mxu0
    %235 = vmatprep.mubr.f32.mxu0 0.0
    %236 = vmatmul.mubr.f32.gmra.mrb[0].mxu0 %v148
    %v237 = vpop.f32.mrb[0].mxu0
    %v238 = vadd.f32 0.0, %v237
    %v239 = vpop.f32.mrb[0].mxu0
    %240 = vdwg.mxu0
    %241 = vmatprep.subr.mxu0 0.0
    %242 = vmatpush1.msra.mxu0 %v126
    %243 = vmatprep.subr.mxu0 0.0
    %244 = vmatpush1.msra.mxu0 %v127
    %245 = vmatprep.subr.mxu0 0.0
    %246 = vmatpush1.msra.mxu0 %v128
    %247 = vmatprep.subr.mxu0 0.0
    %248 = vmatpush1.msra.mxu0 %v129
    %249 = vmatprep.subr.mxu0 0.0
    %250 = vmatpush1.msra.mxu0 %v130
    %251 = vmatprep.subr.mxu0 0.0
    %252 = vmatpush1.msra.mxu0 %v131
    %253 = vmatprep.subr.mxu0 0.0
    %254 = vmatpush1.msra.mxu0 %v132
    %255 = vmatprep.subr.mxu0 0.0
    %256 = vmatpush1.msra.mxu0 %v133
    %257 = vmatprep.subr.mxu0 0.0
    %258 = vmatpush1.msra.mxu0 %v134
    %259 = vmatprep.subr.mxu0 0.0
    %260 = vmatpush1.msra.mxu0 %v135
    %261 = vmatprep.subr.mxu0 0.0
    %262 = vmatpush1.msra.mxu0 %v136
    %263 = vmatprep.subr.mxu0 0.0
    %264 = vmatpush1.msra.mxu0 %v137
    %265 = vmatprep.subr.mxu0 0.0
    %266 = vmatpush1.msra.mxu0 %v138
    %267 = vmatprep.subr.mxu0 0.0
    %268 = vmatpush1.msra.mxu0 %v139
    %269 = vmatprep.subr.mxu0 0.0
    %270 = vmatpush1.msra.mxu0 %v140
    %271 = vmatprep.subr.mxu0 0.0
    %272 = vmatpush1.msra.mxu0 %v141
    %273 = vmatprep.subr.mxu0 0.0
    %274 = vmatpush1.msra.mxu0 0.0
    %275 = vmatprep.subr.mxu0 0.0
    %276 = vmatpush1.msra.mxu0 0.0
    %277 = vmatprep.subr.mxu0 0.0
    %278 = vmatpush1.msra.mxu0 0.0
    %279 = vmatprep.subr.mxu0 0.0
    %280 = vmatpush1.msra.mxu0 0.0
    %281 = vmatprep.subr.mxu0 0.0
    %282 = vmatpush1.msra.mxu0 0.0
    %283 = vmatprep.subr.mxu0 0.0
    %284 = vmatpush1.msra.mxu0 0.0
    %285 = vmatprep.subr.mxu0 0.0
    %286 = vmatpush1.msra.mxu0 0.0
    %287 = vmatprep.subr.mxu0 0.0
    %288 = vmatpush1.msra.mxu0 0.0
    %289 = vmatprep.subr.mxu0 0.0
    %290 = vmatpush1.msra.mxu0 0.0
    %291 = vmatprep.subr.mxu0 0.0
    %292 = vmatpush1.msra.mxu0 0.0
    %293 = vmatprep.subr.mxu0 0.0
    %294 = vmatpush1.msra.mxu0 0.0
    %295 = vmatprep.subr.mxu0 0.0
    %296 = vmatpush1.msra.mxu0 0.0
    %297 = vmatprep.subr.mxu0 0.0
    %298 = vmatpush1.msra.mxu0 0.0
    %299 = vmatprep.subr.mxu0 0.0
    %300 = vmatpush1.msra.mxu0 0.0
    %301 = vmatprep.subr.mxu0 0.0
    %302 = vmatpush1.msra.mxu0 0.0
    %303 = vmatprep.subr.mxu0 0.0
    %304 = vmatpush1.msra.mxu0 0.0
    %305 = vmatprep.mubr.f32.mxu0 0.0
    %306 = vmatmul.mubr.f32.gmra.mrb[0].mxu0 %v124
    %v307 = vpop.f32.mrb[0].mxu0
    %v308 = vadd.f32 %v233, %v307
    %v309 = vpop.f32.mrb[0].mxu0
    %310 = vmatprep.mubr.f32.mxu0 0.0
    %311 = vmatmul.mubr.f32.gmra.mrb[0].mxu0 %v125
    %v312 = vpop.f32.mrb[0].mxu0
    %v313 = vadd.f32 %v238, %v312
    %v314 = vpop.f32.mrb[0].mxu0
    %315 = vdwg.mxu0
    %v316 = vrot.slane %v113, 7
    %v317 = vrot.slane %v114, 7
    %vm318 = vcmp.lt.s32.totalorder %v16, 1
    %v319 = vsel %vm318, %v316, %v317
    %v320 = vsel %vm318, %v317, %v316
    %v321 = vsel %vm40, %v320, 0.0
    %v322 = vsel %vm41, %v319, 0.0
    %s323 = scalar_lea.vmem %s1, 256
    %v324 = vld [vmem:[%s323] sm:$0xff]
    %v325 = vld [vmem:[%s323 + $0x8] sm:$0xff]
    %v326 = vld [vmem:[%s323 + $0x10] sm:$0xff]
    %v327 = vld [vmem:[%s323 + $0x18] sm:$0xff]
    %v328 = vld [vmem:[%s323 + $0x20] sm:$0xff]
    %v329 = vld [vmem:[%s323 + $0x28] sm:$0xff]
    %v330 = vld [vmem:[%s323 + $0x30] sm:$0xff]
    %v331 = vld [vmem:[%s323 + $0x38] sm:$0xff]
    %v332 = vld [vmem:[%s323 + $0x40] sm:$0xff]
    %v333 = vld [vmem:[%s323 + $0x48] sm:$0xff]
    %v334 = vld [vmem:[%s323 + $0x50] sm:$0xff]
    %v335 = vld [vmem:[%s323 + $0x58] sm:$0xff]
    %v336 = vld [vmem:[%s323 + $0x60] sm:$0xff]
    %v337 = vld [vmem:[%s323 + $0x68] sm:$0xff]
    %v338 = vld [vmem:[%s323 + $0x70] sm:$0xff]
    %v339 = vld [vmem:[%s323 + $0x78] sm:$0xff]
    %340 = vmatprep.subr.mxu0 0.0
    %341 = vmatpush1.msra.mxu0 %v324
    %342 = vmatprep.subr.mxu0 0.0
    %343 = vmatpush1.msra.mxu0 %v325
    %344 = vmatprep.subr.mxu0 0.0
    %345 = vmatpush1.msra.mxu0 %v326
    %346 = vmatprep.subr.mxu0 0.0
    %347 = vmatpush1.msra.mxu0 %v327
    %348 = vmatprep.subr.mxu0 0.0
    %349 = vmatpush1.msra.mxu0 %v328
    %350 = vmatprep.subr.mxu0 0.0
    %351 = vmatpush1.msra.mxu0 %v329
    %352 = vmatprep.subr.mxu0 0.0
    %353 = vmatpush1.msra.mxu0 %v330
    %354 = vmatprep.subr.mxu0 0.0
    %355 = vmatpush1.msra.mxu0 %v331
    %356 = vmatprep.subr.mxu0 0.0
    %357 = vmatpush1.msra.mxu0 %v332
    %358 = vmatprep.subr.mxu0 0.0
    %359 = vmatpush1.msra.mxu0 %v333
    %360 = vmatprep.subr.mxu0 0.0
    %361 = vmatpush1.msra.mxu0 %v334
    %362 = vmatprep.subr.mxu0 0.0
    %363 = vmatpush1.msra.mxu0 %v335
    %364 = vmatprep.subr.mxu0 0.0
    %365 = vmatpush1.msra.mxu0 %v336
    %366 = vmatprep.subr.mxu0 0.0
    %367 = vmatpush1.msra.mxu0 %v337
    %368 = vmatprep.subr.mxu0 0.0
    %369 = vmatpush1.msra.mxu0 %v338
    %370 = vmatprep.subr.mxu0 0.0
    %371 = vmatpush1.msra.mxu0 %v339
    %372 = vmatprep.subr.mxu0 0.0
    %373 = vmatpush1.msra.mxu0 0.0
    %374 = vmatprep.subr.mxu0 0.0
    %375 = vmatpush1.msra.mxu0 0.0
    %376 = vmatprep.subr.mxu0 0.0
    %377 = vmatpush1.msra.mxu0 0.0
    %378 = vmatprep.subr.mxu0 0.0
    %379 = vmatpush1.msra.mxu0 0.0
    %380 = vmatprep.subr.mxu0 0.0
    %381 = vmatpush1.msra.mxu0 0.0
    %382 = vmatprep.subr.mxu0 0.0
    %383 = vmatpush1.msra.mxu0 0.0
    %384 = vmatprep.subr.mxu0 0.0
    %385 = vmatpush1.msra.mxu0 0.0
    %386 = vmatprep.subr.mxu0 0.0
    %387 = vmatpush1.msra.mxu0 0.0
    %388 = vmatprep.subr.mxu0 0.0
    %389 = vmatpush1.msra.mxu0 0.0
    %390 = vmatprep.subr.mxu0 0.0
    %391 = vmatpush1.msra.mxu0 0.0
    %392 = vmatprep.subr.mxu0 0.0
    %393 = vmatpush1.msra.mxu0 0.0
    %394 = vmatprep.subr.mxu0 0.0
    %395 = vmatpush1.msra.mxu0 0.0
    %396 = vmatprep.subr.mxu0 0.0
    %397 = vmatpush1.msra.mxu0 0.0
    %398 = vmatprep.subr.mxu0 0.0
    %399 = vmatpush1.msra.mxu0 0.0
    %400 = vmatprep.subr.mxu0 0.0
    %401 = vmatpush1.msra.mxu0 0.0
    %402 = vmatprep.subr.mxu0 0.0
    %403 = vmatpush1.msra.mxu0 0.0
    %404 = vmatprep.mubr.f32.mxu0 0.0
    %405 = vmatmul.mubr.f32.gmra.mrb[0].mxu0 %v321
    %v406 = vpop.f32.mrb[0].mxu0
    %v407 = vadd.f32 0.0, %v406
    %v408 = vpop.f32.mrb[0].mxu0
    %409 = vmatprep.mubr.f32.mxu0 0.0
    %410 = vmatmul.mubr.f32.gmra.mrb[0].mxu0 %v322
    %v411 = vpop.f32.mrb[0].mxu0
    %v412 = vadd.f32 0.0, %v411
    %v413 = vpop.f32.mrb[0].mxu0
    %414 = vdwg.mxu0
    %v415 = vadd.f32 %v308, %v407
    %v416 = vadd.f32 %v313, %v412
    %s417 = scalar_lea.vmem %s1, 384
    %v418 = vld [vmem:[%s417] sm:$0xff]
    %v419 = vld [vmem:[%s417 + $0x8] sm:$0xff]
    %v420 = vld [vmem:[%s417 + $0x10] sm:$0xff]
    %v421 = vld [vmem:[%s417 + $0x18] sm:$0xff]
    %v422 = vld [vmem:[%s417 + $0x20] sm:$0xff]
    %v423 = vld [vmem:[%s417 + $0x28] sm:$0xff]
    %v424 = vld [vmem:[%s417 + $0x30] sm:$0xff]
    %v425 = vld [vmem:[%s417 + $0x38] sm:$0xff]
    %v426 = vld [vmem:[%s417 + $0x40] sm:$0xff]
    %v427 = vld [vmem:[%s417 + $0x48] sm:$0xff]
    %v428 = vld [vmem:[%s417 + $0x50] sm:$0xff]
    %v429 = vld [vmem:[%s417 + $0x58] sm:$0xff]
    %v430 = vld [vmem:[%s417 + $0x60] sm:$0xff]
    %v431 = vld [vmem:[%s417 + $0x68] sm:$0xff]
    %v432 = vld [vmem:[%s417 + $0x70] sm:$0xff]
    %v433 = vld [vmem:[%s417 + $0x78] sm:$0xff]
    %434 = vmatprep.subr.mxu0 0.0
    %435 = vmatpush1.msra.mxu0 %v418
    %436 = vmatprep.subr.mxu0 0.0
    %437 = vmatpush1.msra.mxu0 %v419
    %438 = vmatprep.subr.mxu0 0.0
    %439 = vmatpush1.msra.mxu0 %v420
    %440 = vmatprep.subr.mxu0 0.0
    %441 = vmatpush1.msra.mxu0 %v421
    %442 = vmatprep.subr.mxu0 0.0
    %443 = vmatpush1.msra.mxu0 %v422
    %444 = vmatprep.subr.mxu0 0.0
    %445 = vmatpush1.msra.mxu0 %v423
    %446 = vmatprep.subr.mxu0 0.0
    %447 = vmatpush1.msra.mxu0 %v424
    %448 = vmatprep.subr.mxu0 0.0
    %449 = vmatpush1.msra.mxu0 %v425
    %450 = vmatprep.subr.mxu0 0.0
    %451 = vmatpush1.msra.mxu0 %v426
    %452 = vmatprep.subr.mxu0 0.0
    %453 = vmatpush1.msra.mxu0 %v427
    %454 = vmatprep.subr.mxu0 0.0
    %455 = vmatpush1.msra.mxu0 %v428
    %456 = vmatprep.subr.mxu0 0.0
    %457 = vmatpush1.msra.mxu0 %v429
    %458 = vmatprep.subr.mxu0 0.0
    %459 = vmatpush1.msra.mxu0 %v430
    %460 = vmatprep.subr.mxu0 0.0
    %461 = vmatpush1.msra.mxu0 %v431
    %462 = vmatprep.subr.mxu0 0.0
    %463 = vmatpush1.msra.mxu0 %v432
    %464 = vmatprep.subr.mxu0 0.0
    %465 = vmatpush1.msra.mxu0 %v433
    %466 = vmatprep.subr.mxu0 0.0
    %467 = vmatpush1.msra.mxu0 0.0
    %468 = vmatprep.subr.mxu0 0.0
    %469 = vmatpush1.msra.mxu0 0.0
    %470 = vmatprep.subr.mxu0 0.0
    %471 = vmatpush1.msra.mxu0 0.0
    %472 = vmatprep.subr.mxu0 0.0
    %473 = vmatpush1.msra.mxu0 0.0
    %474 = vmatprep.subr.mxu0 0.0
    %475 = vmatpush1.msra.mxu0 0.0
    %476 = vmatprep.subr.mxu0 0.0
    %477 = vmatpush1.msra.mxu0 0.0
    %478 = vmatprep.subr.mxu0 0.0
    %479 = vmatpush1.msra.mxu0 0.0
    %480 = vmatprep.subr.mxu0 0.0
    %481 = vmatpush1.msra.mxu0 0.0
    %482 = vmatprep.subr.mxu0 0.0
    %483 = vmatpush1.msra.mxu0 0.0
    %484 = vmatprep.subr.mxu0 0.0
    %485 = vmatpush1.msra.mxu0 0.0
    %486 = vmatprep.subr.mxu0 0.0
    %487 = vmatpush1.msra.mxu0 0.0
    %488 = vmatprep.subr.mxu0 0.0
    %489 = vmatpush1.msra.mxu0 0.0
    %490 = vmatprep.subr.mxu0 0.0
    %491 = vmatpush1.msra.mxu0 0.0
    %492 = vmatprep.subr.mxu0 0.0
    %493 = vmatpush1.msra.mxu0 0.0
    %494 = vmatprep.subr.mxu0 0.0
    %495 = vmatpush1.msra.mxu0 0.0
    %496 = vmatprep.subr.mxu0 0.0
    %497 = vmatpush1.msra.mxu0 0.0
    %498 = vmatprep.mubr.f32.mxu0 0.0
    %499 = vmatmul.mubr.f32.gmra.mrb[0].mxu0 %v113
    %v500 = vpop.f32.mrb[0].mxu0
    %v501 = vadd.f32 0.0, %v500
    %v502 = vpop.f32.mrb[0].mxu0
    %503 = vmatprep.mubr.f32.mxu0 0.0
    %504 = vmatmul.mubr.f32.gmra.mrb[0].mxu0 %v114
    %v505 = vpop.f32.mrb[0].mxu0
    %v506 = vadd.f32 0.0, %v505
    %v507 = vpop.f32.mrb[0].mxu0
    %508 = vdwg.mxu0
    %v509 = vadd.f32 %v415, %v501
    %v510 = vadd.f32 %v416, %v506
    %v511 = vrot.slane %v113, 1
    %v512 = vrot.slane %v114, 1
    %vm513 = vcmp.lt.s32.totalorder %v16, 7
    %v514 = vsel %vm513, %v511, %v512
    %v515 = vsel %vm513, %v512, %v511
    %v516 = vsel %vm48, %v514, 0.0
    %v517 = vsel %vm49, %v515, 0.0
    %s518 = scalar_lea.vmem %s1, 512
    %v519 = vld [vmem:[%s518] sm:$0xff]
    %v520 = vld [vmem:[%s518 + $0x8] sm:$0xff]
    %v521 = vld [vmem:[%s518 + $0x10] sm:$0xff]
    %v522 = vld [vmem:[%s518 + $0x18] sm:$0xff]
    %v523 = vld [vmem:[%s518 + $0x20] sm:$0xff]
    %v524 = vld [vmem:[%s518 + $0x28] sm:$0xff]
    %v525 = vld [vmem:[%s518 + $0x30] sm:$0xff]
    %v526 = vld [vmem:[%s518 + $0x38] sm:$0xff]
    %v527 = vld [vmem:[%s518 + $0x40] sm:$0xff]
    %v528 = vld [vmem:[%s518 + $0x48] sm:$0xff]
    %v529 = vld [vmem:[%s518 + $0x50] sm:$0xff]
    %v530 = vld [vmem:[%s518 + $0x58] sm:$0xff]
    %v531 = vld [vmem:[%s518 + $0x60] sm:$0xff]
    %v532 = vld [vmem:[%s518 + $0x68] sm:$0xff]
    %v533 = vld [vmem:[%s518 + $0x70] sm:$0xff]
    %v534 = vld [vmem:[%s518 + $0x78] sm:$0xff]
    %535 = vmatprep.subr.mxu0 0.0
    %536 = vmatpush1.msra.mxu0 %v519
    %537 = vmatprep.subr.mxu0 0.0
    %538 = vmatpush1.msra.mxu0 %v520
    %539 = vmatprep.subr.mxu0 0.0
    %540 = vmatpush1.msra.mxu0 %v521
    %541 = vmatprep.subr.mxu0 0.0
    %542 = vmatpush1.msra.mxu0 %v522
    %543 = vmatprep.subr.mxu0 0.0
    %544 = vmatpush1.msra.mxu0 %v523
    %545 = vmatprep.subr.mxu0 0.0
    %546 = vmatpush1.msra.mxu0 %v524
    %547 = vmatprep.subr.mxu0 0.0
    %548 = vmatpush1.msra.mxu0 %v525
    %549 = vmatprep.subr.mxu0 0.0
    %550 = vmatpush1.msra.mxu0 %v526
    %551 = vmatprep.subr.mxu0 0.0
    %552 = vmatpush1.msra.mxu0 %v527
    %553 = vmatprep.subr.mxu0 0.0
    %554 = vmatpush1.msra.mxu0 %v528
    %555 = vmatprep.subr.mxu0 0.0
    %556 = vmatpush1.msra.mxu0 %v529
    %557 = vmatprep.subr.mxu0 0.0
    %558 = vmatpush1.msra.mxu0 %v530
    %559 = vmatprep.subr.mxu0 0.0
    %560 = vmatpush1.msra.mxu0 %v531
    %561 = vmatprep.subr.mxu0 0.0
    %562 = vmatpush1.msra.mxu0 %v532
    %563 = vmatprep.subr.mxu0 0.0
    %564 = vmatpush1.msra.mxu0 %v533
    %565 = vmatprep.subr.mxu0 0.0
    %566 = vmatpush1.msra.mxu0 %v534
    %567 = vmatprep.subr.mxu0 0.0
    %568 = vmatpush1.msra.mxu0 0.0
    %569 = vmatprep.subr.mxu0 0.0
    %570 = vmatpush1.msra.mxu0 0.0
    %571 = vmatprep.subr.mxu0 0.0
    %572 = vmatpush1.msra.mxu0 0.0
    %573 = vmatprep.subr.mxu0 0.0
    %574 = vmatpush1.msra.mxu0 0.0
    %575 = vmatprep.subr.mxu0 0.0
    %576 = vmatpush1.msra.mxu0 0.0
    %577 = vmatprep.subr.mxu0 0.0
    %578 = vmatpush1.msra.mxu0 0.0
    %579 = vmatprep.subr.mxu0 0.0
    %580 = vmatpush1.msra.mxu0 0.0
    %581 = vmatprep.subr.mxu0 0.0
    %582 = vmatpush1.msra.mxu0 0.0
    %583 = vmatprep.subr.mxu0 0.0
    %584 = vmatpush1.msra.mxu0 0.0
    %585 = vmatprep.subr.mxu0 0.0
    %586 = vmatpush1.msra.mxu0 0.0
    %587 = vmatprep.subr.mxu0 0.0
    %588 = vmatpush1.msra.mxu0 0.0
    %589 = vmatprep.subr.mxu0 0.0
    %590 = vmatpush1.msra.mxu0 0.0
    %591 = vmatprep.subr.mxu0 0.0
    %592 = vmatpush1.msra.mxu0 0.0
    %593 = vmatprep.subr.mxu0 0.0
    %594 = vmatpush1.msra.mxu0 0.0
    %595 = vmatprep.subr.mxu0 0.0
    %596 = vmatpush1.msra.mxu0 0.0
    %597 = vmatprep.subr.mxu0 0.0
    %598 = vmatpush1.msra.mxu0 0.0
    %599 = vmatprep.mubr.f32.mxu0 0.0
    %600 = vmatmul.mubr.f32.gmra.mrb[0].mxu0 %v516
    %v601 = vpop.f32.mrb[0].mxu0
    %v602 = vadd.f32 0.0, %v601
    %v603 = vpop.f32.mrb[0].mxu0
    %604 = vmatprep.mubr.f32.mxu0 0.0
    %605 = vmatmul.mubr.f32.gmra.mrb[0].mxu0 %v517
    %v606 = vpop.f32.mrb[0].mxu0
    %v607 = vadd.f32 0.0, %v606
    %v608 = vpop.f32.mrb[0].mxu0
    %609 = vdwg.mxu0
    %v610 = vadd.f32 %v509, %v602
    %v611 = vadd.f32 %v510, %v607
    %v612 = vrot.slane %v113, 2
    %v613 = vrot.slane %v114, 2
    %vm614 = vcmp.lt.s32.totalorder %v16, 6
    %v615 = vsel %vm614, %v612, %v613
    %v616 = vsel %vm614, %v613, %v612
    %v617 = vsel %vm56, %v615, 0.0
    %v618 = vsel %vm57, %v616, 0.0
    %s619 = scalar_lea.vmem %s1, 640
    %v620 = vld [vmem:[%s619] sm:$0xff]
    %v621 = vld [vmem:[%s619 + $0x8] sm:$0xff]
    %v622 = vld [vmem:[%s619 + $0x10] sm:$0xff]
    %v623 = vld [vmem:[%s619 + $0x18] sm:$0xff]
    %v624 = vld [vmem:[%s619 + $0x20] sm:$0xff]
    %v625 = vld [vmem:[%s619 + $0x28] sm:$0xff]
    %v626 = vld [vmem:[%s619 + $0x30] sm:$0xff]
    %v627 = vld [vmem:[%s619 + $0x38] sm:$0xff]
    %v628 = vld [vmem:[%s619 + $0x40] sm:$0xff]
    %v629 = vld [vmem:[%s619 + $0x48] sm:$0xff]
    %v630 = vld [vmem:[%s619 + $0x50] sm:$0xff]
    %v631 = vld [vmem:[%s619 + $0x58] sm:$0xff]
    %v632 = vld [vmem:[%s619 + $0x60] sm:$0xff]
    %v633 = vld [vmem:[%s619 + $0x68] sm:$0xff]
    %v634 = vld [vmem:[%s619 + $0x70] sm:$0xff]
    %v635 = vld [vmem:[%s619 + $0x78] sm:$0xff]
    %636 = vmatprep.subr.mxu0 0.0
    %637 = vmatpush1.msra.mxu0 %v620
    %638 = vmatprep.subr.mxu0 0.0
    %639 = vmatpush1.msra.mxu0 %v621
    %640 = vmatprep.subr.mxu0 0.0
    %641 = vmatpush1.msra.mxu0 %v622
    %642 = vmatprep.subr.mxu0 0.0
    %643 = vmatpush1.msra.mxu0 %v623
    %644 = vmatprep.subr.mxu0 0.0
    %645 = vmatpush1.msra.mxu0 %v624
    %646 = vmatprep.subr.mxu0 0.0
    %647 = vmatpush1.msra.mxu0 %v625
    %648 = vmatprep.subr.mxu0 0.0
    %649 = vmatpush1.msra.mxu0 %v626
    %650 = vmatprep.subr.mxu0 0.0
    %651 = vmatpush1.msra.mxu0 %v627
    %652 = vmatprep.subr.mxu0 0.0
    %653 = vmatpush1.msra.mxu0 %v628
    %654 = vmatprep.subr.mxu0 0.0
    %655 = vmatpush1.msra.mxu0 %v629
    %656 = vmatprep.subr.mxu0 0.0
    %657 = vmatpush1.msra.mxu0 %v630
    %658 = vmatprep.subr.mxu0 0.0
    %659 = vmatpush1.msra.mxu0 %v631
    %660 = vmatprep.subr.mxu0 0.0
    %661 = vmatpush1.msra.mxu0 %v632
    %662 = vmatprep.subr.mxu0 0.0
    %663 = vmatpush1.msra.mxu0 %v633
    %664 = vmatprep.subr.mxu0 0.0
    %665 = vmatpush1.msra.mxu0 %v634
    %666 = vmatprep.subr.mxu0 0.0
    %667 = vmatpush1.msra.mxu0 %v635
    %668 = vmatprep.subr.mxu0 0.0
    %669 = vmatpush1.msra.mxu0 0.0
    %670 = vmatprep.subr.mxu0 0.0
    %671 = vmatpush1.msra.mxu0 0.0
    %672 = vmatprep.subr.mxu0 0.0
    %673 = vmatpush1.msra.mxu0 0.0
    %674 = vmatprep.subr.mxu0 0.0
    %675 = vmatpush1.msra.mxu0 0.0
    %676 = vmatprep.subr.mxu0 0.0
    %677 = vmatpush1.msra.mxu0 0.0
    %678 = vmatprep.subr.mxu0 0.0
    %679 = vmatpush1.msra.mxu0 0.0
    %680 = vmatprep.subr.mxu0 0.0
    %681 = vmatpush1.msra.mxu0 0.0
    %682 = vmatprep.subr.mxu0 0.0
    %683 = vmatpush1.msra.mxu0 0.0
    %684 = vmatprep.subr.mxu0 0.0
    %685 = vmatpush1.msra.mxu0 0.0
    %686 = vmatprep.subr.mxu0 0.0
    %687 = vmatpush1.msra.mxu0 0.0
    %688 = vmatprep.subr.mxu0 0.0
    %689 = vmatpush1.msra.mxu0 0.0
    %690 = vmatprep.subr.mxu0 0.0
    %691 = vmatpush1.msra.mxu0 0.0
    %692 = vmatprep.subr.mxu0 0.0
    %693 = vmatpush1.msra.mxu0 0.0
    %694 = vmatprep.subr.mxu0 0.0
    %695 = vmatpush1.msra.mxu0 0.0
    %696 = vmatprep.subr.mxu0 0.0
    %697 = vmatpush1.msra.mxu0 0.0
    %698 = vmatprep.subr.mxu0 0.0
    %699 = vmatpush1.msra.mxu0 0.0
    %700 = vmatprep.mubr.f32.mxu0 0.0
    %701 = vmatmul.mubr.f32.gmra.mrb[0].mxu0 %v617
    %v702 = vpop.f32.mrb[0].mxu0
    %v703 = vadd.f32 0.0, %v702
    %v704 = vpop.f32.mrb[0].mxu0
    %705 = vmatprep.mubr.f32.mxu0 0.0
    %706 = vmatmul.mubr.f32.gmra.mrb[0].mxu0 %v618
    %v707 = vpop.f32.mrb[0].mxu0
    %v708 = vadd.f32 0.0, %v707
    %v709 = vpop.f32.mrb[0].mxu0
    %710 = vdwg.mxu0
    %v711 = vadd.f32 %v610, %v703
    %v712 = vadd.f32 %v611, %v708
    %v713 = vrot.slane %v113, 3
    %v714 = vrot.slane %v114, 3
    %vm715 = vcmp.lt.s32.totalorder %v16, 5
    %v716 = vsel %vm715, %v713, %v714
    %v717 = vsel %vm715, %v714, %v713
    %v718 = vsel %vm64, %v716, 0.0
    %v719 = vsel %vm65, %v717, 0.0
    %s720 = scalar_lea.vmem %s1, 768
    %v721 = vld [vmem:[%s720] sm:$0xff]
    %v722 = vld [vmem:[%s720 + $0x8] sm:$0xff]
    %v723 = vld [vmem:[%s720 + $0x10] sm:$0xff]
    %v724 = vld [vmem:[%s720 + $0x18] sm:$0xff]
    %v725 = vld [vmem:[%s720 + $0x20] sm:$0xff]
    %v726 = vld [vmem:[%s720 + $0x28] sm:$0xff]
    %v727 = vld [vmem:[%s720 + $0x30] sm:$0xff]
    %v728 = vld [vmem:[%s720 + $0x38] sm:$0xff]
    %v729 = vld [vmem:[%s720 + $0x40] sm:$0xff]
    %v730 = vld [vmem:[%s720 + $0x48] sm:$0xff]
    %v731 = vld [vmem:[%s720 + $0x50] sm:$0xff]
    %v732 = vld [vmem:[%s720 + $0x58] sm:$0xff]
    %v733 = vld [vmem:[%s720 + $0x60] sm:$0xff]
    %v734 = vld [vmem:[%s720 + $0x68] sm:$0xff]
    %v735 = vld [vmem:[%s720 + $0x70] sm:$0xff]
    %v736 = vld [vmem:[%s720 + $0x78] sm:$0xff]
    %737 = vmatprep.subr.mxu0 0.0
    %738 = vmatpush1.msra.mxu0 %v721
    %739 = vmatprep.subr.mxu0 0.0
    %740 = vmatpush1.msra.mxu0 %v722
    %741 = vmatprep.subr.mxu0 0.0
    %742 = vmatpush1.msra.mxu0 %v723
    %743 = vmatprep.subr.mxu0 0.0
    %744 = vmatpush1.msra.mxu0 %v724
    %745 = vmatprep.subr.mxu0 0.0
    %746 = vmatpush1.msra.mxu0 %v725
    %747 = vmatprep.subr.mxu0 0.0
    %748 = vmatpush1.msra.mxu0 %v726
    %749 = vmatprep.subr.mxu0 0.0
    %750 = vmatpush1.msra.mxu0 %v727
    %751 = vmatprep.subr.mxu0 0.0
    %752 = vmatpush1.msra.mxu0 %v728
    %753 = vmatprep.subr.mxu0 0.0
    %754 = vmatpush1.msra.mxu0 %v729
    %755 = vmatprep.subr.mxu0 0.0
    %756 = vmatpush1.msra.mxu0 %v730
    %757 = vmatprep.subr.mxu0 0.0
    %758 = vmatpush1.msra.mxu0 %v731
    %759 = vmatprep.subr.mxu0 0.0
    %760 = vmatpush1.msra.mxu0 %v732
    %761 = vmatprep.subr.mxu0 0.0
    %762 = vmatpush1.msra.mxu0 %v733
    %763 = vmatprep.subr.mxu0 0.0
    %764 = vmatpush1.msra.mxu0 %v734
    %765 = vmatprep.subr.mxu0 0.0
    %766 = vmatpush1.msra.mxu0 %v735
    %767 = vmatprep.subr.mxu0 0.0
    %768 = vmatpush1.msra.mxu0 %v736
    %769 = vmatprep.subr.mxu0 0.0
    %770 = vmatpush1.msra.mxu0 0.0
    %771 = vmatprep.subr.mxu0 0.0
    %772 = vmatpush1.msra.mxu0 0.0
    %773 = vmatprep.subr.mxu0 0.0
    %774 = vmatpush1.msra.mxu0 0.0
    %775 = vmatprep.subr.mxu0 0.0
    %776 = vmatpush1.msra.mxu0 0.0
    %777 = vmatprep.subr.mxu0 0.0
    %778 = vmatpush1.msra.mxu0 0.0
    %779 = vmatprep.subr.mxu0 0.0
    %780 = vmatpush1.msra.mxu0 0.0
    %781 = vmatprep.subr.mxu0 0.0
    %782 = vmatpush1.msra.mxu0 0.0
    %783 = vmatprep.subr.mxu0 0.0
    %784 = vmatpush1.msra.mxu0 0.0
    %785 = vmatprep.subr.mxu0 0.0
    %786 = vmatpush1.msra.mxu0 0.0
    %787 = vmatprep.subr.mxu0 0.0
    %788 = vmatpush1.msra.mxu0 0.0
    %789 = vmatprep.subr.mxu0 0.0
    %790 = vmatpush1.msra.mxu0 0.0
    %791 = vmatprep.subr.mxu0 0.0
    %792 = vmatpush1.msra.mxu0 0.0
    %793 = vmatprep.subr.mxu0 0.0
    %794 = vmatpush1.msra.mxu0 0.0
    %795 = vmatprep.subr.mxu0 0.0
    %796 = vmatpush1.msra.mxu0 0.0
    %797 = vmatprep.subr.mxu0 0.0
    %798 = vmatpush1.msra.mxu0 0.0
    %799 = vmatprep.subr.mxu0 0.0
    %800 = vmatpush1.msra.mxu0 0.0
    %801 = vmatprep.mubr.f32.mxu0 0.0
    %802 = vmatmul.mubr.f32.gmra.mrb[0].mxu0 %v718
    %v803 = vpop.f32.mrb[0].mxu0
    %v804 = vadd.f32 0.0, %v803
    %v805 = vpop.f32.mrb[0].mxu0
    %806 = vmatprep.mubr.f32.mxu0 0.0
    %807 = vmatmul.mubr.f32.gmra.mrb[0].mxu0 %v719
    %v808 = vpop.f32.mrb[0].mxu0
    %v809 = vadd.f32 0.0, %v808
    %v810 = vpop.f32.mrb[0].mxu0
    %811 = vdwg.mxu0
    %v812 = vadd.f32 %v711, %v804
    %v813 = vadd.f32 %v712, %v809
    %v814 = vrot.slane %v117, 5
    %v815 = vrot.slane %v118, 5
    %v816 = vsel %vm121, %v814, %v815
    %v817 = vsel %vm121, %v815, %v814
    %v818 = vsel %vm24, %v817, 0.0
    %v819 = vsel %vm25, %v816, 0.0
    %s820 = scalar_lea.vmem %s1, 896
    %v821 = vld [vmem:[%s820] sm:$0xff]
    %v822 = vld [vmem:[%s820 + $0x8] sm:$0xff]
    %v823 = vld [vmem:[%s820 + $0x10] sm:$0xff]
    %v824 = vld [vmem:[%s820 + $0x18] sm:$0xff]
    %v825 = vld [vmem:[%s820 + $0x20] sm:$0xff]
    %v826 = vld [vmem:[%s820 + $0x28] sm:$0xff]
    %v827 = vld [vmem:[%s820 + $0x30] sm:$0xff]
    %v828 = vld [vmem:[%s820 + $0x38] sm:$0xff]
    %v829 = vld [vmem:[%s820 + $0x40] sm:$0xff]
    %v830 = vld [vmem:[%s820 + $0x48] sm:$0xff]
    %v831 = vld [vmem:[%s820 + $0x50] sm:$0xff]
    %v832 = vld [vmem:[%s820 + $0x58] sm:$0xff]
    %v833 = vld [vmem:[%s820 + $0x60] sm:$0xff]
    %v834 = vld [vmem:[%s820 + $0x68] sm:$0xff]
    %v835 = vld [vmem:[%s820 + $0x70] sm:$0xff]
    %v836 = vld [vmem:[%s820 + $0x78] sm:$0xff]
    %837 = vmatprep.subr.mxu0 0.0
    %838 = vmatpush1.msra.mxu0 %v821
    %839 = vmatprep.subr.mxu0 0.0
    %840 = vmatpush1.msra.mxu0 %v822
    %841 = vmatprep.subr.mxu0 0.0
    %842 = vmatpush1.msra.mxu0 %v823
    %843 = vmatprep.subr.mxu0 0.0
    %844 = vmatpush1.msra.mxu0 %v824
    %845 = vmatprep.subr.mxu0 0.0
    %846 = vmatpush1.msra.mxu0 %v825
    %847 = vmatprep.subr.mxu0 0.0
    %848 = vmatpush1.msra.mxu0 %v826
    %849 = vmatprep.subr.mxu0 0.0
    %850 = vmatpush1.msra.mxu0 %v827
    %851 = vmatprep.subr.mxu0 0.0
    %852 = vmatpush1.msra.mxu0 %v828
    %853 = vmatprep.subr.mxu0 0.0
    %854 = vmatpush1.msra.mxu0 %v829
    %855 = vmatprep.subr.mxu0 0.0
    %856 = vmatpush1.msra.mxu0 %v830
    %857 = vmatprep.subr.mxu0 0.0
    %858 = vmatpush1.msra.mxu0 %v831
    %859 = vmatprep.subr.mxu0 0.0
    %860 = vmatpush1.msra.mxu0 %v832
    %861 = vmatprep.subr.mxu0 0.0
    %862 = vmatpush1.msra.mxu0 %v833
    %863 = vmatprep.subr.mxu0 0.0
    %864 = vmatpush1.msra.mxu0 %v834
    %865 = vmatprep.subr.mxu0 0.0
    %866 = vmatpush1.msra.mxu0 %v835
    %867 = vmatprep.subr.mxu0 0.0
    %868 = vmatpush1.msra.mxu0 %v836
    %869 = vmatprep.subr.mxu0 0.0
    %870 = vmatpush1.msra.mxu0 0.0
    %871 = vmatprep.subr.mxu0 0.0
    %872 = vmatpush1.msra.mxu0 0.0
    %873 = vmatprep.subr.mxu0 0.0
    %874 = vmatpush1.msra.mxu0 0.0
    %875 = vmatprep.subr.mxu0 0.0
    %876 = vmatpush1.msra.mxu0 0.0
    %877 = vmatprep.subr.mxu0 0.0
    %878 = vmatpush1.msra.mxu0 0.0
    %879 = vmatprep.subr.mxu0 0.0
    %880 = vmatpush1.msra.mxu0 0.0
    %881 = vmatprep.subr.mxu0 0.0
    %882 = vmatpush1.msra.mxu0 0.0
    %883 = vmatprep.subr.mxu0 0.0
    %884 = vmatpush1.msra.mxu0 0.0
    %885 = vmatprep.subr.mxu0 0.0
    %886 = vmatpush1.msra.mxu0 0.0
    %887 = vmatprep.subr.mxu0 0.0
    %888 = vmatpush1.msra.mxu0 0.0
    %889 = vmatprep.subr.mxu0 0.0
    %890 = vmatpush1.msra.mxu0 0.0
    %891 = vmatprep.subr.mxu0 0.0
    %892 = vmatpush1.msra.mxu0 0.0
    %893 = vmatprep.subr.mxu0 0.0
    %894 = vmatpush1.msra.mxu0 0.0
    %895 = vmatprep.subr.mxu0 0.0
    %896 = vmatpush1.msra.mxu0 0.0
    %897 = vmatprep.subr.mxu0 0.0
    %898 = vmatpush1.msra.mxu0 0.0
    %899 = vmatprep.subr.mxu0 0.0
    %900 = vmatpush1.msra.mxu0 0.0
    %901 = vmatprep.mubr.f32.mxu0 0.0
    %902 = vmatmul.mubr.f32.gmra.mrb[0].mxu0 %v818
    %v903 = vpop.f32.mrb[0].mxu0
    %v904 = vadd.f32 0.0, %v903
    %v905 = vpop.f32.mrb[0].mxu0
    %906 = vmatprep.mubr.f32.mxu0 0.0
    %907 = vmatmul.mubr.f32.gmra.mrb[0].mxu0 %v819
    %v908 = vpop.f32.mrb[0].mxu0
    %v909 = vadd.f32 0.0, %v908
    %v910 = vpop.f32.mrb[0].mxu0
    %911 = vdwg.mxu0
    %v912 = vadd.f32 %v812, %v904
    %v913 = vadd.f32 %v813, %v909
    %v914 = vrot.slane %v117, 6
    %v915 = vrot.slane %v118, 6
    %v916 = vsel %vm144, %v914, %v915
    %v917 = vsel %vm144, %v915, %v914
    %v918 = vsel %vm32, %v917, 0.0
    %v919 = vsel %vm33, %v916, 0.0
    %s920 = scalar_lea.vmem %s1, 1024
    %v921 = vld [vmem:[%s920] sm:$0xff]
    %v922 = vld [vmem:[%s920 + $0x8] sm:$0xff]
    %v923 = vld [vmem:[%s920 + $0x10] sm:$0xff]
    %v924 = vld [vmem:[%s920 + $0x18] sm:$0xff]
    %v925 = vld [vmem:[%s920 + $0x20] sm:$0xff]
    %v926 = vld [vmem:[%s920 + $0x28] sm:$0xff]
    %v927 = vld [vmem:[%s920 + $0x30] sm:$0xff]
    %v928 = vld [vmem:[%s920 + $0x38] sm:$0xff]
    %v929 = vld [vmem:[%s920 + $0x40] sm:$0xff]
    %v930 = vld [vmem:[%s920 + $0x48] sm:$0xff]
    %v931 = vld [vmem:[%s920 + $0x50] sm:$0xff]
    %v932 = vld [vmem:[%s920 + $0x58] sm:$0xff]
    %v933 = vld [vmem:[%s920 + $0x60] sm:$0xff]
    %v934 = vld [vmem:[%s920 + $0x68] sm:$0xff]
    %v935 = vld [vmem:[%s920 + $0x70] sm:$0xff]
    %v936 = vld [vmem:[%s920 + $0x78] sm:$0xff]
    %937 = vmatprep.subr.mxu0 0.0
    %938 = vmatpush1.msra.mxu0 %v921
    %939 = vmatprep.subr.mxu0 0.0
    %940 = vmatpush1.msra.mxu0 %v922
    %941 = vmatprep.subr.mxu0 0.0
    %942 = vmatpush1.msra.mxu0 %v923
    %943 = vmatprep.subr.mxu0 0.0
    %944 = vmatpush1.msra.mxu0 %v924
    %945 = vmatprep.subr.mxu0 0.0
    %946 = vmatpush1.msra.mxu0 %v925
    %947 = vmatprep.subr.mxu0 0.0
    %948 = vmatpush1.msra.mxu0 %v926
    %949 = vmatprep.subr.mxu0 0.0
    %950 = vmatpush1.msra.mxu0 %v927
    %951 = vmatprep.subr.mxu0 0.0
    %952 = vmatpush1.msra.mxu0 %v928
    %953 = vmatprep.subr.mxu0 0.0
    %954 = vmatpush1.msra.mxu0 %v929
    %955 = vmatprep.subr.mxu0 0.0
    %956 = vmatpush1.msra.mxu0 %v930
    %957 = vmatprep.subr.mxu0 0.0
    %958 = vmatpush1.msra.mxu0 %v931
    %959 = vmatprep.subr.mxu0 0.0
    %960 = vmatpush1.msra.mxu0 %v932
    %961 = vmatprep.subr.mxu0 0.0
    %962 = vmatpush1.msra.mxu0 %v933
    %963 = vmatprep.subr.mxu0 0.0
    %964 = vmatpush1.msra.mxu0 %v934
    %965 = vmatprep.subr.mxu0 0.0
    %966 = vmatpush1.msra.mxu0 %v935
    %967 = vmatprep.subr.mxu0 0.0
    %968 = vmatpush1.msra.mxu0 %v936
    %969 = vmatprep.subr.mxu0 0.0
    %970 = vmatpush1.msra.mxu0 0.0
    %971 = vmatprep.subr.mxu0 0.0
    %972 = vmatpush1.msra.mxu0 0.0
    %973 = vmatprep.subr.mxu0 0.0
    %974 = vmatpush1.msra.mxu0 0.0
    %975 = vmatprep.subr.mxu0 0.0
    %976 = vmatpush1.msra.mxu0 0.0
    %977 = vmatprep.subr.mxu0 0.0
    %978 = vmatpush1.msra.mxu0 0.0
    %979 = vmatprep.subr.mxu0 0.0
    %980 = vmatpush1.msra.mxu0 0.0
    %981 = vmatprep.subr.mxu0 0.0
    %982 = vmatpush1.msra.mxu0 0.0
    %983 = vmatprep.subr.mxu0 0.0
    %984 = vmatpush1.msra.mxu0 0.0
    %985 = vmatprep.subr.mxu0 0.0
    %986 = vmatpush1.msra.mxu0 0.0
    %987 = vmatprep.subr.mxu0 0.0
    %988 = vmatpush1.msra.mxu0 0.0
    %989 = vmatprep.subr.mxu0 0.0
    %990 = vmatpush1.msra.mxu0 0.0
    %991 = vmatprep.subr.mxu0 0.0
    %992 = vmatpush1.msra.mxu0 0.0
    %993 = vmatprep.subr.mxu0 0.0
    %994 = vmatpush1.msra.mxu0 0.0
    %995 = vmatprep.subr.mxu0 0.0
    %996 = vmatpush1.msra.mxu0 0.0
    %997 = vmatprep.subr.mxu0 0.0
    %998 = vmatpush1.msra.mxu0 0.0
    %999 = vmatprep.subr.mxu0 0.0
    %1000 = vmatpush1.msra.mxu0 0.0
    %1001 = vmatprep.mubr.f32.mxu0 0.0
    %1002 = vmatmul.mubr.f32.gmra.mrb[0].mxu0 %v918
    %v1003 = vpop.f32.mrb[0].mxu0
    %v1004 = vadd.f32 0.0, %v1003
    %v1005 = vpop.f32.mrb[0].mxu0
    %1006 = vmatprep.mubr.f32.mxu0 0.0
    %1007 = vmatmul.mubr.f32.gmra.mrb[0].mxu0 %v919
    %v1008 = vpop.f32.mrb[0].mxu0
    %v1009 = vadd.f32 0.0, %v1008
    %v1010 = vpop.f32.mrb[0].mxu0
    %1011 = vdwg.mxu0
    %v1012 = vadd.f32 %v912, %v1004
    %v1013 = vadd.f32 %v913, %v1009
    %v1014 = vrot.slane %v117, 7
    %v1015 = vrot.slane %v118, 7
    %v1016 = vsel %vm318, %v1014, %v1015
    %v1017 = vsel %vm318, %v1015, %v1014
    %v1018 = vsel %vm40, %v1017, 0.0
    %v1019 = vsel %vm41, %v1016, 0.0
    %s1020 = scalar_lea.vmem %s1, 1152
    %v1021 = vld [vmem:[%s1020] sm:$0xff]
    %v1022 = vld [vmem:[%s1020 + $0x8] sm:$0xff]
    %v1023 = vld [vmem:[%s1020 + $0x10] sm:$0xff]
    %v1024 = vld [vmem:[%s1020 + $0x18] sm:$0xff]
    %v1025 = vld [vmem:[%s1020 + $0x20] sm:$0xff]
    %v1026 = vld [vmem:[%s1020 + $0x28] sm:$0xff]
    %v1027 = vld [vmem:[%s1020 + $0x30] sm:$0xff]
    %v1028 = vld [vmem:[%s1020 + $0x38] sm:$0xff]
    %v1029 = vld [vmem:[%s1020 + $0x40] sm:$0xff]
    %v1030 = vld [vmem:[%s1020 + $0x48] sm:$0xff]
    %v1031 = vld [vmem:[%s1020 + $0x50] sm:$0xff]
    %v1032 = vld [vmem:[%s1020 + $0x58] sm:$0xff]
    %v1033 = vld [vmem:[%s1020 + $0x60] sm:$0xff]
    %v1034 = vld [vmem:[%s1020 + $0x68] sm:$0xff]
    %v1035 = vld [vmem:[%s1020 + $0x70] sm:$0xff]
    %v1036 = vld [vmem:[%s1020 + $0x78] sm:$0xff]
    %1037 = vmatprep.subr.mxu0 0.0
    %1038 = vmatpush1.msra.mxu0 %v1021
    %1039 = vmatprep.subr.mxu0 0.0
    %1040 = vmatpush1.msra.mxu0 %v1022
    %1041 = vmatprep.subr.mxu0 0.0
    %1042 = vmatpush1.msra.mxu0 %v1023
    %1043 = vmatprep.subr.mxu0 0.0
    %1044 = vmatpush1.msra.mxu0 %v1024
    %1045 = vmatprep.subr.mxu0 0.0
    %1046 = vmatpush1.msra.mxu0 %v1025
    %1047 = vmatprep.subr.mxu0 0.0
    %1048 = vmatpush1.msra.mxu0 %v1026
    %1049 = vmatprep.subr.mxu0 0.0
    %1050 = vmatpush1.msra.mxu0 %v1027
    %1051 = vmatprep.subr.mxu0 0.0
    %1052 = vmatpush1.msra.mxu0 %v1028
    %1053 = vmatprep.subr.mxu0 0.0
    %1054 = vmatpush1.msra.mxu0 %v1029
    %1055 = vmatprep.subr.mxu0 0.0
    %1056 = vmatpush1.msra.mxu0 %v1030
    %1057 = vmatprep.subr.mxu0 0.0
    %1058 = vmatpush1.msra.mxu0 %v1031
    %1059 = vmatprep.subr.mxu0 0.0
    %1060 = vmatpush1.msra.mxu0 %v1032
    %1061 = vmatprep.subr.mxu0 0.0
    %1062 = vmatpush1.msra.mxu0 %v1033
    %1063 = vmatprep.subr.mxu0 0.0
    %1064 = vmatpush1.msra.mxu0 %v1034
    %1065 = vmatprep.subr.mxu0 0.0
    %1066 = vmatpush1.msra.mxu0 %v1035
    %1067 = vmatprep.subr.mxu0 0.0
    %1068 = vmatpush1.msra.mxu0 %v1036
    %1069 = vmatprep.subr.mxu0 0.0
    %1070 = vmatpush1.msra.mxu0 0.0
    %1071 = vmatprep.subr.mxu0 0.0
    %1072 = vmatpush1.msra.mxu0 0.0
    %1073 = vmatprep.subr.mxu0 0.0
    %1074 = vmatpush1.msra.mxu0 0.0
    %1075 = vmatprep.subr.mxu0 0.0
    %1076 = vmatpush1.msra.mxu0 0.0
    %1077 = vmatprep.subr.mxu0 0.0
    %1078 = vmatpush1.msra.mxu0 0.0
    %1079 = vmatprep.subr.mxu0 0.0
    %1080 = vmatpush1.msra.mxu0 0.0
    %1081 = vmatprep.subr.mxu0 0.0
    %1082 = vmatpush1.msra.mxu0 0.0
    %1083 = vmatprep.subr.mxu0 0.0
    %1084 = vmatpush1.msra.mxu0 0.0
    %1085 = vmatprep.subr.mxu0 0.0
    %1086 = vmatpush1.msra.mxu0 0.0
    %1087 = vmatprep.subr.mxu0 0.0
    %1088 = vmatpush1.msra.mxu0 0.0
    %1089 = vmatprep.subr.mxu0 0.0
    %1090 = vmatpush1.msra.mxu0 0.0
    %1091 = vmatprep.subr.mxu0 0.0
    %1092 = vmatpush1.msra.mxu0 0.0
    %1093 = vmatprep.subr.mxu0 0.0
    %1094 = vmatpush1.msra.mxu0 0.0
    %1095 = vmatprep.subr.mxu0 0.0
    %1096 = vmatpush1.msra.mxu0 0.0
    %1097 = vmatprep.subr.mxu0 0.0
    %1098 = vmatpush1.msra.mxu0 0.0
    %1099 = vmatprep.subr.mxu0 0.0
    %1100 = vmatpush1.msra.mxu0 0.0
    %1101 = vmatprep.mubr.f32.mxu0 0.0
    %1102 = vmatmul.mubr.f32.gmra.mrb[0].mxu0 %v1018
    %v1103 = vpop.f32.mrb[0].mxu0
    %v1104 = vadd.f32 0.0, %v1103
    %v1105 = vpop.f32.mrb[0].mxu0
    %1106 = vmatprep.mubr.f32.mxu0 0.0
    %1107 = vmatmul.mubr.f32.gmra.mrb[0].mxu0 %v1019
    %v1108 = vpop.f32.mrb[0].mxu0
    %v1109 = vadd.f32 0.0, %v1108
    %v1110 = vpop.f32.mrb[0].mxu0
    %1111 = vdwg.mxu0
    %v1112 = vadd.f32 %v1012, %v1104
    %v1113 = vadd.f32 %v1013, %v1109
    %s1114 = scalar_lea.vmem %s1, 1280
    %v1115 = vld [vmem:[%s1114] sm:$0xff]
    %v1116 = vld [vmem:[%s1114 + $0x8] sm:$0xff]
    %v1117 = vld [vmem:[%s1114 + $0x10] sm:$0xff]
    %v1118 = vld [vmem:[%s1114 + $0x18] sm:$0xff]
    %v1119 = vld [vmem:[%s1114 + $0x20] sm:$0xff]
    %v1120 = vld [vmem:[%s1114 + $0x28] sm:$0xff]
    %v1121 = vld [vmem:[%s1114 + $0x30] sm:$0xff]
    %v1122 = vld [vmem:[%s1114 + $0x38] sm:$0xff]
    %v1123 = vld [vmem:[%s1114 + $0x40] sm:$0xff]
    %v1124 = vld [vmem:[%s1114 + $0x48] sm:$0xff]
    %v1125 = vld [vmem:[%s1114 + $0x50] sm:$0xff]
    %v1126 = vld [vmem:[%s1114 + $0x58] sm:$0xff]
    %v1127 = vld [vmem:[%s1114 + $0x60] sm:$0xff]
    %v1128 = vld [vmem:[%s1114 + $0x68] sm:$0xff]
    %v1129 = vld [vmem:[%s1114 + $0x70] sm:$0xff]
    %v1130 = vld [vmem:[%s1114 + $0x78] sm:$0xff]
    %1131 = vmatprep.subr.mxu0 0.0
    %1132 = vmatpush1.msra.mxu0 %v1115
    %1133 = vmatprep.subr.mxu0 0.0
    %1134 = vmatpush1.msra.mxu0 %v1116
    %1135 = vmatprep.subr.mxu0 0.0
    %1136 = vmatpush1.msra.mxu0 %v1117
    %1137 = vmatprep.subr.mxu0 0.0
    %1138 = vmatpush1.msra.mxu0 %v1118
    %1139 = vmatprep.subr.mxu0 0.0
    %1140 = vmatpush1.msra.mxu0 %v1119
    %1141 = vmatprep.subr.mxu0 0.0
    %1142 = vmatpush1.msra.mxu0 %v1120
    %1143 = vmatprep.subr.mxu0 0.0
    %1144 = vmatpush1.msra.mxu0 %v1121
    %1145 = vmatprep.subr.mxu0 0.0
    %1146 = vmatpush1.msra.mxu0 %v1122
    %1147 = vmatprep.subr.mxu0 0.0
    %1148 = vmatpush1.msra.mxu0 %v1123
    %1149 = vmatprep.subr.mxu0 0.0
    %1150 = vmatpush1.msra.mxu0 %v1124
    %1151 = vmatprep.subr.mxu0 0.0
    %1152 = vmatpush1.msra.mxu0 %v1125
    %1153 = vmatprep.subr.mxu0 0.0
    %1154 = vmatpush1.msra.mxu0 %v1126
    %1155 = vmatprep.subr.mxu0 0.0
    %1156 = vmatpush1.msra.mxu0 %v1127
    %1157 = vmatprep.subr.mxu0 0.0
    %1158 = vmatpush1.msra.mxu0 %v1128
    %1159 = vmatprep.subr.mxu0 0.0
    %1160 = vmatpush1.msra.mxu0 %v1129
    %1161 = vmatprep.subr.mxu0 0.0
    %1162 = vmatpush1.msra.mxu0 %v1130
    %1163 = vmatprep.subr.mxu0 0.0
    %1164 = vmatpush1.msra.mxu0 0.0
    %1165 = vmatprep.subr.mxu0 0.0
    %1166 = vmatpush1.msra.mxu0 0.0
    %1167 = vmatprep.subr.mxu0 0.0
    %1168 = vmatpush1.msra.mxu0 0.0
    %1169 = vmatprep.subr.mxu0 0.0
    %1170 = vmatpush1.msra.mxu0 0.0
    %1171 = vmatprep.subr.mxu0 0.0
    %1172 = vmatpush1.msra.mxu0 0.0
    %1173 = vmatprep.subr.mxu0 0.0
    %1174 = vmatpush1.msra.mxu0 0.0
    %1175 = vmatprep.subr.mxu0 0.0
    %1176 = vmatpush1.msra.mxu0 0.0
    %1177 = vmatprep.subr.mxu0 0.0
    %1178 = vmatpush1.msra.mxu0 0.0
    %1179 = vmatprep.subr.mxu0 0.0
    %1180 = vmatpush1.msra.mxu0 0.0
    %1181 = vmatprep.subr.mxu0 0.0
    %1182 = vmatpush1.msra.mxu0 0.0
    %1183 = vmatprep.subr.mxu0 0.0
    %1184 = vmatpush1.msra.mxu0 0.0
    %1185 = vmatprep.subr.mxu0 0.0
    %1186 = vmatpush1.msra.mxu0 0.0
    %1187 = vmatprep.subr.mxu0 0.0
    %1188 = vmatpush1.msra.mxu0 0.0
    %1189 = vmatprep.subr.mxu0 0.0
    %1190 = vmatpush1.msra.mxu0 0.0
    %1191 = vmatprep.subr.mxu0 0.0
    %1192 = vmatpush1.msra.mxu0 0.0
    %1193 = vmatprep.subr.mxu0 0.0
    %1194 = vmatpush1.msra.mxu0 0.0
    %1195 = vmatprep.mubr.f32.mxu0 0.0
    %1196 = vmatmul.mubr.f32.gmra.mrb[0].mxu0 %v117
    %v1197 = vpop.f32.mrb[0].mxu0
    %v1198 = vadd.f32 0.0, %v1197
    %v1199 = vpop.f32.mrb[0].mxu0
    %1200 = vmatprep.mubr.f32.mxu0 0.0
    %1201 = vmatmul.mubr.f32.gmra.mrb[0].mxu0 %v118
    %v1202 = vpop.f32.mrb[0].mxu0
    %v1203 = vadd.f32 0.0, %v1202
    %v1204 = vpop.f32.mrb[0].mxu0
    %1205 = vdwg.mxu0
    %v1206 = vadd.f32 %v1112, %v1198
    %v1207 = vadd.f32 %v1113, %v1203
    %v1208 = vrot.slane %v117, 1
    %v1209 = vrot.slane %v118, 1
    %v1210 = vsel %vm513, %v1208, %v1209
    %v1211 = vsel %vm513, %v1209, %v1208
    %v1212 = vsel %vm48, %v1210, 0.0
    %v1213 = vsel %vm49, %v1211, 0.0
    %s1214 = scalar_lea.vmem %s1, 1408
    %v1215 = vld [vmem:[%s1214] sm:$0xff]
    %v1216 = vld [vmem:[%s1214 + $0x8] sm:$0xff]
    %v1217 = vld [vmem:[%s1214 + $0x10] sm:$0xff]
    %v1218 = vld [vmem:[%s1214 + $0x18] sm:$0xff]
    %v1219 = vld [vmem:[%s1214 + $0x20] sm:$0xff]
    %v1220 = vld [vmem:[%s1214 + $0x28] sm:$0xff]
    %v1221 = vld [vmem:[%s1214 + $0x30] sm:$0xff]
    %v1222 = vld [vmem:[%s1214 + $0x38] sm:$0xff]
    %v1223 = vld [vmem:[%s1214 + $0x40] sm:$0xff]
    %v1224 = vld [vmem:[%s1214 + $0x48] sm:$0xff]
    %v1225 = vld [vmem:[%s1214 + $0x50] sm:$0xff]
    %v1226 = vld [vmem:[%s1214 + $0x58] sm:$0xff]
    %v1227 = vld [vmem:[%s1214 + $0x60] sm:$0xff]
    %v1228 = vld [vmem:[%s1214 + $0x68] sm:$0xff]
    %v1229 = vld [vmem:[%s1214 + $0x70] sm:$0xff]
    %v1230 = vld [vmem:[%s1214 + $0x78] sm:$0xff]
    %1231 = vmatprep.subr.mxu0 0.0
    %1232 = vmatpush1.msra.mxu0 %v1215
    %1233 = vmatprep.subr.mxu0 0.0
    %1234 = vmatpush1.msra.mxu0 %v1216
    %1235 = vmatprep.subr.mxu0 0.0
    %1236 = vmatpush1.msra.mxu0 %v1217
    %1237 = vmatprep.subr.mxu0 0.0
    %1238 = vmatpush1.msra.mxu0 %v1218
    %1239 = vmatprep.subr.mxu0 0.0
    %1240 = vmatpush1.msra.mxu0 %v1219
    %1241 = vmatprep.subr.mxu0 0.0
    %1242 = vmatpush1.msra.mxu0 %v1220
    %1243 = vmatprep.subr.mxu0 0.0
    %1244 = vmatpush1.msra.mxu0 %v1221
    %1245 = vmatprep.subr.mxu0 0.0
    %1246 = vmatpush1.msra.mxu0 %v1222
    %1247 = vmatprep.subr.mxu0 0.0
    %1248 = vmatpush1.msra.mxu0 %v1223
    %1249 = vmatprep.subr.mxu0 0.0
    %1250 = vmatpush1.msra.mxu0 %v1224
    %1251 = vmatprep.subr.mxu0 0.0
    %1252 = vmatpush1.msra.mxu0 %v1225
    %1253 = vmatprep.subr.mxu0 0.0
    %1254 = vmatpush1.msra.mxu0 %v1226
    %1255 = vmatprep.subr.mxu0 0.0
    %1256 = vmatpush1.msra.mxu0 %v1227
    %1257 = vmatprep.subr.mxu0 0.0
    %1258 = vmatpush1.msra.mxu0 %v1228
    %1259 = vmatprep.subr.mxu0 0.0
    %1260 = vmatpush1.msra.mxu0 %v1229
    %1261 = vmatprep.subr.mxu0 0.0
    %1262 = vmatpush1.msra.mxu0 %v1230
    %1263 = vmatprep.subr.mxu0 0.0
    %1264 = vmatpush1.msra.mxu0 0.0
    %1265 = vmatprep.subr.mxu0 0.0
    %1266 = vmatpush1.msra.mxu0 0.0
    %1267 = vmatprep.subr.mxu0 0.0
    %1268 = vmatpush1.msra.mxu0 0.0
    %1269 = vmatprep.subr.mxu0 0.0
    %1270 = vmatpush1.msra.mxu0 0.0
    %1271 = vmatprep.subr.mxu0 0.0
    %1272 = vmatpush1.msra.mxu0 0.0
    %1273 = vmatprep.subr.mxu0 0.0
    %1274 = vmatpush1.msra.mxu0 0.0
    %1275 = vmatprep.subr.mxu0 0.0
    %1276 = vmatpush1.msra.mxu0 0.0
    %1277 = vmatprep.subr.mxu0 0.0
    %1278 = vmatpush1.msra.mxu0 0.0
    %1279 = vmatprep.subr.mxu0 0.0
    %1280 = vmatpush1.msra.mxu0 0.0
    %1281 = vmatprep.subr.mxu0 0.0
    %1282 = vmatpush1.msra.mxu0 0.0
    %1283 = vmatprep.subr.mxu0 0.0
    %1284 = vmatpush1.msra.mxu0 0.0
    %1285 = vmatprep.subr.mxu0 0.0
    %1286 = vmatpush1.msra.mxu0 0.0
    %1287 = vmatprep.subr.mxu0 0.0
    %1288 = vmatpush1.msra.mxu0 0.0
    %1289 = vmatprep.subr.mxu0 0.0
    %1290 = vmatpush1.msra.mxu0 0.0
    %1291 = vmatprep.subr.mxu0 0.0
    %1292 = vmatpush1.msra.mxu0 0.0
    %1293 = vmatprep.subr.mxu0 0.0
    %1294 = vmatpush1.msra.mxu0 0.0
    %1295 = vmatprep.mubr.f32.mxu0 0.0
    %1296 = vmatmul.mubr.f32.gmra.mrb[0].mxu0 %v1212
    %v1297 = vpop.f32.mrb[0].mxu0
    %v1298 = vadd.f32 0.0, %v1297
    %v1299 = vpop.f32.mrb[0].mxu0
    %1300 = vmatprep.mubr.f32.mxu0 0.0
    %1301 = vmatmul.mubr.f32.gmra.mrb[0].mxu0 %v1213
    %v1302 = vpop.f32.mrb[0].mxu0
    %v1303 = vadd.f32 0.0, %v1302
    %v1304 = vpop.f32.mrb[0].mxu0
    %1305 = vdwg.mxu0
    %v1306 = vadd.f32 %v1206, %v1298
    %v1307 = vadd.f32 %v1207, %v1303
    %v1308 = vrot.slane %v117, 2
    %v1309 = vrot.slane %v118, 2
    %v1310 = vsel %vm614, %v1308, %v1309
    %v1311 = vsel %vm614, %v1309, %v1308
    %v1312 = vsel %vm56, %v1310, 0.0
    %v1313 = vsel %vm57, %v1311, 0.0
    %s1314 = scalar_lea.vmem %s1, 1536
    %v1315 = vld [vmem:[%s1314] sm:$0xff]
    %v1316 = vld [vmem:[%s1314 + $0x8] sm:$0xff]
    %v1317 = vld [vmem:[%s1314 + $0x10] sm:$0xff]
    %v1318 = vld [vmem:[%s1314 + $0x18] sm:$0xff]
    %v1319 = vld [vmem:[%s1314 + $0x20] sm:$0xff]
    %v1320 = vld [vmem:[%s1314 + $0x28] sm:$0xff]
    %v1321 = vld [vmem:[%s1314 + $0x30] sm:$0xff]
    %v1322 = vld [vmem:[%s1314 + $0x38] sm:$0xff]
    %v1323 = vld [vmem:[%s1314 + $0x40] sm:$0xff]
    %v1324 = vld [vmem:[%s1314 + $0x48] sm:$0xff]
    %v1325 = vld [vmem:[%s1314 + $0x50] sm:$0xff]
    %v1326 = vld [vmem:[%s1314 + $0x58] sm:$0xff]
    %v1327 = vld [vmem:[%s1314 + $0x60] sm:$0xff]
    %v1328 = vld [vmem:[%s1314 + $0x68] sm:$0xff]
    %v1329 = vld [vmem:[%s1314 + $0x70] sm:$0xff]
    %v1330 = vld [vmem:[%s1314 + $0x78] sm:$0xff]
    %1331 = vmatprep.subr.mxu0 0.0
    %1332 = vmatpush1.msra.mxu0 %v1315
    %1333 = vmatprep.subr.mxu0 0.0
    %1334 = vmatpush1.msra.mxu0 %v1316
    %1335 = vmatprep.subr.mxu0 0.0
    %1336 = vmatpush1.msra.mxu0 %v1317
    %1337 = vmatprep.subr.mxu0 0.0
    %1338 = vmatpush1.msra.mxu0 %v1318
    %1339 = vmatprep.subr.mxu0 0.0
    %1340 = vmatpush1.msra.mxu0 %v1319
    %1341 = vmatprep.subr.mxu0 0.0
    %1342 = vmatpush1.msra.mxu0 %v1320
    %1343 = vmatprep.subr.mxu0 0.0
    %1344 = vmatpush1.msra.mxu0 %v1321
    %1345 = vmatprep.subr.mxu0 0.0
    %1346 = vmatpush1.msra.mxu0 %v1322
    %1347 = vmatprep.subr.mxu0 0.0
    %1348 = vmatpush1.msra.mxu0 %v1323
    %1349 = vmatprep.subr.mxu0 0.0
    %1350 = vmatpush1.msra.mxu0 %v1324
    %1351 = vmatprep.subr.mxu0 0.0
    %1352 = vmatpush1.msra.mxu0 %v1325
    %1353 = vmatprep.subr.mxu0 0.0
    %1354 = vmatpush1.msra.mxu0 %v1326
    %1355 = vmatprep.subr.mxu0 0.0
    %1356 = vmatpush1.msra.mxu0 %v1327
    %1357 = vmatprep.subr.mxu0 0.0
    %1358 = vmatpush1.msra.mxu0 %v1328
    %1359 = vmatprep.subr.mxu0 0.0
    %1360 = vmatpush1.msra.mxu0 %v1329
    %1361 = vmatprep.subr.mxu0 0.0
    %1362 = vmatpush1.msra.mxu0 %v1330
    %1363 = vmatprep.subr.mxu0 0.0
    %1364 = vmatpush1.msra.mxu0 0.0
    %1365 = vmatprep.subr.mxu0 0.0
    %1366 = vmatpush1.msra.mxu0 0.0
    %1367 = vmatprep.subr.mxu0 0.0
    %1368 = vmatpush1.msra.mxu0 0.0
    %1369 = vmatprep.subr.mxu0 0.0
    %1370 = vmatpush1.msra.mxu0 0.0
    %1371 = vmatprep.subr.mxu0 0.0
    %1372 = vmatpush1.msra.mxu0 0.0
    %1373 = vmatprep.subr.mxu0 0.0
    %1374 = vmatpush1.msra.mxu0 0.0
    %1375 = vmatprep.subr.mxu0 0.0
    %1376 = vmatpush1.msra.mxu0 0.0
    %1377 = vmatprep.subr.mxu0 0.0
    %1378 = vmatpush1.msra.mxu0 0.0
    %1379 = vmatprep.subr.mxu0 0.0
    %1380 = vmatpush1.msra.mxu0 0.0
    %1381 = vmatprep.subr.mxu0 0.0
    %1382 = vmatpush1.msra.mxu0 0.0
    %1383 = vmatprep.subr.mxu0 0.0
    %1384 = vmatpush1.msra.mxu0 0.0
    %1385 = vmatprep.subr.mxu0 0.0
    %1386 = vmatpush1.msra.mxu0 0.0
    %1387 = vmatprep.subr.mxu0 0.0
    %1388 = vmatpush1.msra.mxu0 0.0
    %1389 = vmatprep.subr.mxu0 0.0
    %1390 = vmatpush1.msra.mxu0 0.0
    %1391 = vmatprep.subr.mxu0 0.0
    %1392 = vmatpush1.msra.mxu0 0.0
    %1393 = vmatprep.subr.mxu0 0.0
    %1394 = vmatpush1.msra.mxu0 0.0
    %1395 = vmatprep.mubr.f32.mxu0 0.0
    %1396 = vmatmul.mubr.f32.gmra.mrb[0].mxu0 %v1312
    %v1397 = vpop.f32.mrb[0].mxu0
    %v1398 = vadd.f32 0.0, %v1397
    %v1399 = vpop.f32.mrb[0].mxu0
    %1400 = vmatprep.mubr.f32.mxu0 0.0
    %1401 = vmatmul.mubr.f32.gmra.mrb[0].mxu0 %v1313
    %v1402 = vpop.f32.mrb[0].mxu0
    %v1403 = vadd.f32 0.0, %v1402
    %v1404 = vpop.f32.mrb[0].mxu0
    %1405 = vdwg.mxu0
    %v1406 = vadd.f32 %v1306, %v1398
    %v1407 = vadd.f32 %v1307, %v1403
    %v1408 = vrot.slane %v117, 3
    %v1409 = vrot.slane %v118, 3
    %v1410 = vsel %vm715, %v1408, %v1409
    %v1411 = vsel %vm715, %v1409, %v1408
    %v1412 = vsel %vm64, %v1410, 0.0
    %v1413 = vsel %vm65, %v1411, 0.0
    %s1414 = scalar_lea.vmem %s1, 1664
    %v1415 = vld [vmem:[%s1414] sm:$0xff]
    %v1416 = vld [vmem:[%s1414 + $0x8] sm:$0xff]
    %v1417 = vld [vmem:[%s1414 + $0x10] sm:$0xff]
    %v1418 = vld [vmem:[%s1414 + $0x18] sm:$0xff]
    %v1419 = vld [vmem:[%s1414 + $0x20] sm:$0xff]
    %v1420 = vld [vmem:[%s1414 + $0x28] sm:$0xff]
    %v1421 = vld [vmem:[%s1414 + $0x30] sm:$0xff]
    %v1422 = vld [vmem:[%s1414 + $0x38] sm:$0xff]
    %v1423 = vld [vmem:[%s1414 + $0x40] sm:$0xff]
    %v1424 = vld [vmem:[%s1414 + $0x48] sm:$0xff]
    %v1425 = vld [vmem:[%s1414 + $0x50] sm:$0xff]
    %v1426 = vld [vmem:[%s1414 + $0x58] sm:$0xff]
    %v1427 = vld [vmem:[%s1414 + $0x60] sm:$0xff]
    %v1428 = vld [vmem:[%s1414 + $0x68] sm:$0xff]
    %v1429 = vld [vmem:[%s1414 + $0x70] sm:$0xff]
    %v1430 = vld [vmem:[%s1414 + $0x78] sm:$0xff]
    %1431 = vmatprep.subr.mxu0 0.0
    %1432 = vmatpush1.msra.mxu0 %v1415
    %1433 = vmatprep.subr.mxu0 0.0
    %1434 = vmatpush1.msra.mxu0 %v1416
    %1435 = vmatprep.subr.mxu0 0.0
    %1436 = vmatpush1.msra.mxu0 %v1417
    %1437 = vmatprep.subr.mxu0 0.0
    %1438 = vmatpush1.msra.mxu0 %v1418
    %1439 = vmatprep.subr.mxu0 0.0
    %1440 = vmatpush1.msra.mxu0 %v1419
    %1441 = vmatprep.subr.mxu0 0.0
    %1442 = vmatpush1.msra.mxu0 %v1420
    %1443 = vmatprep.subr.mxu0 0.0
    %1444 = vmatpush1.msra.mxu0 %v1421
    %1445 = vmatprep.subr.mxu0 0.0
    %1446 = vmatpush1.msra.mxu0 %v1422
    %1447 = vmatprep.subr.mxu0 0.0
    %1448 = vmatpush1.msra.mxu0 %v1423
    %1449 = vmatprep.subr.mxu0 0.0
    %1450 = vmatpush1.msra.mxu0 %v1424
    %1451 = vmatprep.subr.mxu0 0.0
    %1452 = vmatpush1.msra.mxu0 %v1425
    %1453 = vmatprep.subr.mxu0 0.0
    %1454 = vmatpush1.msra.mxu0 %v1426
    %1455 = vmatprep.subr.mxu0 0.0
    %1456 = vmatpush1.msra.mxu0 %v1427
    %1457 = vmatprep.subr.mxu0 0.0
    %1458 = vmatpush1.msra.mxu0 %v1428
    %1459 = vmatprep.subr.mxu0 0.0
    %1460 = vmatpush1.msra.mxu0 %v1429
    %1461 = vmatprep.subr.mxu0 0.0
    %1462 = vmatpush1.msra.mxu0 %v1430
    %1463 = vmatprep.subr.mxu0 0.0
    %1464 = vmatpush1.msra.mxu0 0.0
    %1465 = vmatprep.subr.mxu0 0.0
    %1466 = vmatpush1.msra.mxu0 0.0
    %1467 = vmatprep.subr.mxu0 0.0
    %1468 = vmatpush1.msra.mxu0 0.0
    %1469 = vmatprep.subr.mxu0 0.0
    %1470 = vmatpush1.msra.mxu0 0.0
    %1471 = vmatprep.subr.mxu0 0.0
    %1472 = vmatpush1.msra.mxu0 0.0
    %1473 = vmatprep.subr.mxu0 0.0
    %1474 = vmatpush1.msra.mxu0 0.0
    %1475 = vmatprep.subr.mxu0 0.0
    %1476 = vmatpush1.msra.mxu0 0.0
    %1477 = vmatprep.subr.mxu0 0.0
    %1478 = vmatpush1.msra.mxu0 0.0
    %1479 = vmatprep.subr.mxu0 0.0
    %1480 = vmatpush1.msra.mxu0 0.0
    %1481 = vmatprep.subr.mxu0 0.0
    %1482 = vmatpush1.msra.mxu0 0.0
    %1483 = vmatprep.subr.mxu0 0.0
    %1484 = vmatpush1.msra.mxu0 0.0
    %1485 = vmatprep.subr.mxu0 0.0
    %1486 = vmatpush1.msra.mxu0 0.0
    %1487 = vmatprep.subr.mxu0 0.0
    %1488 = vmatpush1.msra.mxu0 0.0
    %1489 = vmatprep.subr.mxu0 0.0
    %1490 = vmatpush1.msra.mxu0 0.0
    %1491 = vmatprep.subr.mxu0 0.0
    %1492 = vmatpush1.msra.mxu0 0.0
    %1493 = vmatprep.subr.mxu0 0.0
    %1494 = vmatpush1.msra.mxu0 0.0
    %1495 = vmatprep.mubr.f32.mxu0 0.0
    %1496 = vmatmul.mubr.f32.gmra.mrb[0].mxu0 %v1412
    %v1497 = vpop.f32.mrb[0].mxu0
    %v1498 = vadd.f32 0.0, %v1497
    %v1499 = vpop.f32.mrb[0].mxu0
    %1500 = vmatprep.mubr.f32.mxu0 0.0
    %1501 = vmatmul.mubr.f32.gmra.mrb[0].mxu0 %v1413
    %v1502 = vpop.f32.mrb[0].mxu0
    %v1503 = vadd.f32 0.0, %v1502
    %v1504 = vpop.f32.mrb[0].mxu0
    %1505 = vdwg.mxu0
    %v1506 = vadd.f32 %v1406, %v1498
    %v1507 = vadd.f32 %v1407, %v1503
    %v1508 = vstv %s14
    %v1509 = vadd.f32 %v1506, %v1508
    %v1510 = vadd.f32 %v1507, %v1508
    %v1511 = vsub.f32 0.0, %v1509
    %v1512 = vsub.f32 0.0, %v1510
    %v1513 = vmul.f32 %v1511, 1.442695
    %v1514 = vpow.pop %v1513
    %v1515 = vmul.f32 %v1512, 1.442695
    %v1516 = vpow.pop %v1515
    %v1517 = vadd.f32 %v1514, 1.0
    %v1518 = vadd.f32 %v1516, 1.0
    %v1519 = vrcp.pop %v1517
    %v1520 = vrcp.pop %v1518
    %v1521 = vmul.f32 %v66, %v1519
    %v1522 = vmul.f32 %v67, %v1520
    %1523 = vst [vmem:[#allocation4] sm:$0xff] %v1521
    %1524 = vst [vmem:[#allocation4 + $0x8] sm:$0xff] %v1522
    %v1525 = vld [vmem:[%s68] sm:$0xff]
    %v1526 = vld [vmem:[%s68 + $0x8] sm:$0xff]
    %v1527 = vmul.f32 %v1525, %v1519
    %v1528 = vmul.f32 %v1526, %v1520
    %s1529 = scalar_lea.vmem [#allocation4], 16
    %1530 = vst [vmem:[%s1529] sm:$0xff] %v1527
    %1531 = vst [vmem:[%s1529 + $0x8] sm:$0xff] %v1528
    %v1532 = vld [vmem:[%s75] sm:$0xff]
    %v1533 = vld [vmem:[%s75 + $0x8] sm:$0xff]
    %v1534 = vmul.f32 %v1532, %v1519
    %v1535 = vmul.f32 %v1533, %v1520
    %s1536 = scalar_lea.vmem [#allocation4], 32
    %1537 = vst [vmem:[%s1536] sm:$0xff] %v1534
    %1538 = vst [vmem:[%s1536 + $0x8] sm:$0xff] %v1535
    %v1539 = vld [vmem:[%s82] sm:$0xff]
    %v1540 = vld [vmem:[%s82 + $0x8] sm:$0xff]
    %v1541 = vmul.f32 %v1539, %v1519
    %v1542 = vmul.f32 %v1540, %v1520
    %s1543 = scalar_lea.vmem [#allocation4], 48
    %1544 = vst [vmem:[%s1543] sm:$0xff] %v1541
    %1545 = vst [vmem:[%s1543 + $0x8] sm:$0xff] %v1542
    %v1546 = vld [vmem:[%s89] sm:$0xff]
    %v1547 = vld [vmem:[%s89 + $0x8] sm:$0xff]
    %v1548 = vmul.f32 %v1546, %v1519
    %v1549 = vmul.f32 %v1547, %v1520
    %s1550 = scalar_lea.vmem [#allocation4], 64
    %1551 = vst [vmem:[%s1550] sm:$0xff] %v1548
    %1552 = vst [vmem:[%s1550 + $0x8] sm:$0xff] %v1549
    %v1553 = vld [vmem:[%s96] sm:$0xff]
    %v1554 = vld [vmem:[%s96 + $0x8] sm:$0xff]
    %v1555 = vmul.f32 %v1553, %v1519
    %v1556 = vmul.f32 %v1554, %v1520
    %s1557 = scalar_lea.vmem [#allocation4], 80
    %1558 = vst [vmem:[%s1557] sm:$0xff] %v1555
    %1559 = vst [vmem:[%s1557 + $0x8] sm:$0xff] %v1556
    %v1560 = vld [vmem:[%s103] sm:$0xff]
    %v1561 = vld [vmem:[%s103 + $0x8] sm:$0xff]
    %v1562 = vmul.f32 %v1560, %v1519
    %v1563 = vmul.f32 %v1561, %v1520
    %s1564 = scalar_lea.vmem [#allocation4], 96
    %1565 = vst [vmem:[%s1564] sm:$0xff] %v1562
    %1566 = vst [vmem:[%s1564 + $0x8] sm:$0xff] %v1563
    %v1567 = vld [vmem:[%s110] sm:$0xff]
    %v1568 = vld [vmem:[%s110 + $0x8] sm:$0xff]
    %v1569 = vmul.f32 %v1567, %v1519
    %v1570 = vmul.f32 %v1568, %v1520
    %s1571 = scalar_lea.vmem [#allocation4], 112
    %1572 = vst [vmem:[%s1571] sm:$0xff] %v1569
    %1573 = vst [vmem:[%s1571 + $0x8] sm:$0xff] %v1570
    %s1574 = scalar_lea.vmem %s2, 128
    %v1575 = vld [vmem:[%s1574] sm:$0xff]
    %v1576 = vld [vmem:[%s1574 + $0x8] sm:$0xff]
    %s1577 = scalar_lea.vmem %s2, 144
    %v1578 = vld [vmem:[%s1577] sm:$0xff]
    %v1579 = vld [vmem:[%s1577 + $0x8] sm:$0xff]
    %v1580 = vmax.f32 %v1575, %v1578
    %v1581 = vmax.f32 %v1576, %v1579
    %v1582 = vadd.f32 %v1575, %v1578
    %v1583 = vadd.f32 %v1576, %v1579
    %s1584 = scalar_lea.vmem %s2, 160
    %v1585 = vld [vmem:[%s1584] sm:$0xff]
    %v1586 = vld [vmem:[%s1584 + $0x8] sm:$0xff]
    %v1587 = vmax.f32 %v1580, %v1585
    %v1588 = vmax.f32 %v1581, %v1586
    %v1589 = vadd.f32 %v1582, %v1585
    %v1590 = vadd.f32 %v1583, %v1586
    %s1591 = scalar_lea.vmem %s2, 176
    %v1592 = vld [vmem:[%s1591] sm:$0xff]
    %v1593 = vld [vmem:[%s1591 + $0x8] sm:$0xff]
    %v1594 = vmax.f32 %v1587, %v1592
    %v1595 = vmax.f32 %v1588, %v1593
    %v1596 = vadd.f32 %v1589, %v1592
    %v1597 = vadd.f32 %v1590, %v1593
    %s1598 = scalar_lea.vmem %s2, 192
    %v1599 = vld [vmem:[%s1598] sm:$0xff]
    %v1600 = vld [vmem:[%s1598 + $0x8] sm:$0xff]
    %v1601 = vmax.f32 %v1594, %v1599
    %v1602 = vmax.f32 %v1595, %v1600
    %v1603 = vadd.f32 %v1596, %v1599
    %v1604 = vadd.f32 %v1597, %v1600
    %s1605 = scalar_lea.vmem %s2, 208
    %v1606 = vld [vmem:[%s1605] sm:$0xff]
    %v1607 = vld [vmem:[%s1605 + $0x8] sm:$0xff]
    %v1608 = vmax.f32 %v1601, %v1606
    %v1609 = vmax.f32 %v1602, %v1607
    %v1610 = vadd.f32 %v1603, %v1606
    %v1611 = vadd.f32 %v1604, %v1607
    %s1612 = scalar_lea.vmem %s2, 224
    %v1613 = vld [vmem:[%s1612] sm:$0xff]
    %v1614 = vld [vmem:[%s1612 + $0x8] sm:$0xff]
    %v1615 = vmax.f32 %v1608, %v1613
    %v1616 = vmax.f32 %v1609, %v1614
    %v1617 = vadd.f32 %v1610, %v1613
    %v1618 = vadd.f32 %v1611, %v1614
    %s1619 = scalar_lea.vmem %s2, 240
    %v1620 = vld [vmem:[%s1619] sm:$0xff]
    %v1621 = vld [vmem:[%s1619 + $0x8] sm:$0xff]
    %v1622 = vmax.f32 %v1615, %v1620
    %v1623 = vmax.f32 %v1616, %v1621
    %v1624 = vadd.f32 %v1617, %v1620
    %v1625 = vadd.f32 %v1618, %v1621
    %v1626 = vmul.f32 %v1624, 0.125
    %v1627 = vmul.f32 %v1625, 0.125
    %v1628 = vrot.slane %v1622, 5
    %v1629 = vrot.slane %v1623, 5
    %v1630 = vsel %vm121, %v1628, %v1629
    %v1631 = vsel %vm121, %v1629, %v1628
    %v1632 = vsel %vm24, %v1631, 0.0
    %v1633 = vsel %vm25, %v1630, 0.0
    %v1634 = vld [vmem:[%s1] sm:$0xff]
    %v1635 = vld [vmem:[%s1 + $0x8] sm:$0xff]
    %v1636 = vld [vmem:[%s1 + $0x10] sm:$0xff]
    %v1637 = vld [vmem:[%s1 + $0x18] sm:$0xff]
    %v1638 = vld [vmem:[%s1 + $0x20] sm:$0xff]
    %v1639 = vld [vmem:[%s1 + $0x28] sm:$0xff]
    %v1640 = vld [vmem:[%s1 + $0x30] sm:$0xff]
    %v1641 = vld [vmem:[%s1 + $0x38] sm:$0xff]
    %v1642 = vld [vmem:[%s1 + $0x40] sm:$0xff]
    %v1643 = vld [vmem:[%s1 + $0x48] sm:$0xff]
    %v1644 = vld [vmem:[%s1 + $0x50] sm:$0xff]
    %v1645 = vld [vmem:[%s1 + $0x58] sm:$0xff]
    %v1646 = vld [vmem:[%s1 + $0x60] sm:$0xff]
    %v1647 = vld [vmem:[%s1 + $0x68] sm:$0xff]
    %v1648 = vld [vmem:[%s1 + $0x70] sm:$0xff]
    %v1649 = vld [vmem:[%s1 + $0x78] sm:$0xff]
    %v1650 = vrot.slane %v1622, 6
    %v1651 = vrot.slane %v1623, 6
    %v1652 = vsel %vm144, %v1650, %v1651
    %v1653 = vsel %vm144, %v1651, %v1650
    %v1654 = vsel %vm32, %v1653, 0.0
    %v1655 = vsel %vm33, %v1652, 0.0
    %v1656 = vld [vmem:[%s149] sm:$0xff]
    %v1657 = vld [vmem:[%s149 + $0x8] sm:$0xff]
    %v1658 = vld [vmem:[%s149 + $0x10] sm:$0xff]
    %v1659 = vld [vmem:[%s149 + $0x18] sm:$0xff]
    %v1660 = vld [vmem:[%s149 + $0x20] sm:$0xff]
    %v1661 = vld [vmem:[%s149 + $0x28] sm:$0xff]
    %v1662 = vld [vmem:[%s149 + $0x30] sm:$0xff]
    %v1663 = vld [vmem:[%s149 + $0x38] sm:$0xff]
    %v1664 = vld [vmem:[%s149 + $0x40] sm:$0xff]
    %v1665 = vld [vmem:[%s149 + $0x48] sm:$0xff]
    %v1666 = vld [vmem:[%s149 + $0x50] sm:$0xff]
    %v1667 = vld [vmem:[%s149 + $0x58] sm:$0xff]
    %v1668 = vld [vmem:[%s149 + $0x60] sm:$0xff]
    %v1669 = vld [vmem:[%s149 + $0x68] sm:$0xff]
    %v1670 = vld [vmem:[%s149 + $0x70] sm:$0xff]
    %v1671 = vld [vmem:[%s149 + $0x78] sm:$0xff]
    %1672 = vmatprep.subr.mxu0 0.0
    %1673 = vmatpush1.msra.mxu0 %v1656
    %1674 = vmatprep.subr.mxu0 0.0
    %1675 = vmatpush1.msra.mxu0 %v1657
    %1676 = vmatprep.subr.mxu0 0.0
    %1677 = vmatpush1.msra.mxu0 %v1658
    %1678 = vmatprep.subr.mxu0 0.0
    %1679 = vmatpush1.msra.mxu0 %v1659
    %1680 = vmatprep.subr.mxu0 0.0
    %1681 = vmatpush1.msra.mxu0 %v1660
    %1682 = vmatprep.subr.mxu0 0.0
    %1683 = vmatpush1.msra.mxu0 %v1661
    %1684 = vmatprep.subr.mxu0 0.0
    %1685 = vmatpush1.msra.mxu0 %v1662
    %1686 = vmatprep.subr.mxu0 0.0
    %1687 = vmatpush1.msra.mxu0 %v1663
    %1688 = vmatprep.subr.mxu0 0.0
    %1689 = vmatpush1.msra.mxu0 %v1664
    %1690 = vmatprep.subr.mxu0 0.0
    %1691 = vmatpush1.msra.mxu0 %v1665
    %1692 = vmatprep.subr.mxu0 0.0
    %1693 = vmatpush1.msra.mxu0 %v1666
    %1694 = vmatprep.subr.mxu0 0.0
    %1695 = vmatpush1.msra.mxu0 %v1667
    %1696 = vmatprep.subr.mxu0 0.0
    %1697 = vmatpush1.msra.mxu0 %v1668
    %1698 = vmatprep.subr.mxu0 0.0
    %1699 = vmatpush1.msra.mxu0 %v1669
    %1700 = vmatprep.subr.mxu0 0.0
    %1701 = vmatpush1.msra.mxu0 %v1670
    %1702 = vmatprep.subr.mxu0 0.0
    %1703 = vmatpush1.msra.mxu0 %v1671
    %1704 = vmatprep.subr.mxu0 0.0
    %1705 = vmatpush1.msra.mxu0 0.0
    %1706 = vmatprep.subr.mxu0 0.0
    %1707 = vmatpush1.msra.mxu0 0.0
    %1708 = vmatprep.subr.mxu0 0.0
    %1709 = vmatpush1.msra.mxu0 0.0
    %1710 = vmatprep.subr.mxu0 0.0
    %1711 = vmatpush1.msra.mxu0 0.0
    %1712 = vmatprep.subr.mxu0 0.0
    %1713 = vmatpush1.msra.mxu0 0.0
    %1714 = vmatprep.subr.mxu0 0.0
    %1715 = vmatpush1.msra.mxu0 0.0
    %1716 = vmatprep.subr.mxu0 0.0
    %1717 = vmatpush1.msra.mxu0 0.0
    %1718 = vmatprep.subr.mxu0 0.0
    %1719 = vmatpush1.msra.mxu0 0.0
    %1720 = vmatprep.subr.mxu0 0.0
    %1721 = vmatpush1.msra.mxu0 0.0
    %1722 = vmatprep.subr.mxu0 0.0
    %1723 = vmatpush1.msra.mxu0 0.0
    %1724 = vmatprep.subr.mxu0 0.0
    %1725 = vmatpush1.msra.mxu0 0.0
    %1726 = vmatprep.subr.mxu0 0.0
    %1727 = vmatpush1.msra.mxu0 0.0
    %1728 = vmatprep.subr.mxu0 0.0
    %1729 = vmatpush1.msra.mxu0 0.0
    %1730 = vmatprep.subr.mxu0 0.0
    %1731 = vmatpush1.msra.mxu0 0.0
    %1732 = vmatprep.subr.mxu0 0.0
    %1733 = vmatpush1.msra.mxu0 0.0
    %1734 = vmatprep.subr.mxu0 0.0
    %1735 = vmatpush1.msra.mxu0 0.0
    %1736 = vmatprep.mubr.f32.mxu0 0.0
    %1737 = vmatmul.mubr.f32.gmra.mrb[0].mxu0 %v1654
    %v1738 = vpop.f32.mrb[0].mxu0
    %v1739 = vadd.f32 0.0, %v1738
    %v1740 = vpop.f32.mrb[0].mxu0
    %1741 = vmatprep.mubr.f32.mxu0 0.0
    %1742 = vmatmul.mubr.f32.gmra.mrb[0].mxu0 %v1655
    %v1743 = vpop.f32.mrb[0].mxu0
    %v1744 = vadd.f32 0.0, %v1743
    %v1745 = vpop.f32.mrb[0].mxu0
    %1746 = vdwg.mxu0
    %1747 = vmatprep.subr.mxu0 0.0
    %1748 = vmatpush1.msra.mxu0 %v1634
    %1749 = vmatprep.subr.mxu0 0.0
    %1750 = vmatpush1.msra.mxu0 %v1635
    %1751 = vmatprep.subr.mxu0 0.0
    %1752 = vmatpush1.msra.mxu0 %v1636
    %1753 = vmatprep.subr.mxu0 0.0
    %1754 = vmatpush1.msra.mxu0 %v1637
    %1755 = vmatprep.subr.mxu0 0.0
    %1756 = vmatpush1.msra.mxu0 %v1638
    %1757 = vmatprep.subr.mxu0 0.0
    %1758 = vmatpush1.msra.mxu0 %v1639
    %1759 = vmatprep.subr.mxu0 0.0
    %1760 = vmatpush1.msra.mxu0 %v1640
    %1761 = vmatprep.subr.mxu0 0.0
    %1762 = vmatpush1.msra.mxu0 %v1641
    %1763 = vmatprep.subr.mxu0 0.0
    %1764 = vmatpush1.msra.mxu0 %v1642
    %1765 = vmatprep.subr.mxu0 0.0
    %1766 = vmatpush1.msra.mxu0 %v1643
    %1767 = vmatprep.subr.mxu0 0.0
    %1768 = vmatpush1.msra.mxu0 %v1644
    %1769 = vmatprep.subr.mxu0 0.0
    %1770 = vmatpush1.msra.mxu0 %v1645
    %1771 = vmatprep.subr.mxu0 0.0
    %1772 = vmatpush1.msra.mxu0 %v1646
    %1773 = vmatprep.subr.mxu0 0.0
    %1774 = vmatpush1.msra.mxu0 %v1647
    %1775 = vmatprep.subr.mxu0 0.0
    %1776 = vmatpush1.msra.mxu0 %v1648
    %1777 = vmatprep.subr.mxu0 0.0
    %1778 = vmatpush1.msra.mxu0 %v1649
    %1779 = vmatprep.subr.mxu0 0.0
    %1780 = vmatpush1.msra.mxu0 0.0
    %1781 = vmatprep.subr.mxu0 0.0
    %1782 = vmatpush1.msra.mxu0 0.0
    %1783 = vmatprep.subr.mxu0 0.0
    %1784 = vmatpush1.msra.mxu0 0.0
    %1785 = vmatprep.subr.mxu0 0.0
    %1786 = vmatpush1.msra.mxu0 0.0
    %1787 = vmatprep.subr.mxu0 0.0
    %1788 = vmatpush1.msra.mxu0 0.0
    %1789 = vmatprep.subr.mxu0 0.0
    %1790 = vmatpush1.msra.mxu0 0.0
    %1791 = vmatprep.subr.mxu0 0.0
    %1792 = vmatpush1.msra.mxu0 0.0
    %1793 = vmatprep.subr.mxu0 0.0
    %1794 = vmatpush1.msra.mxu0 0.0
    %1795 = vmatprep.subr.mxu0 0.0
    %1796 = vmatpush1.msra.mxu0 0.0
    %1797 = vmatprep.subr.mxu0 0.0
    %1798 = vmatpush1.msra.mxu0 0.0
    %1799 = vmatprep.subr.mxu0 0.0
    %1800 = vmatpush1.msra.mxu0 0.0
    %1801 = vmatprep.subr.mxu0 0.0
    %1802 = vmatpush1.msra.mxu0 0.0
    %1803 = vmatprep.subr.mxu0 0.0
    %1804 = vmatpush1.msra.mxu0 0.0
    %1805 = vmatprep.subr.mxu0 0.0
    %1806 = vmatpush1.msra.mxu0 0.0
    %1807 = vmatprep.subr.mxu0 0.0
    %1808 = vmatpush1.msra.mxu0 0.0
    %1809 = vmatprep.subr.mxu0 0.0
    %1810 = vmatpush1.msra.mxu0 0.0
    %1811 = vmatprep.mubr.f32.mxu0 0.0
    %1812 = vmatmul.mubr.f32.gmra.mrb[0].mxu0 %v1632
    %v1813 = vpop.f32.mrb[0].mxu0
    %v1814 = vadd.f32 %v1739, %v1813
    %v1815 = vpop.f32.mrb[0].mxu0
    %1816 = vmatprep.mubr.f32.mxu0 0.0
    %1817 = vmatmul.mubr.f32.gmra.mrb[0].mxu0 %v1633
    %v1818 = vpop.f32.mrb[0].mxu0
    %v1819 = vadd.f32 %v1744, %v1818
    %v1820 = vpop.f32.mrb[0].mxu0
    %1821 = vdwg.mxu0
    %v1822 = vrot.slane %v1622, 7
    %v1823 = vrot.slane %v1623, 7
    %v1824 = vsel %vm318, %v1822, %v1823
    %v1825 = vsel %vm318, %v1823, %v1822
    %v1826 = vsel %vm40, %v1825, 0.0
    %v1827 = vsel %vm41, %v1824, 0.0
    %v1828 = vld [vmem:[%s323] sm:$0xff]
    %v1829 = vld [vmem:[%s323 + $0x8] sm:$0xff]
    %v1830 = vld [vmem:[%s323 + $0x10] sm:$0xff]
    %v1831 = vld [vmem:[%s323 + $0x18] sm:$0xff]
    %v1832 = vld [vmem:[%s323 + $0x20] sm:$0xff]
    %v1833 = vld [vmem:[%s323 + $0x28] sm:$0xff]
    %v1834 = vld [vmem:[%s323 + $0x30] sm:$0xff]
    %v1835 = vld [vmem:[%s323 + $0x38] sm:$0xff]
    %v1836 = vld [vmem:[%s323 + $0x40] sm:$0xff]
    %v1837 = vld [vmem:[%s323 + $0x48] sm:$0xff]
    %v1838 = vld [vmem:[%s323 + $0x50] sm:$0xff]
    %v1839 = vld [vmem:[%s323 + $0x58] sm:$0xff]
    %v1840 = vld [vmem:[%s323 + $0x60] sm:$0xff]
    %v1841 = vld [vmem:[%s323 + $0x68] sm:$0xff]
    %v1842 = vld [vmem:[%s323 + $0x70] sm:$0xff]
    %v1843 = vld [vmem:[%s323 + $0x78] sm:$0xff]
    %1844 = vmatprep.subr.mxu0 0.0
    %1845 = vmatpush1.msra.mxu0 %v1828
    %1846 = vmatprep.subr.mxu0 0.0
    %1847 = vmatpush1.msra.mxu0 %v1829
    %1848 = vmatprep.subr.mxu0 0.0
    %1849 = vmatpush1.msra.mxu0 %v1830
    %1850 = vmatprep.subr.mxu0 0.0
    %1851 = vmatpush1.msra.mxu0 %v1831
    %1852 = vmatprep.subr.mxu0 0.0
    %1853 = vmatpush1.msra.mxu0 %v1832
    %1854 = vmatprep.subr.mxu0 0.0
    %1855 = vmatpush1.msra.mxu0 %v1833
    %1856 = vmatprep.subr.mxu0 0.0
    %1857 = vmatpush1.msra.mxu0 %v1834
    %1858 = vmatprep.subr.mxu0 0.0
    %1859 = vmatpush1.msra.mxu0 %v1835
    %1860 = vmatprep.subr.mxu0 0.0
    %1861 = vmatpush1.msra.mxu0 %v1836
    %1862 = vmatprep.subr.mxu0 0.0
    %1863 = vmatpush1.msra.mxu0 %v1837
    %1864 = vmatprep.subr.mxu0 0.0
    %1865 = vmatpush1.msra.mxu0 %v1838
    %1866 = vmatprep.subr.mxu0 0.0
    %1867 = vmatpush1.msra.mxu0 %v1839
    %1868 = vmatprep.subr.mxu0 0.0
    %1869 = vmatpush1.msra.mxu0 %v1840
    %1870 = vmatprep.subr.mxu0 0.0
    %1871 = vmatpush1.msra.mxu0 %v1841
    %1872 = vmatprep.subr.mxu0 0.0
    %1873 = vmatpush1.msra.mxu0 %v1842
    %1874 = vmatprep.subr.mxu0 0.0
    %1875 = vmatpush1.msra.mxu0 %v1843
    %1876 = vmatprep.subr.mxu0 0.0
    %1877 = vmatpush1.msra.mxu0 0.0
    %1878 = vmatprep.subr.mxu0 0.0
    %1879 = vmatpush1.msra.mxu0 0.0
    %1880 = vmatprep.subr.mxu0 0.0
    %1881 = vmatpush1.msra.mxu0 0.0
    %1882 = vmatprep.subr.mxu0 0.0
    %1883 = vmatpush1.msra.mxu0 0.0
    %1884 = vmatprep.subr.mxu0 0.0
    %1885 = vmatpush1.msra.mxu0 0.0
    %1886 = vmatprep.subr.mxu0 0.0
    %1887 = vmatpush1.msra.mxu0 0.0
    %1888 = vmatprep.subr.mxu0 0.0
    %1889 = vmatpush1.msra.mxu0 0.0
    %1890 = vmatprep.subr.mxu0 0.0
    %1891 = vmatpush1.msra.mxu0 0.0
    %1892 = vmatprep.subr.mxu0 0.0
    %1893 = vmatpush1.msra.mxu0 0.0
    %1894 = vmatprep.subr.mxu0 0.0
    %1895 = vmatpush1.msra.mxu0 0.0
    %1896 = vmatprep.subr.mxu0 0.0
    %1897 = vmatpush1.msra.mxu0 0.0
    %1898 = vmatprep.subr.mxu0 0.0
    %1899 = vmatpush1.msra.mxu0 0.0
    %1900 = vmatprep.subr.mxu0 0.0
    %1901 = vmatpush1.msra.mxu0 0.0
    %1902 = vmatprep.subr.mxu0 0.0
    %1903 = vmatpush1.msra.mxu0 0.0
    %1904 = vmatprep.subr.mxu0 0.0
    %1905 = vmatpush1.msra.mxu0 0.0
    %1906 = vmatprep.subr.mxu0 0.0
    %1907 = vmatpush1.msra.mxu0 0.0
    %1908 = vmatprep.mubr.f32.mxu0 0.0
    %1909 = vmatmul.mubr.f32.gmra.mrb[0].mxu0 %v1826
    %v1910 = vpop.f32.mrb[0].mxu0
    %v1911 = vadd.f32 0.0, %v1910
    %v1912 = vpop.f32.mrb[0].mxu0
    %1913 = vmatprep.mubr.f32.mxu0 0.0
    %1914 = vmatmul.mubr.f32.gmra.mrb[0].mxu0 %v1827
    %v1915 = vpop.f32.mrb[0].mxu0
    %v1916 = vadd.f32 0.0, %v1915
    %v1917 = vpop.f32.mrb[0].mxu0
    %1918 = vdwg.mxu0
    %v1919 = vadd.f32 %v1814, %v1911
    %v1920 = vadd.f32 %v1819, %v1916
    %v1921 = vld [vmem:[%s417] sm:$0xff]
    %v1922 = vld [vmem:[%s417 + $0x8] sm:$0xff]
    %v1923 = vld [vmem:[%s417 + $0x10] sm:$0xff]
    %v1924 = vld [vmem:[%s417 + $0x18] sm:$0xff]
    %v1925 = vld [vmem:[%s417 + $0x20] sm:$0xff]
    %v1926 = vld [vmem:[%s417 + $0x28] sm:$0xff]
    %v1927 = vld [vmem:[%s417 + $0x30] sm:$0xff]
    %v1928 = vld [vmem:[%s417 + $0x38] sm:$0xff]
    %v1929 = vld [vmem:[%s417 + $0x40] sm:$0xff]
    %v1930 = vld [vmem:[%s417 + $0x48] sm:$0xff]
    %v1931 = vld [vmem:[%s417 + $0x50] sm:$0xff]
    %v1932 = vld [vmem:[%s417 + $0x58] sm:$0xff]
    %v1933 = vld [vmem:[%s417 + $0x60] sm:$0xff]
    %v1934 = vld [vmem:[%s417 + $0x68] sm:$0xff]
    %v1935 = vld [vmem:[%s417 + $0x70] sm:$0xff]
    %v1936 = vld [vmem:[%s417 + $0x78] sm:$0xff]
    %1937 = vmatprep.subr.mxu0 0.0
    %1938 = vmatpush1.msra.mxu0 %v1921
    %1939 = vmatprep.subr.mxu0 0.0
    %1940 = vmatpush1.msra.mxu0 %v1922
    %1941 = vmatprep.subr.mxu0 0.0
    %1942 = vmatpush1.msra.mxu0 %v1923
    %1943 = vmatprep.subr.mxu0 0.0
    %1944 = vmatpush1.msra.mxu0 %v1924
    %1945 = vmatprep.subr.mxu0 0.0
    %1946 = vmatpush1.msra.mxu0 %v1925
    %1947 = vmatprep.subr.mxu0 0.0
    %1948 = vmatpush1.msra.mxu0 %v1926
    %1949 = vmatprep.subr.mxu0 0.0
    %1950 = vmatpush1.msra.mxu0 %v1927
    %1951 = vmatprep.subr.mxu0 0.0
    %1952 = vmatpush1.msra.mxu0 %v1928
    %1953 = vmatprep.subr.mxu0 0.0
    %1954 = vmatpush1.msra.mxu0 %v1929
    %1955 = vmatprep.subr.mxu0 0.0
    %1956 = vmatpush1.msra.mxu0 %v1930
    %1957 = vmatprep.subr.mxu0 0.0
    %1958 = vmatpush1.msra.mxu0 %v1931
    %1959 = vmatprep.subr.mxu0 0.0
    %1960 = vmatpush1.msra.mxu0 %v1932
    %1961 = vmatprep.subr.mxu0 0.0
    %1962 = vmatpush1.msra.mxu0 %v1933
    %1963 = vmatprep.subr.mxu0 0.0
    %1964 = vmatpush1.msra.mxu0 %v1934
    %1965 = vmatprep.subr.mxu0 0.0
    %1966 = vmatpush1.msra.mxu0 %v1935
    %1967 = vmatprep.subr.mxu0 0.0
    %1968 = vmatpush1.msra.mxu0 %v1936
    %1969 = vmatprep.subr.mxu0 0.0
    %1970 = vmatpush1.msra.mxu0 0.0
    %1971 = vmatprep.subr.mxu0 0.0
    %1972 = vmatpush1.msra.mxu0 0.0
    %1973 = vmatprep.subr.mxu0 0.0
    %1974 = vmatpush1.msra.mxu0 0.0
    %1975 = vmatprep.subr.mxu0 0.0
    %1976 = vmatpush1.msra.mxu0 0.0
    %1977 = vmatprep.subr.mxu0 0.0
    %1978 = vmatpush1.msra.mxu0 0.0
    %1979 = vmatprep.subr.mxu0 0.0
    %1980 = vmatpush1.msra.mxu0 0.0
    %1981 = vmatprep.subr.mxu0 0.0
    %1982 = vmatpush1.msra.mxu0 0.0
    %1983 = vmatprep.subr.mxu0 0.0
    %1984 = vmatpush1.msra.mxu0 0.0
    %1985 = vmatprep.subr.mxu0 0.0
    %1986 = vmatpush1.msra.mxu0 0.0
    %1987 = vmatprep.subr.mxu0 0.0
    %1988 = vmatpush1.msra.mxu0 0.0
    %1989 = vmatprep.subr.mxu0 0.0
    %1990 = vmatpush1.msra.mxu0 0.0
    %1991 = vmatprep.subr.mxu0 0.0
    %1992 = vmatpush1.msra.mxu0 0.0
    %1993 = vmatprep.subr.mxu0 0.0
    %1994 = vmatpush1.msra.mxu0 0.0
    %1995 = vmatprep.subr.mxu0 0.0
    %1996 = vmatpush1.msra.mxu0 0.0
    %1997 = vmatprep.subr.mxu0 0.0
    %1998 = vmatpush1.msra.mxu0 0.0
    %1999 = vmatprep.subr.mxu0 0.0
    %2000 = vmatpush1.msra.mxu0 0.0
    %2001 = vmatprep.mubr.f32.mxu0 0.0
    %2002 = vmatmul.mubr.f32.gmra.mrb[0].mxu0 %v1622
    %v2003 = vpop.f32.mrb[0].mxu0
    %v2004 = vadd.f32 0.0, %v2003
    %v2005 = vpop.f32.mrb[0].mxu0
    %2006 = vmatprep.mubr.f32.mxu0 0.0
    %2007 = vmatmul.mubr.f32.gmra.mrb[0].mxu0 %v1623
    %v2008 = vpop.f32.mrb[0].mxu0
    %v2009 = vadd.f32 0.0, %v2008
    %v2010 = vpop.f32.mrb[0].mxu0
    %2011 = vdwg.mxu0
    %v2012 = vadd.f32 %v1919, %v2004
    %v2013 = vadd.f32 %v1920, %v2009
    %v2014 = vrot.slane %v1622, 1
    %v2015 = vrot.slane %v1623, 1
    %v2016 = vsel %vm513, %v2014, %v2015
    %v2017 = vsel %vm513, %v2015, %v2014
    %v2018 = vsel %vm48, %v2016, 0.0
    %v2019 = vsel %vm49, %v2017, 0.0
    %v2020 = vld [vmem:[%s518] sm:$0xff]
    %v2021 = vld [vmem:[%s518 + $0x8] sm:$0xff]
    %v2022 = vld [vmem:[%s518 + $0x10] sm:$0xff]
    %v2023 = vld [vmem:[%s518 + $0x18] sm:$0xff]
    %v2024 = vld [vmem:[%s518 + $0x20] sm:$0xff]
    %v2025 = vld [vmem:[%s518 + $0x28] sm:$0xff]
    %v2026 = vld [vmem:[%s518 + $0x30] sm:$0xff]
    %v2027 = vld [vmem:[%s518 + $0x38] sm:$0xff]
    %v2028 = vld [vmem:[%s518 + $0x40] sm:$0xff]
    %v2029 = vld [vmem:[%s518 + $0x48] sm:$0xff]
    %v2030 = vld [vmem:[%s518 + $0x50] sm:$0xff]
    %v2031 = vld [vmem:[%s518 + $0x58] sm:$0xff]
    %v2032 = vld [vmem:[%s518 + $0x60] sm:$0xff]
    %v2033 = vld [vmem:[%s518 + $0x68] sm:$0xff]
    %v2034 = vld [vmem:[%s518 + $0x70] sm:$0xff]
    %v2035 = vld [vmem:[%s518 + $0x78] sm:$0xff]
    %2036 = vmatprep.subr.mxu0 0.0
    %2037 = vmatpush1.msra.mxu0 %v2020
    %2038 = vmatprep.subr.mxu0 0.0
    %2039 = vmatpush1.msra.mxu0 %v2021
    %2040 = vmatprep.subr.mxu0 0.0
    %2041 = vmatpush1.msra.mxu0 %v2022
    %2042 = vmatprep.subr.mxu0 0.0
    %2043 = vmatpush1.msra.mxu0 %v2023
    %2044 = vmatprep.subr.mxu0 0.0
    %2045 = vmatpush1.msra.mxu0 %v2024
    %2046 = vmatprep.subr.mxu0 0.0
    %2047 = vmatpush1.msra.mxu0 %v2025
    %2048 = vmatprep.subr.mxu0 0.0
    %2049 = vmatpush1.msra.mxu0 %v2026
    %2050 = vmatprep.subr.mxu0 0.0
    %2051 = vmatpush1.msra.mxu0 %v2027
    %2052 = vmatprep.subr.mxu0 0.0
    %2053 = vmatpush1.msra.mxu0 %v2028
    %2054 = vmatprep.subr.mxu0 0.0
    %2055 = vmatpush1.msra.mxu0 %v2029
    %2056 = vmatprep.subr.mxu0 0.0
    %2057 = vmatpush1.msra.mxu0 %v2030
    %2058 = vmatprep.subr.mxu0 0.0
    %2059 = vmatpush1.msra.mxu0 %v2031
    %2060 = vmatprep.subr.mxu0 0.0
    %2061 = vmatpush1.msra.mxu0 %v2032
    %2062 = vmatprep.subr.mxu0 0.0
    %2063 = vmatpush1.msra.mxu0 %v2033
    %2064 = vmatprep.subr.mxu0 0.0
    %2065 = vmatpush1.msra.mxu0 %v2034
    %2066 = vmatprep.subr.mxu0 0.0
    %2067 = vmatpush1.msra.mxu0 %v2035
    %2068 = vmatprep.subr.mxu0 0.0
    %2069 = vmatpush1.msra.mxu0 0.0
    %2070 = vmatprep.subr.mxu0 0.0
    %2071 = vmatpush1.msra.mxu0 0.0
    %2072 = vmatprep.subr.mxu0 0.0
    %2073 = vmatpush1.msra.mxu0 0.0
    %2074 = vmatprep.subr.mxu0 0.0
    %2075 = vmatpush1.msra.mxu0 0.0
    %2076 = vmatprep.subr.mxu0 0.0
    %2077 = vmatpush1.msra.mxu0 0.0
    %2078 = vmatprep.subr.mxu0 0.0
    %2079 = vmatpush1.msra.mxu0 0.0
    %2080 = vmatprep.subr.mxu0 0.0
    %2081 = vmatpush1.msra.mxu0 0.0
    %2082 = vmatprep.subr.mxu0 0.0
    %2083 = vmatpush1.msra.mxu0 0.0
    %2084 = vmatprep.subr.mxu0 0.0
    %2085 = vmatpush1.msra.mxu0 0.0
    %2086 = vmatprep.subr.mxu0 0.0
    %2087 = vmatpush1.msra.mxu0 0.0
    %2088 = vmatprep.subr.mxu0 0.0
    %2089 = vmatpush1.msra.mxu0 0.0
    %2090 = vmatprep.subr.mxu0 0.0
    %2091 = vmatpush1.msra.mxu0 0.0
    %2092 = vmatprep.subr.mxu0 0.0
    %2093 = vmatpush1.msra.mxu0 0.0
    %2094 = vmatprep.subr.mxu0 0.0
    %2095 = vmatpush1.msra.mxu0 0.0
    %2096 = vmatprep.subr.mxu0 0.0
    %2097 = vmatpush1.msra.mxu0 0.0
    %2098 = vmatprep.subr.mxu0 0.0
    %2099 = vmatpush1.msra.mxu0 0.0
    %2100 = vmatprep.mubr.f32.mxu0 0.0
    %2101 = vmatmul.mubr.f32.gmra.mrb[0].mxu0 %v2018
    %v2102 = vpop.f32.mrb[0].mxu0
    %v2103 = vadd.f32 0.0, %v2102
    %v2104 = vpop.f32.mrb[0].mxu0
    %2105 = vmatprep.mubr.f32.mxu0 0.0
    %2106 = vmatmul.mubr.f32.gmra.mrb[0].mxu0 %v2019
    %v2107 = vpop.f32.mrb[0].mxu0
    %v2108 = vadd.f32 0.0, %v2107
    %v2109 = vpop.f32.mrb[0].mxu0
    %2110 = vdwg.mxu0
    %v2111 = vadd.f32 %v2012, %v2103
    %v2112 = vadd.f32 %v2013, %v2108
    %v2113 = vrot.slane %v1622, 2
    %v2114 = vrot.slane %v1623, 2
    %v2115 = vsel %vm614, %v2113, %v2114
    %v2116 = vsel %vm614, %v2114, %v2113
    %v2117 = vsel %vm56, %v2115, 0.0
    %v2118 = vsel %vm57, %v2116, 0.0
    %v2119 = vld [vmem:[%s619] sm:$0xff]
    %v2120 = vld [vmem:[%s619 + $0x8] sm:$0xff]
    %v2121 = vld [vmem:[%s619 + $0x10] sm:$0xff]
    %v2122 = vld [vmem:[%s619 + $0x18] sm:$0xff]
    %v2123 = vld [vmem:[%s619 + $0x20] sm:$0xff]
    %v2124 = vld [vmem:[%s619 + $0x28] sm:$0xff]
    %v2125 = vld [vmem:[%s619 + $0x30] sm:$0xff]
    %v2126 = vld [vmem:[%s619 + $0x38] sm:$0xff]
    %v2127 = vld [vmem:[%s619 + $0x40] sm:$0xff]
    %v2128 = vld [vmem:[%s619 + $0x48] sm:$0xff]
    %v2129 = vld [vmem:[%s619 + $0x50] sm:$0xff]
    %v2130 = vld [vmem:[%s619 + $0x58] sm:$0xff]
    %v2131 = vld [vmem:[%s619 + $0x60] sm:$0xff]
    %v2132 = vld [vmem:[%s619 + $0x68] sm:$0xff]
    %v2133 = vld [vmem:[%s619 + $0x70] sm:$0xff]
    %v2134 = vld [vmem:[%s619 + $0x78] sm:$0xff]
    %2135 = vmatprep.subr.mxu0 0.0
    %2136 = vmatpush1.msra.mxu0 %v2119
    %2137 = vmatprep.subr.mxu0 0.0
    %2138 = vmatpush1.msra.mxu0 %v2120
    %2139 = vmatprep.subr.mxu0 0.0
    %2140 = vmatpush1.msra.mxu0 %v2121
    %2141 = vmatprep.subr.mxu0 0.0
    %2142 = vmatpush1.msra.mxu0 %v2122
    %2143 = vmatprep.subr.mxu0 0.0
    %2144 = vmatpush1.msra.mxu0 %v2123
    %2145 = vmatprep.subr.mxu0 0.0
    %2146 = vmatpush1.msra.mxu0 %v2124
    %2147 = vmatprep.subr.mxu0 0.0
    %2148 = vmatpush1.msra.mxu0 %v2125
    %2149 = vmatprep.subr.mxu0 0.0
    %2150 = vmatpush1.msra.mxu0 %v2126
    %2151 = vmatprep.subr.mxu0 0.0
    %2152 = vmatpush1.msra.mxu0 %v2127
    %2153 = vmatprep.subr.mxu0 0.0
    %2154 = vmatpush1.msra.mxu0 %v2128
    %2155 = vmatprep.subr.mxu0 0.0
    %2156 = vmatpush1.msra.mxu0 %v2129
    %2157 = vmatprep.subr.mxu0 0.0
    %2158 = vmatpush1.msra.mxu0 %v2130
    %2159 = vmatprep.subr.mxu0 0.0
    %2160 = vmatpush1.msra.mxu0 %v2131
    %2161 = vmatprep.subr.mxu0 0.0
    %2162 = vmatpush1.msra.mxu0 %v2132
    %2163 = vmatprep.subr.mxu0 0.0
    %2164 = vmatpush1.msra.mxu0 %v2133
    %2165 = vmatprep.subr.mxu0 0.0
    %2166 = vmatpush1.msra.mxu0 %v2134
    %2167 = vmatprep.subr.mxu0 0.0
    %2168 = vmatpush1.msra.mxu0 0.0
    %2169 = vmatprep.subr.mxu0 0.0
    %2170 = vmatpush1.msra.mxu0 0.0
    %2171 = vmatprep.subr.mxu0 0.0
    %2172 = vmatpush1.msra.mxu0 0.0
    %2173 = vmatprep.subr.mxu0 0.0
    %2174 = vmatpush1.msra.mxu0 0.0
    %2175 = vmatprep.subr.mxu0 0.0
    %2176 = vmatpush1.msra.mxu0 0.0
    %2177 = vmatprep.subr.mxu0 0.0
    %2178 = vmatpush1.msra.mxu0 0.0
    %2179 = vmatprep.subr.mxu0 0.0
    %2180 = vmatpush1.msra.mxu0 0.0
    %2181 = vmatprep.subr.mxu0 0.0
    %2182 = vmatpush1.msra.mxu0 0.0
    %2183 = vmatprep.subr.mxu0 0.0
    %2184 = vmatpush1.msra.mxu0 0.0
    %2185 = vmatprep.subr.mxu0 0.0
    %2186 = vmatpush1.msra.mxu0 0.0
    %2187 = vmatprep.subr.mxu0 0.0
    %2188 = vmatpush1.msra.mxu0 0.0
    %2189 = vmatprep.subr.mxu0 0.0
    %2190 = vmatpush1.msra.mxu0 0.0
    %2191 = vmatprep.subr.mxu0 0.0
    %2192 = vmatpush1.msra.mxu0 0.0
    %2193 = vmatprep.subr.mxu0 0.0
    %2194 = vmatpush1.msra.mxu0 0.0
    %2195 = vmatprep.subr.mxu0 0.0
    %2196 = vmatpush1.msra.mxu0 0.0
    %2197 = vmatprep.subr.mxu0 0.0
    %2198 = vmatpush1.msra.mxu0 0.0
    %2199 = vmatprep.mubr.f32.mxu0 0.0
    %2200 = vmatmul.mubr.f32.gmra.mrb[0].mxu0 %v2117
    %v2201 = vpop.f32.mrb[0].mxu0
    %v2202 = vadd.f32 0.0, %v2201
    %v2203 = vpop.f32.mrb[0].mxu0
    %2204 = vmatprep.mubr.f32.mxu0 0.0
    %2205 = vmatmul.mubr.f32.gmra.mrb[0].mxu0 %v2118
    %v2206 = vpop.f32.mrb[0].mxu0
    %v2207 = vadd.f32 0.0, %v2206
    %v2208 = vpop.f32.mrb[0].mxu0
    %2209 = vdwg.mxu0
    %v2210 = vadd.f32 %v2111, %v2202
    %v2211 = vadd.f32 %v2112, %v2207
    %v2212 = vrot.slane %v1622, 3
    %v2213 = vrot.slane %v1623, 3
    %v2214 = vsel %vm715, %v2212, %v2213
    %v2215 = vsel %vm715, %v2213, %v2212
    %v2216 = vsel %vm64, %v2214, 0.0
    %v2217 = vsel %vm65, %v2215, 0.0
    %v2218 = vld [vmem:[%s720] sm:$0xff]
    %v2219 = vld [vmem:[%s720 + $0x8] sm:$0xff]
    %v2220 = vld [vmem:[%s720 + $0x10] sm:$0xff]
    %v2221 = vld [vmem:[%s720 + $0x18] sm:$0xff]
    %v2222 = vld [vmem:[%s720 + $0x20] sm:$0xff]
    %v2223 = vld [vmem:[%s720 + $0x28] sm:$0xff]
    %v2224 = vld [vmem:[%s720 + $0x30] sm:$0xff]
    %v2225 = vld [vmem:[%s720 + $0x38] sm:$0xff]
    %v2226 = vld [vmem:[%s720 + $0x40] sm:$0xff]
    %v2227 = vld [vmem:[%s720 + $0x48] sm:$0xff]
    %v2228 = vld [vmem:[%s720 + $0x50] sm:$0xff]
    %v2229 = vld [vmem:[%s720 + $0x58] sm:$0xff]
    %v2230 = vld [vmem:[%s720 + $0x60] sm:$0xff]
    %v2231 = vld [vmem:[%s720 + $0x68] sm:$0xff]
    %v2232 = vld [vmem:[%s720 + $0x70] sm:$0xff]
    %v2233 = vld [vmem:[%s720 + $0x78] sm:$0xff]
    %2234 = vmatprep.subr.mxu0 0.0
    %2235 = vmatpush1.msra.mxu0 %v2218
    %2236 = vmatprep.subr.mxu0 0.0
    %2237 = vmatpush1.msra.mxu0 %v2219
    %2238 = vmatprep.subr.mxu0 0.0
    %2239 = vmatpush1.msra.mxu0 %v2220
    %2240 = vmatprep.subr.mxu0 0.0
    %2241 = vmatpush1.msra.mxu0 %v2221
    %2242 = vmatprep.subr.mxu0 0.0
    %2243 = vmatpush1.msra.mxu0 %v2222
    %2244 = vmatprep.subr.mxu0 0.0
    %2245 = vmatpush1.msra.mxu0 %v2223
    %2246 = vmatprep.subr.mxu0 0.0
    %2247 = vmatpush1.msra.mxu0 %v2224
    %2248 = vmatprep.subr.mxu0 0.0
    %2249 = vmatpush1.msra.mxu0 %v2225
    %2250 = vmatprep.subr.mxu0 0.0
    %2251 = vmatpush1.msra.mxu0 %v2226
    %2252 = vmatprep.subr.mxu0 0.0
    %2253 = vmatpush1.msra.mxu0 %v2227
    %2254 = vmatprep.subr.mxu0 0.0
    %2255 = vmatpush1.msra.mxu0 %v2228
    %2256 = vmatprep.subr.mxu0 0.0
    %2257 = vmatpush1.msra.mxu0 %v2229
    %2258 = vmatprep.subr.mxu0 0.0
    %2259 = vmatpush1.msra.mxu0 %v2230
    %2260 = vmatprep.subr.mxu0 0.0
    %2261 = vmatpush1.msra.mxu0 %v2231
    %2262 = vmatprep.subr.mxu0 0.0
    %2263 = vmatpush1.msra.mxu0 %v2232
    %2264 = vmatprep.subr.mxu0 0.0
    %2265 = vmatpush1.msra.mxu0 %v2233
    %2266 = vmatprep.subr.mxu0 0.0
    %2267 = vmatpush1.msra.mxu0 0.0
    %2268 = vmatprep.subr.mxu0 0.0
    %2269 = vmatpush1.msra.mxu0 0.0
    %2270 = vmatprep.subr.mxu0 0.0
    %2271 = vmatpush1.msra.mxu0 0.0
    %2272 = vmatprep.subr.mxu0 0.0
    %2273 = vmatpush1.msra.mxu0 0.0
    %2274 = vmatprep.subr.mxu0 0.0
    %2275 = vmatpush1.msra.mxu0 0.0
    %2276 = vmatprep.subr.mxu0 0.0
    %2277 = vmatpush1.msra.mxu0 0.0
    %2278 = vmatprep.subr.mxu0 0.0
    %2279 = vmatpush1.msra.mxu0 0.0
    %2280 = vmatprep.subr.mxu0 0.0
    %2281 = vmatpush1.msra.mxu0 0.0
    %2282 = vmatprep.subr.mxu0 0.0
    %2283 = vmatpush1.msra.mxu0 0.0
    %2284 = vmatprep.subr.mxu0 0.0
    %2285 = vmatpush1.msra.mxu0 0.0
    %2286 = vmatprep.subr.mxu0 0.0
    %2287 = vmatpush1.msra.mxu0 0.0
    %2288 = vmatprep.subr.mxu0 0.0
    %2289 = vmatpush1.msra.mxu0 0.0
    %2290 = vmatprep.subr.mxu0 0.0
    %2291 = vmatpush1.msra.mxu0 0.0
    %2292 = vmatprep.subr.mxu0 0.0
    %2293 = vmatpush1.msra.mxu0 0.0
    %2294 = vmatprep.subr.mxu0 0.0
    %2295 = vmatpush1.msra.mxu0 0.0
    %2296 = vmatprep.subr.mxu0 0.0
    %2297 = vmatpush1.msra.mxu0 0.0
    %2298 = vmatprep.mubr.f32.mxu0 0.0
    %2299 = vmatmul.mubr.f32.gmra.mrb[0].mxu0 %v2216
    %v2300 = vpop.f32.mrb[0].mxu0
    %v2301 = vadd.f32 0.0, %v2300
    %v2302 = vpop.f32.mrb[0].mxu0
    %2303 = vmatprep.mubr.f32.mxu0 0.0
    %2304 = vmatmul.mubr.f32.gmra.mrb[0].mxu0 %v2217
    %v2305 = vpop.f32.mrb[0].mxu0
    %v2306 = vadd.f32 0.0, %v2305
    %v2307 = vpop.f32.mrb[0].mxu0
    %2308 = vdwg.mxu0
    %v2309 = vadd.f32 %v2210, %v2301
    %v2310 = vadd.f32 %v2211, %v2306
    %v2311 = vrot.slane %v1626, 5
    %v2312 = vrot.slane %v1627, 5
    %v2313 = vsel %vm121, %v2311, %v2312
    %v2314 = vsel %vm121, %v2312, %v2311
    %v2315 = vsel %vm24, %v2314, 0.0
    %v2316 = vsel %vm25, %v2313, 0.0
    %v2317 = vld [vmem:[%s820] sm:$0xff]
    %v2318 = vld [vmem:[%s820 + $0x8] sm:$0xff]
    %v2319 = vld [vmem:[%s820 + $0x10] sm:$0xff]
    %v2320 = vld [vmem:[%s820 + $0x18] sm:$0xff]
    %v2321 = vld [vmem:[%s820 + $0x20] sm:$0xff]
    %v2322 = vld [vmem:[%s820 + $0x28] sm:$0xff]
    %v2323 = vld [vmem:[%s820 + $0x30] sm:$0xff]
    %v2324 = vld [vmem:[%s820 + $0x38] sm:$0xff]
    %v2325 = vld [vmem:[%s820 + $0x40] sm:$0xff]
    %v2326 = vld [vmem:[%s820 + $0x48] sm:$0xff]
    %v2327 = vld [vmem:[%s820 + $0x50] sm:$0xff]
    %v2328 = vld [vmem:[%s820 + $0x58] sm:$0xff]
    %v2329 = vld [vmem:[%s820 + $0x60] sm:$0xff]
    %v2330 = vld [vmem:[%s820 + $0x68] sm:$0xff]
    %v2331 = vld [vmem:[%s820 + $0x70] sm:$0xff]
    %v2332 = vld [vmem:[%s820 + $0x78] sm:$0xff]
    %2333 = vmatprep.subr.mxu0 0.0
    %2334 = vmatpush1.msra.mxu0 %v2317
    %2335 = vmatprep.subr.mxu0 0.0
    %2336 = vmatpush1.msra.mxu0 %v2318
    %2337 = vmatprep.subr.mxu0 0.0
    %2338 = vmatpush1.msra.mxu0 %v2319
    %2339 = vmatprep.subr.mxu0 0.0
    %2340 = vmatpush1.msra.mxu0 %v2320
    %2341 = vmatprep.subr.mxu0 0.0
    %2342 = vmatpush1.msra.mxu0 %v2321
    %2343 = vmatprep.subr.mxu0 0.0
    %2344 = vmatpush1.msra.mxu0 %v2322
    %2345 = vmatprep.subr.mxu0 0.0
    %2346 = vmatpush1.msra.mxu0 %v2323
    %2347 = vmatprep.subr.mxu0 0.0
    %2348 = vmatpush1.msra.mxu0 %v2324
    %2349 = vmatprep.subr.mxu0 0.0
    %2350 = vmatpush1.msra.mxu0 %v2325
    %2351 = vmatprep.subr.mxu0 0.0
    %2352 = vmatpush1.msra.mxu0 %v2326
    %2353 = vmatprep.subr.mxu0 0.0
    %2354 = vmatpush1.msra.mxu0 %v2327
    %2355 = vmatprep.subr.mxu0 0.0
    %2356 = vmatpush1.msra.mxu0 %v2328
    %2357 = vmatprep.subr.mxu0 0.0
    %2358 = vmatpush1.msra.mxu0 %v2329
    %2359 = vmatprep.subr.mxu0 0.0
    %2360 = vmatpush1.msra.mxu0 %v2330
    %2361 = vmatprep.subr.mxu0 0.0
    %2362 = vmatpush1.msra.mxu0 %v2331
    %2363 = vmatprep.subr.mxu0 0.0
    %2364 = vmatpush1.msra.mxu0 %v2332
    %2365 = vmatprep.subr.mxu0 0.0
    %2366 = vmatpush1.msra.mxu0 0.0
    %2367 = vmatprep.subr.mxu0 0.0
    %2368 = vmatpush1.msra.mxu0 0.0
    %2369 = vmatprep.subr.mxu0 0.0
    %2370 = vmatpush1.msra.mxu0 0.0
    %2371 = vmatprep.subr.mxu0 0.0
    %2372 = vmatpush1.msra.mxu0 0.0
    %2373 = vmatprep.subr.mxu0 0.0
    %2374 = vmatpush1.msra.mxu0 0.0
    %2375 = vmatprep.subr.mxu0 0.0
    %2376 = vmatpush1.msra.mxu0 0.0
    %2377 = vmatprep.subr.mxu0 0.0
    %2378 = vmatpush1.msra.mxu0 0.0
    %2379 = vmatprep.subr.mxu0 0.0
    %2380 = vmatpush1.msra.mxu0 0.0
    %2381 = vmatprep.subr.mxu0 0.0
    %2382 = vmatpush1.msra.mxu0 0.0
    %2383 = vmatprep.subr.mxu0 0.0
    %2384 = vmatpush1.msra.mxu0 0.0
    %2385 = vmatprep.subr.mxu0 0.0
    %2386 = vmatpush1.msra.mxu0 0.0
    %2387 = vmatprep.subr.mxu0 0.0
    %2388 = vmatpush1.msra.mxu0 0.0
    %2389 = vmatprep.subr.mxu0 0.0
    %2390 = vmatpush1.msra.mxu0 0.0
    %2391 = vmatprep.subr.mxu0 0.0
    %2392 = vmatpush1.msra.mxu0 0.0
    %2393 = vmatprep.subr.mxu0 0.0
    %2394 = vmatpush1.msra.mxu0 0.0
    %2395 = vmatprep.subr.mxu0 0.0
    %2396 = vmatpush1.msra.mxu0 0.0
    %2397 = vmatprep.mubr.f32.mxu0 0.0
    %2398 = vmatmul.mubr.f32.gmra.mrb[0].mxu0 %v2315
    %v2399 = vpop.f32.mrb[0].mxu0
    %v2400 = vadd.f32 0.0, %v2399
    %v2401 = vpop.f32.mrb[0].mxu0
    %2402 = vmatprep.mubr.f32.mxu0 0.0
    %2403 = vmatmul.mubr.f32.gmra.mrb[0].mxu0 %v2316
    %v2404 = vpop.f32.mrb[0].mxu0
    %v2405 = vadd.f32 0.0, %v2404
    %v2406 = vpop.f32.mrb[0].mxu0
    %2407 = vdwg.mxu0
    %v2408 = vadd.f32 %v2309, %v2400
    %v2409 = vadd.f32 %v2310, %v2405
    %v2410 = vrot.slane %v1626, 6
    %v2411 = vrot.slane %v1627, 6
    %v2412 = vsel %vm144, %v2410, %v2411
    %v2413 = vsel %vm144, %v2411, %v2410
    %v2414 = vsel %vm32, %v2413, 0.0
    %v2415 = vsel %vm33, %v2412, 0.0
    %v2416 = vld [vmem:[%s920] sm:$0xff]
    %v2417 = vld [vmem:[%s920 + $0x8] sm:$0xff]
    %v2418 = vld [vmem:[%s920 + $0x10] sm:$0xff]
    %v2419 = vld [vmem:[%s920 + $0x18] sm:$0xff]
    %v2420 = vld [vmem:[%s920 + $0x20] sm:$0xff]
    %v2421 = vld [vmem:[%s920 + $0x28] sm:$0xff]
    %v2422 = vld [vmem:[%s920 + $0x30] sm:$0xff]
    %v2423 = vld [vmem:[%s920 + $0x38] sm:$0xff]
    %v2424 = vld [vmem:[%s920 + $0x40] sm:$0xff]
    %v2425 = vld [vmem:[%s920 + $0x48] sm:$0xff]
    %v2426 = vld [vmem:[%s920 + $0x50] sm:$0xff]
    %v2427 = vld [vmem:[%s920 + $0x58] sm:$0xff]
    %v2428 = vld [vmem:[%s920 + $0x60] sm:$0xff]
    %v2429 = vld [vmem:[%s920 + $0x68] sm:$0xff]
    %v2430 = vld [vmem:[%s920 + $0x70] sm:$0xff]
    %v2431 = vld [vmem:[%s920 + $0x78] sm:$0xff]
    %2432 = vmatprep.subr.mxu0 0.0
    %2433 = vmatpush1.msra.mxu0 %v2416
    %2434 = vmatprep.subr.mxu0 0.0
    %2435 = vmatpush1.msra.mxu0 %v2417
    %2436 = vmatprep.subr.mxu0 0.0
    %2437 = vmatpush1.msra.mxu0 %v2418
    %2438 = vmatprep.subr.mxu0 0.0
    %2439 = vmatpush1.msra.mxu0 %v2419
    %2440 = vmatprep.subr.mxu0 0.0
    %2441 = vmatpush1.msra.mxu0 %v2420
    %2442 = vmatprep.subr.mxu0 0.0
    %2443 = vmatpush1.msra.mxu0 %v2421
    %2444 = vmatprep.subr.mxu0 0.0
    %2445 = vmatpush1.msra.mxu0 %v2422
    %2446 = vmatprep.subr.mxu0 0.0
    %2447 = vmatpush1.msra.mxu0 %v2423
    %2448 = vmatprep.subr.mxu0 0.0
    %2449 = vmatpush1.msra.mxu0 %v2424
    %2450 = vmatprep.subr.mxu0 0.0
    %2451 = vmatpush1.msra.mxu0 %v2425
    %2452 = vmatprep.subr.mxu0 0.0
    %2453 = vmatpush1.msra.mxu0 %v2426
    %2454 = vmatprep.subr.mxu0 0.0
    %2455 = vmatpush1.msra.mxu0 %v2427
    %2456 = vmatprep.subr.mxu0 0.0
    %2457 = vmatpush1.msra.mxu0 %v2428
    %2458 = vmatprep.subr.mxu0 0.0
    %2459 = vmatpush1.msra.mxu0 %v2429
    %2460 = vmatprep.subr.mxu0 0.0
    %2461 = vmatpush1.msra.mxu0 %v2430
    %2462 = vmatprep.subr.mxu0 0.0
    %2463 = vmatpush1.msra.mxu0 %v2431
    %2464 = vmatprep.subr.mxu0 0.0
    %2465 = vmatpush1.msra.mxu0 0.0
    %2466 = vmatprep.subr.mxu0 0.0
    %2467 = vmatpush1.msra.mxu0 0.0
    %2468 = vmatprep.subr.mxu0 0.0
    %2469 = vmatpush1.msra.mxu0 0.0
    %2470 = vmatprep.subr.mxu0 0.0
    %2471 = vmatpush1.msra.mxu0 0.0
    %2472 = vmatprep.subr.mxu0 0.0
    %2473 = vmatpush1.msra.mxu0 0.0
    %2474 = vmatprep.subr.mxu0 0.0
    %2475 = vmatpush1.msra.mxu0 0.0
    %2476 = vmatprep.subr.mxu0 0.0
    %2477 = vmatpush1.msra.mxu0 0.0
    %2478 = vmatprep.subr.mxu0 0.0
    %2479 = vmatpush1.msra.mxu0 0.0
    %2480 = vmatprep.subr.mxu0 0.0
    %2481 = vmatpush1.msra.mxu0 0.0
    %2482 = vmatprep.subr.mxu0 0.0
    %2483 = vmatpush1.msra.mxu0 0.0
    %2484 = vmatprep.subr.mxu0 0.0
    %2485 = vmatpush1.msra.mxu0 0.0
    %2486 = vmatprep.subr.mxu0 0.0
    %2487 = vmatpush1.msra.mxu0 0.0
    %2488 = vmatprep.subr.mxu0 0.0
    %2489 = vmatpush1.msra.mxu0 0.0
    %2490 = vmatprep.subr.mxu0 0.0
    %2491 = vmatpush1.msra.mxu0 0.0
    %2492 = vmatprep.subr.mxu0 0.0
    %2493 = vmatpush1.msra.mxu0 0.0
    %2494 = vmatprep.subr.mxu0 0.0
    %2495 = vmatpush1.msra.mxu0 0.0
    %2496 = vmatprep.mubr.f32.mxu0 0.0
    %2497 = vmatmul.mubr.f32.gmra.mrb[0].mxu0 %v2414
    %v2498 = vpop.f32.mrb[0].mxu0
    %v2499 = vadd.f32 0.0, %v2498
    %v2500 = vpop.f32.mrb[0].mxu0
    %2501 = vmatprep.mubr.f32.mxu0 0.0
    %2502 = vmatmul.mubr.f32.gmra.mrb[0].mxu0 %v2415
    %v2503 = vpop.f32.mrb[0].mxu0
    %v2504 = vadd.f32 0.0, %v2503
    %v2505 = vpop.f32.mrb[0].mxu0
    %2506 = vdwg.mxu0
    %v2507 = vadd.f32 %v2408, %v2499
    %v2508 = vadd.f32 %v2409, %v2504
    %v2509 = vrot.slane %v1626, 7
    %v2510 = vrot.slane %v1627, 7
    %v2511 = vsel %vm318, %v2509, %v2510
    %v2512 = vsel %vm318, %v2510, %v2509
    %v2513 = vsel %vm40, %v2512, 0.0
    %v2514 = vsel %vm41, %v2511, 0.0
    %v2515 = vld [vmem:[%s1020] sm:$0xff]
    %v2516 = vld [vmem:[%s1020 + $0x8] sm:$0xff]
    %v2517 = vld [vmem:[%s1020 + $0x10] sm:$0xff]
    %v2518 = vld [vmem:[%s1020 + $0x18] sm:$0xff]
    %v2519 = vld [vmem:[%s1020 + $0x20] sm:$0xff]
    %v2520 = vld [vmem:[%s1020 + $0x28] sm:$0xff]
    %v2521 = vld [vmem:[%s1020 + $0x30] sm:$0xff]
    %v2522 = vld [vmem:[%s1020 + $0x38] sm:$0xff]
    %v2523 = vld [vmem:[%s1020 + $0x40] sm:$0xff]
    %v2524 = vld [vmem:[%s1020 + $0x48] sm:$0xff]
    %v2525 = vld [vmem:[%s1020 + $0x50] sm:$0xff]
    %v2526 = vld [vmem:[%s1020 + $0x58] sm:$0xff]
    %v2527 = vld [vmem:[%s1020 + $0x60] sm:$0xff]
    %v2528 = vld [vmem:[%s1020 + $0x68] sm:$0xff]
    %v2529 = vld [vmem:[%s1020 + $0x70] sm:$0xff]
    %v2530 = vld [vmem:[%s1020 + $0x78] sm:$0xff]
    %2531 = vmatprep.subr.mxu0 0.0
    %2532 = vmatpush1.msra.mxu0 %v2515
    %2533 = vmatprep.subr.mxu0 0.0
    %2534 = vmatpush1.msra.mxu0 %v2516
    %2535 = vmatprep.subr.mxu0 0.0
    %2536 = vmatpush1.msra.mxu0 %v2517
    %2537 = vmatprep.subr.mxu0 0.0
    %2538 = vmatpush1.msra.mxu0 %v2518
    %2539 = vmatprep.subr.mxu0 0.0
    %2540 = vmatpush1.msra.mxu0 %v2519
    %2541 = vmatprep.subr.mxu0 0.0
    %2542 = vmatpush1.msra.mxu0 %v2520
    %2543 = vmatprep.subr.mxu0 0.0
    %2544 = vmatpush1.msra.mxu0 %v2521
    %2545 = vmatprep.subr.mxu0 0.0
    %2546 = vmatpush1.msra.mxu0 %v2522
    %2547 = vmatprep.subr.mxu0 0.0
    %2548 = vmatpush1.msra.mxu0 %v2523
    %2549 = vmatprep.subr.mxu0 0.0
    %2550 = vmatpush1.msra.mxu0 %v2524
    %2551 = vmatprep.subr.mxu0 0.0
    %2552 = vmatpush1.msra.mxu0 %v2525
    %2553 = vmatprep.subr.mxu0 0.0
    %2554 = vmatpush1.msra.mxu0 %v2526
    %2555 = vmatprep.subr.mxu0 0.0
    %2556 = vmatpush1.msra.mxu0 %v2527
    %2557 = vmatprep.subr.mxu0 0.0
    %2558 = vmatpush1.msra.mxu0 %v2528
    %2559 = vmatprep.subr.mxu0 0.0
    %2560 = vmatpush1.msra.mxu0 %v2529
    %2561 = vmatprep.subr.mxu0 0.0
    %2562 = vmatpush1.msra.mxu0 %v2530
    %2563 = vmatprep.subr.mxu0 0.0
    %2564 = vmatpush1.msra.mxu0 0.0
    %2565 = vmatprep.subr.mxu0 0.0
    %2566 = vmatpush1.msra.mxu0 0.0
    %2567 = vmatprep.subr.mxu0 0.0
    %2568 = vmatpush1.msra.mxu0 0.0
    %2569 = vmatprep.subr.mxu0 0.0
    %2570 = vmatpush1.msra.mxu0 0.0
    %2571 = vmatprep.subr.mxu0 0.0
    %2572 = vmatpush1.msra.mxu0 0.0
    %2573 = vmatprep.subr.mxu0 0.0
    %2574 = vmatpush1.msra.mxu0 0.0
    %2575 = vmatprep.subr.mxu0 0.0
    %2576 = vmatpush1.msra.mxu0 0.0
    %2577 = vmatprep.subr.mxu0 0.0
    %2578 = vmatpush1.msra.mxu0 0.0
    %2579 = vmatprep.subr.mxu0 0.0
    %2580 = vmatpush1.msra.mxu0 0.0
    %2581 = vmatprep.subr.mxu0 0.0
    %2582 = vmatpush1.msra.mxu0 0.0
    %2583 = vmatprep.subr.mxu0 0.0
    %2584 = vmatpush1.msra.mxu0 0.0
    %2585 = vmatprep.subr.mxu0 0.0
    %2586 = vmatpush1.msra.mxu0 0.0
    %2587 = vmatprep.subr.mxu0 0.0
    %2588 = vmatpush1.msra.mxu0 0.0
    %2589 = vmatprep.subr.mxu0 0.0
    %2590 = vmatpush1.msra.mxu0 0.0
    %2591 = vmatprep.subr.mxu0 0.0
    %2592 = vmatpush1.msra.mxu0 0.0
    %2593 = vmatprep.subr.mxu0 0.0
    %2594 = vmatpush1.msra.mxu0 0.0
    %2595 = vmatprep.mubr.f32.mxu0 0.0
    %2596 = vmatmul.mubr.f32.gmra.mrb[0].mxu0 %v2513
    %v2597 = vpop.f32.mrb[0].mxu0
    %v2598 = vadd.f32 0.0, %v2597
    %v2599 = vpop.f32.mrb[0].mxu0
    %2600 = vmatprep.mubr.f32.mxu0 0.0
    %2601 = vmatmul.mubr.f32.gmra.mrb[0].mxu0 %v2514
    %v2602 = vpop.f32.mrb[0].mxu0
    %v2603 = vadd.f32 0.0, %v2602
    %v2604 = vpop.f32.mrb[0].mxu0
    %2605 = vdwg.mxu0
    %v2606 = vadd.f32 %v2507, %v2598
    %v2607 = vadd.f32 %v2508, %v2603
    %v2608 = vld [vmem:[%s1114] sm:$0xff]
    %v2609 = vld [vmem:[%s1114 + $0x8] sm:$0xff]
    %v2610 = vld [vmem:[%s1114 + $0x10] sm:$0xff]
    %v2611 = vld [vmem:[%s1114 + $0x18] sm:$0xff]
    %v2612 = vld [vmem:[%s1114 + $0x20] sm:$0xff]
    %v2613 = vld [vmem:[%s1114 + $0x28] sm:$0xff]
    %v2614 = vld [vmem:[%s1114 + $0x30] sm:$0xff]
    %v2615 = vld [vmem:[%s1114 + $0x38] sm:$0xff]
    %v2616 = vld [vmem:[%s1114 + $0x40] sm:$0xff]
    %v2617 = vld [vmem:[%s1114 + $0x48] sm:$0xff]
    %v2618 = vld [vmem:[%s1114 + $0x50] sm:$0xff]
    %v2619 = vld [vmem:[%s1114 + $0x58] sm:$0xff]
    %v2620 = vld [vmem:[%s1114 + $0x60] sm:$0xff]
    %v2621 = vld [vmem:[%s1114 + $0x68] sm:$0xff]
    %v2622 = vld [vmem:[%s1114 + $0x70] sm:$0xff]
    %v2623 = vld [vmem:[%s1114 + $0x78] sm:$0xff]
    %2624 = vmatprep.subr.mxu0 0.0
    %2625 = vmatpush1.msra.mxu0 %v2608
    %2626 = vmatprep.subr.mxu0 0.0
    %2627 = vmatpush1.msra.mxu0 %v2609
    %2628 = vmatprep.subr.mxu0 0.0
    %2629 = vmatpush1.msra.mxu0 %v2610
    %2630 = vmatprep.subr.mxu0 0.0
    %2631 = vmatpush1.msra.mxu0 %v2611
    %2632 = vmatprep.subr.mxu0 0.0
    %2633 = vmatpush1.msra.mxu0 %v2612
    %2634 = vmatprep.subr.mxu0 0.0
    %2635 = vmatpush1.msra.mxu0 %v2613
    %2636 = vmatprep.subr.mxu0 0.0
    %2637 = vmatpush1.msra.mxu0 %v2614
    %2638 = vmatprep.subr.mxu0 0.0
    %2639 = vmatpush1.msra.mxu0 %v2615
    %2640 = vmatprep.subr.mxu0 0.0
    %2641 = vmatpush1.msra.mxu0 %v2616
    %2642 = vmatprep.subr.mxu0 0.0
    %2643 = vmatpush1.msra.mxu0 %v2617
    %2644 = vmatprep.subr.mxu0 0.0
    %2645 = vmatpush1.msra.mxu0 %v2618
    %2646 = vmatprep.subr.mxu0 0.0
    %2647 = vmatpush1.msra.mxu0 %v2619
    %2648 = vmatprep.subr.mxu0 0.0
    %2649 = vmatpush1.msra.mxu0 %v2620
    %2650 = vmatprep.subr.mxu0 0.0
    %2651 = vmatpush1.msra.mxu0 %v2621
    %2652 = vmatprep.subr.mxu0 0.0
    %2653 = vmatpush1.msra.mxu0 %v2622
    %2654 = vmatprep.subr.mxu0 0.0
    %2655 = vmatpush1.msra.mxu0 %v2623
    %2656 = vmatprep.subr.mxu0 0.0
    %2657 = vmatpush1.msra.mxu0 0.0
    %2658 = vmatprep.subr.mxu0 0.0
    %2659 = vmatpush1.msra.mxu0 0.0
    %2660 = vmatprep.subr.mxu0 0.0
    %2661 = vmatpush1.msra.mxu0 0.0
    %2662 = vmatprep.subr.mxu0 0.0
    %2663 = vmatpush1.msra.mxu0 0.0
    %2664 = vmatprep.subr.mxu0 0.0
    %2665 = vmatpush1.msra.mxu0 0.0
    %2666 = vmatprep.subr.mxu0 0.0
    %2667 = vmatpush1.msra.mxu0 0.0
    %2668 = vmatprep.subr.mxu0 0.0
    %2669 = vmatpush1.msra.mxu0 0.0
    %2670 = vmatprep.subr.mxu0 0.0
    %2671 = vmatpush1.msra.mxu0 0.0
    %2672 = vmatprep.subr.mxu0 0.0
    %2673 = vmatpush1.msra.mxu0 0.0
    %2674 = vmatprep.subr.mxu0 0.0
    %2675 = vmatpush1.msra.mxu0 0.0
    %2676 = vmatprep.subr.mxu0 0.0
    %2677 = vmatpush1.msra.mxu0 0.0
    %2678 = vmatprep.subr.mxu0 0.0
    %2679 = vmatpush1.msra.mxu0 0.0
    %2680 = vmatprep.subr.mxu0 0.0
    %2681 = vmatpush1.msra.mxu0 0.0
    %2682 = vmatprep.subr.mxu0 0.0
    %2683 = vmatpush1.msra.mxu0 0.0
    %2684 = vmatprep.subr.mxu0 0.0
    %2685 = vmatpush1.msra.mxu0 0.0
    %2686 = vmatprep.subr.mxu0 0.0
    %2687 = vmatpush1.msra.mxu0 0.0
    %2688 = vmatprep.mubr.f32.mxu0 0.0
    %2689 = vmatmul.mubr.f32.gmra.mrb[0].mxu0 %v1626
    %v2690 = vpop.f32.mrb[0].mxu0
    %v2691 = vadd.f32 0.0, %v2690
    %v2692 = vpop.f32.mrb[0].mxu0
    %2693 = vmatprep.mubr.f32.mxu0 0.0
    %2694 = vmatmul.mubr.f32.gmra.mrb[0].mxu0 %v1627
    %v2695 = vpop.f32.mrb[0].mxu0
    %v2696 = vadd.f32 0.0, %v2695
    %v2697 = vpop.f32.mrb[0].mxu0
    %2698 = vdwg.mxu0
    %v2699 = vadd.f32 %v2606, %v2691
    %v2700 = vadd.f32 %v2607, %v2696
    %v2701 = vrot.slane %v1626, 1
    %v2702 = vrot.slane %v1627, 1
    %v2703 = vsel %vm513, %v2701, %v2702
    %v2704 = vsel %vm513, %v2702, %v2701
    %v2705 = vsel %vm48, %v2703, 0.0
    %v2706 = vsel %vm49, %v2704, 0.0
    %v2707 = vld [vmem:[%s1214] sm:$0xff]
    %v2708 = vld [vmem:[%s1214 + $0x8] sm:$0xff]
    %v2709 = vld [vmem:[%s1214 + $0x10] sm:$0xff]
    %v2710 = vld [vmem:[%s1214 + $0x18] sm:$0xff]
    %v2711 = vld [vmem:[%s1214 + $0x20] sm:$0xff]
    %v2712 = vld [vmem:[%s1214 + $0x28] sm:$0xff]
    %v2713 = vld [vmem:[%s1214 + $0x30] sm:$0xff]
    %v2714 = vld [vmem:[%s1214 + $0x38] sm:$0xff]
    %v2715 = vld [vmem:[%s1214 + $0x40] sm:$0xff]
    %v2716 = vld [vmem:[%s1214 + $0x48] sm:$0xff]
    %v2717 = vld [vmem:[%s1214 + $0x50] sm:$0xff]
    %v2718 = vld [vmem:[%s1214 + $0x58] sm:$0xff]
    %v2719 = vld [vmem:[%s1214 + $0x60] sm:$0xff]
    %v2720 = vld [vmem:[%s1214 + $0x68] sm:$0xff]
    %v2721 = vld [vmem:[%s1214 + $0x70] sm:$0xff]
    %v2722 = vld [vmem:[%s1214 + $0x78] sm:$0xff]
    %2723 = vmatprep.subr.mxu0 0.0
    %2724 = vmatpush1.msra.mxu0 %v2707
    %2725 = vmatprep.subr.mxu0 0.0
    %2726 = vmatpush1.msra.mxu0 %v2708
    %2727 = vmatprep.subr.mxu0 0.0
    %2728 = vmatpush1.msra.mxu0 %v2709
    %2729 = vmatprep.subr.mxu0 0.0
    %2730 = vmatpush1.msra.mxu0 %v2710
    %2731 = vmatprep.subr.mxu0 0.0
    %2732 = vmatpush1.msra.mxu0 %v2711
    %2733 = vmatprep.subr.mxu0 0.0
    %2734 = vmatpush1.msra.mxu0 %v2712
    %2735 = vmatprep.subr.mxu0 0.0
    %2736 = vmatpush1.msra.mxu0 %v2713
    %2737 = vmatprep.subr.mxu0 0.0
    %2738 = vmatpush1.msra.mxu0 %v2714
    %2739 = vmatprep.subr.mxu0 0.0
    %2740 = vmatpush1.msra.mxu0 %v2715
    %2741 = vmatprep.subr.mxu0 0.0
    %2742 = vmatpush1.msra.mxu0 %v2716
    %2743 = vmatprep.subr.mxu0 0.0
    %2744 = vmatpush1.msra.mxu0 %v2717
    %2745 = vmatprep.subr.mxu0 0.0
    %2746 = vmatpush1.msra.mxu0 %v2718
    %2747 = vmatprep.subr.mxu0 0.0
    %2748 = vmatpush1.msra.mxu0 %v2719
    %2749 = vmatprep.subr.mxu0 0.0
    %2750 = vmatpush1.msra.mxu0 %v2720
    %2751 = vmatprep.subr.mxu0 0.0
    %2752 = vmatpush1.msra.mxu0 %v2721
    %2753 = vmatprep.subr.mxu0 0.0
    %2754 = vmatpush1.msra.mxu0 %v2722
    %2755 = vmatprep.subr.mxu0 0.0
    %2756 = vmatpush1.msra.mxu0 0.0
    %2757 = vmatprep.subr.mxu0 0.0
    %2758 = vmatpush1.msra.mxu0 0.0
    %2759 = vmatprep.subr.mxu0 0.0
    %2760 = vmatpush1.msra.mxu0 0.0
    %2761 = vmatprep.subr.mxu0 0.0
    %2762 = vmatpush1.msra.mxu0 0.0
    %2763 = vmatprep.subr.mxu0 0.0
    %2764 = vmatpush1.msra.mxu0 0.0
    %2765 = vmatprep.subr.mxu0 0.0
    %2766 = vmatpush1.msra.mxu0 0.0
    %2767 = vmatprep.subr.mxu0 0.0
    %2768 = vmatpush1.msra.mxu0 0.0
    %2769 = vmatprep.subr.mxu0 0.0
    %2770 = vmatpush1.msra.mxu0 0.0
    %2771 = vmatprep.subr.mxu0 0.0
    %2772 = vmatpush1.msra.mxu0 0.0
    %2773 = vmatprep.subr.mxu0 0.0
    %2774 = vmatpush1.msra.mxu0 0.0
    %2775 = vmatprep.subr.mxu0 0.0
    %2776 = vmatpush1.msra.mxu0 0.0
    %2777 = vmatprep.subr.mxu0 0.0
    %2778 = vmatpush1.msra.mxu0 0.0
    %2779 = vmatprep.subr.mxu0 0.0
    %2780 = vmatpush1.msra.mxu0 0.0
    %2781 = vmatprep.subr.mxu0 0.0
    %2782 = vmatpush1.msra.mxu0 0.0
    %2783 = vmatprep.subr.mxu0 0.0
    %2784 = vmatpush1.msra.mxu0 0.0
    %2785 = vmatprep.subr.mxu0 0.0
    %2786 = vmatpush1.msra.mxu0 0.0
    %2787 = vmatprep.mubr.f32.mxu0 0.0
    %2788 = vmatmul.mubr.f32.gmra.mrb[0].mxu0 %v2705
    %v2789 = vpop.f32.mrb[0].mxu0
    %v2790 = vadd.f32 0.0, %v2789
    %v2791 = vpop.f32.mrb[0].mxu0
    %2792 = vmatprep.mubr.f32.mxu0 0.0
    %2793 = vmatmul.mubr.f32.gmra.mrb[0].mxu0 %v2706
    %v2794 = vpop.f32.mrb[0].mxu0
    %v2795 = vadd.f32 0.0, %v2794
    %v2796 = vpop.f32.mrb[0].mxu0
    %2797 = vdwg.mxu0
    %v2798 = vadd.f32 %v2699, %v2790
    %v2799 = vadd.f32 %v2700, %v2795
    %v2800 = vrot.slane %v1626, 2
    %v2801 = vrot.slane %v1627, 2
    %v2802 = vsel %vm614, %v2800, %v2801
    %v2803 = vsel %vm614, %v2801, %v2800
    %v2804 = vsel %vm56, %v2802, 0.0
    %v2805 = vsel %vm57, %v2803, 0.0
    %v2806 = vld [vmem:[%s1314] sm:$0xff]
    %v2807 = vld [vmem:[%s1314 + $0x8] sm:$0xff]
    %v2808 = vld [vmem:[%s1314 + $0x10] sm:$0xff]
    %v2809 = vld [vmem:[%s1314 + $0x18] sm:$0xff]
    %v2810 = vld [vmem:[%s1314 + $0x20] sm:$0xff]
    %v2811 = vld [vmem:[%s1314 + $0x28] sm:$0xff]
    %v2812 = vld [vmem:[%s1314 + $0x30] sm:$0xff]
    %v2813 = vld [vmem:[%s1314 + $0x38] sm:$0xff]
    %v2814 = vld [vmem:[%s1314 + $0x40] sm:$0xff]
    %v2815 = vld [vmem:[%s1314 + $0x48] sm:$0xff]
    %v2816 = vld [vmem:[%s1314 + $0x50] sm:$0xff]
    %v2817 = vld [vmem:[%s1314 + $0x58] sm:$0xff]
    %v2818 = vld [vmem:[%s1314 + $0x60] sm:$0xff]
    %v2819 = vld [vmem:[%s1314 + $0x68] sm:$0xff]
    %v2820 = vld [vmem:[%s1314 + $0x70] sm:$0xff]
    %v2821 = vld [vmem:[%s1314 + $0x78] sm:$0xff]
    %2822 = vmatprep.subr.mxu0 0.0
    %2823 = vmatpush1.msra.mxu0 %v2806
    %2824 = vmatprep.subr.mxu0 0.0
    %2825 = vmatpush1.msra.mxu0 %v2807
    %2826 = vmatprep.subr.mxu0 0.0
    %2827 = vmatpush1.msra.mxu0 %v2808
    %2828 = vmatprep.subr.mxu0 0.0
    %2829 = vmatpush1.msra.mxu0 %v2809
    %2830 = vmatprep.subr.mxu0 0.0
    %2831 = vmatpush1.msra.mxu0 %v2810
    %2832 = vmatprep.subr.mxu0 0.0
    %2833 = vmatpush1.msra.mxu0 %v2811
    %2834 = vmatprep.subr.mxu0 0.0
    %2835 = vmatpush1.msra.mxu0 %v2812
    %2836 = vmatprep.subr.mxu0 0.0
    %2837 = vmatpush1.msra.mxu0 %v2813
    %2838 = vmatprep.subr.mxu0 0.0
    %2839 = vmatpush1.msra.mxu0 %v2814
    %2840 = vmatprep.subr.mxu0 0.0
    %2841 = vmatpush1.msra.mxu0 %v2815
    %2842 = vmatprep.subr.mxu0 0.0
    %2843 = vmatpush1.msra.mxu0 %v2816
    %2844 = vmatprep.subr.mxu0 0.0
    %2845 = vmatpush1.msra.mxu0 %v2817
    %2846 = vmatprep.subr.mxu0 0.0
    %2847 = vmatpush1.msra.mxu0 %v2818
    %2848 = vmatprep.subr.mxu0 0.0
    %2849 = vmatpush1.msra.mxu0 %v2819
    %2850 = vmatprep.subr.mxu0 0.0
    %2851 = vmatpush1.msra.mxu0 %v2820
    %2852 = vmatprep.subr.mxu0 0.0
    %2853 = vmatpush1.msra.mxu0 %v2821
    %2854 = vmatprep.subr.mxu0 0.0
    %2855 = vmatpush1.msra.mxu0 0.0
    %2856 = vmatprep.subr.mxu0 0.0
    %2857 = vmatpush1.msra.mxu0 0.0
    %2858 = vmatprep.subr.mxu0 0.0
    %2859 = vmatpush1.msra.mxu0 0.0
    %2860 = vmatprep.subr.mxu0 0.0
    %2861 = vmatpush1.msra.mxu0 0.0
    %2862 = vmatprep.subr.mxu0 0.0
    %2863 = vmatpush1.msra.mxu0 0.0
    %2864 = vmatprep.subr.mxu0 0.0
    %2865 = vmatpush1.msra.mxu0 0.0
    %2866 = vmatprep.subr.mxu0 0.0
    %2867 = vmatpush1.msra.mxu0 0.0
    %2868 = vmatprep.subr.mxu0 0.0
    %2869 = vmatpush1.msra.mxu0 0.0
    %2870 = vmatprep.subr.mxu0 0.0
    %2871 = vmatpush1.msra.mxu0 0.0
    %2872 = vmatprep.subr.mxu0 0.0
    %2873 = vmatpush1.msra.mxu0 0.0
    %2874 = vmatprep.subr.mxu0 0.0
    %2875 = vmatpush1.msra.mxu0 0.0
    %2876 = vmatprep.subr.mxu0 0.0
    %2877 = vmatpush1.msra.mxu0 0.0
    %2878 = vmatprep.subr.mxu0 0.0
    %2879 = vmatpush1.msra.mxu0 0.0
    %2880 = vmatprep.subr.mxu0 0.0
    %2881 = vmatpush1.msra.mxu0 0.0
    %2882 = vmatprep.subr.mxu0 0.0
    %2883 = vmatpush1.msra.mxu0 0.0
    %2884 = vmatprep.subr.mxu0 0.0
    %2885 = vmatpush1.msra.mxu0 0.0
    %2886 = vmatprep.mubr.f32.mxu0 0.0
    %2887 = vmatmul.mubr.f32.gmra.mrb[0].mxu0 %v2804
    %v2888 = vpop.f32.mrb[0].mxu0
    %v2889 = vadd.f32 0.0, %v2888
    %v2890 = vpop.f32.mrb[0].mxu0
    %2891 = vmatprep.mubr.f32.mxu0 0.0
    %2892 = vmatmul.mubr.f32.gmra.mrb[0].mxu0 %v2805
    %v2893 = vpop.f32.mrb[0].mxu0
    %v2894 = vadd.f32 0.0, %v2893
    %v2895 = vpop.f32.mrb[0].mxu0
    %2896 = vdwg.mxu0
    %v2897 = vadd.f32 %v2798, %v2889
    %v2898 = vadd.f32 %v2799, %v2894
    %v2899 = vrot.slane %v1626, 3
    %v2900 = vrot.slane %v1627, 3
    %v2901 = vsel %vm715, %v2899, %v2900
    %v2902 = vsel %vm715, %v2900, %v2899
    %v2903 = vsel %vm64, %v2901, 0.0
    %v2904 = vsel %vm65, %v2902, 0.0
    %v2905 = vld [vmem:[%s1414] sm:$0xff]
    %v2906 = vld [vmem:[%s1414 + $0x8] sm:$0xff]
    %v2907 = vld [vmem:[%s1414 + $0x10] sm:$0xff]
    %v2908 = vld [vmem:[%s1414 + $0x18] sm:$0xff]
    %v2909 = vld [vmem:[%s1414 + $0x20] sm:$0xff]
    %v2910 = vld [vmem:[%s1414 + $0x28] sm:$0xff]
    %v2911 = vld [vmem:[%s1414 + $0x30] sm:$0xff]
    %v2912 = vld [vmem:[%s1414 + $0x38] sm:$0xff]
    %v2913 = vld [vmem:[%s1414 + $0x40] sm:$0xff]
    %v2914 = vld [vmem:[%s1414 + $0x48] sm:$0xff]
    %v2915 = vld [vmem:[%s1414 + $0x50] sm:$0xff]
    %v2916 = vld [vmem:[%s1414 + $0x58] sm:$0xff]
    %v2917 = vld [vmem:[%s1414 + $0x60] sm:$0xff]
    %v2918 = vld [vmem:[%s1414 + $0x68] sm:$0xff]
    %v2919 = vld [vmem:[%s1414 + $0x70] sm:$0xff]
    %v2920 = vld [vmem:[%s1414 + $0x78] sm:$0xff]
    %2921 = vmatprep.subr.mxu0 0.0
    %2922 = vmatpush1.msra.mxu0 %v2905
    %2923 = vmatprep.subr.mxu0 0.0
    %2924 = vmatpush1.msra.mxu0 %v2906
    %2925 = vmatprep.subr.mxu0 0.0
    %2926 = vmatpush1.msra.mxu0 %v2907
    %2927 = vmatprep.subr.mxu0 0.0
    %2928 = vmatpush1.msra.mxu0 %v2908
    %2929 = vmatprep.subr.mxu0 0.0
    %2930 = vmatpush1.msra.mxu0 %v2909
    %2931 = vmatprep.subr.mxu0 0.0
    %2932 = vmatpush1.msra.mxu0 %v2910
    %2933 = vmatprep.subr.mxu0 0.0
    %2934 = vmatpush1.msra.mxu0 %v2911
    %2935 = vmatprep.subr.mxu0 0.0
    %2936 = vmatpush1.msra.mxu0 %v2912
    %2937 = vmatprep.subr.mxu0 0.0
    %2938 = vmatpush1.msra.mxu0 %v2913
    %2939 = vmatprep.subr.mxu0 0.0
    %2940 = vmatpush1.msra.mxu0 %v2914
    %2941 = vmatprep.subr.mxu0 0.0
    %2942 = vmatpush1.msra.mxu0 %v2915
    %2943 = vmatprep.subr.mxu0 0.0
    %2944 = vmatpush1.msra.mxu0 %v2916
    %2945 = vmatprep.subr.mxu0 0.0
    %2946 = vmatpush1.msra.mxu0 %v2917
    %2947 = vmatprep.subr.mxu0 0.0
    %2948 = vmatpush1.msra.mxu0 %v2918
    %2949 = vmatprep.subr.mxu0 0.0
    %2950 = vmatpush1.msra.mxu0 %v2919
    %2951 = vmatprep.subr.mxu0 0.0
    %2952 = vmatpush1.msra.mxu0 %v2920
    %2953 = vmatprep.subr.mxu0 0.0
    %2954 = vmatpush1.msra.mxu0 0.0
    %2955 = vmatprep.subr.mxu0 0.0
    %2956 = vmatpush1.msra.mxu0 0.0
    %2957 = vmatprep.subr.mxu0 0.0
    %2958 = vmatpush1.msra.mxu0 0.0
    %2959 = vmatprep.subr.mxu0 0.0
    %2960 = vmatpush1.msra.mxu0 0.0
    %2961 = vmatprep.subr.mxu0 0.0
    %2962 = vmatpush1.msra.mxu0 0.0
    %2963 = vmatprep.subr.mxu0 0.0
    %2964 = vmatpush1.msra.mxu0 0.0
    %2965 = vmatprep.subr.mxu0 0.0
    %2966 = vmatpush1.msra.mxu0 0.0
    %2967 = vmatprep.subr.mxu0 0.0
    %2968 = vmatpush1.msra.mxu0 0.0
    %2969 = vmatprep.subr.mxu0 0.0
    %2970 = vmatpush1.msra.mxu0 0.0
    %2971 = vmatprep.subr.mxu0 0.0
    %2972 = vmatpush1.msra.mxu0 0.0
    %2973 = vmatprep.subr.mxu0 0.0
    %2974 = vmatpush1.msra.mxu0 0.0
    %2975 = vmatprep.subr.mxu0 0.0
    %2976 = vmatpush1.msra.mxu0 0.0
    %2977 = vmatprep.subr.mxu0 0.0
    %2978 = vmatpush1.msra.mxu0 0.0
    %2979 = vmatprep.subr.mxu0 0.0
    %2980 = vmatpush1.msra.mxu0 0.0
    %2981 = vmatprep.subr.mxu0 0.0
    %2982 = vmatpush1.msra.mxu0 0.0
    %2983 = vmatprep.subr.mxu0 0.0
    %2984 = vmatpush1.msra.mxu0 0.0
    %2985 = vmatprep.mubr.f32.mxu0 0.0
    %2986 = vmatmul.mubr.f32.gmra.mrb[0].mxu0 %v2903
    %v2987 = vpop.f32.mrb[0].mxu0
    %v2988 = vadd.f32 0.0, %v2987
    %v2989 = vpop.f32.mrb[0].mxu0
    %2990 = vmatprep.mubr.f32.mxu0 0.0
    %2991 = vmatmul.mubr.f32.gmra.mrb[0].mxu0 %v2904
    %v2992 = vpop.f32.mrb[0].mxu0
    %v2993 = vadd.f32 0.0, %v2992
    %v2994 = vpop.f32.mrb[0].mxu0
    %2995 = vdwg.mxu0
    %v2996 = vadd.f32 %v2897, %v2988
    %v2997 = vadd.f32 %v2898, %v2993
    %v2998 = vadd.f32 %v2996, %v1508
    %v2999 = vadd.f32 %v2997, %v1508
    %v3000 = vsub.f32 0.0, %v2998
    %v3001 = vsub.f32 0.0, %v2999
    %v3002 = vmul.f32 %v3000, 1.442695
    %v3003 = vpow.pop %v3002
    %v3004 = vmul.f32 %v3001, 1.442695
    %v3005 = vpow.pop %v3004
    %v3006 = vadd.f32 %v3003, 1.0
    %v3007 = vadd.f32 %v3005, 1.0
    %v3008 = vrcp.pop %v3006
    %v3009 = vrcp.pop %v3007
    %v3010 = vmul.f32 %v1575, %v3008
    %v3011 = vmul.f32 %v1576, %v3009
    %s3012 = scalar_lea.vmem [#allocation4], 128
    %3013 = vst [vmem:[%s3012] sm:$0xff] %v3010
    %3014 = vst [vmem:[%s3012 + $0x8] sm:$0xff] %v3011
    %v3015 = vld [vmem:[%s1577] sm:$0xff]
    %v3016 = vld [vmem:[%s1577 + $0x8] sm:$0xff]
    %v3017 = vmul.f32 %v3015, %v3008
    %v3018 = vmul.f32 %v3016, %v3009
    %s3019 = scalar_lea.vmem [#allocation4], 144
    %3020 = vst [vmem:[%s3019] sm:$0xff] %v3017
    %3021 = vst [vmem:[%s3019 + $0x8] sm:$0xff] %v3018
    %v3022 = vld [vmem:[%s1584] sm:$0xff]
    %v3023 = vld [vmem:[%s1584 + $0x8] sm:$0xff]
    %v3024 = vmul.f32 %v3022, %v3008
    %v3025 = vmul.f32 %v3023, %v3009
    %s3026 = scalar_lea.vmem [#allocation4], 160
    %3027 = vst [vmem:[%s3026] sm:$0xff] %v3024
    %3028 = vst [vmem:[%s3026 + $0x8] sm:$0xff] %v3025
    %v3029 = vld [vmem:[%s1591] sm:$0xff]
    %v3030 = vld [vmem:[%s1591 + $0x8] sm:$0xff]
    %v3031 = vmul.f32 %v3029, %v3008
    %v3032 = vmul.f32 %v3030, %v3009
    %s3033 = scalar_lea.vmem [#allocation4], 176
    %3034 = vst [vmem:[%s3033] sm:$0xff] %v3031
    %3035 = vst [vmem:[%s3033 + $0x8] sm:$0xff] %v3032
    %v3036 = vld [vmem:[%s1598] sm:$0xff]
    %v3037 = vld [vmem:[%s1598 + $0x8] sm:$0xff]
    %v3038 = vmul.f32 %v3036, %v3008
    %v3039 = vmul.f32 %v3037, %v3009
    %s3040 = scalar_lea.vmem [#allocation4], 192
    %3041 = vst [vmem:[%s3040] sm:$0xff] %v3038
    %3042 = vst [vmem:[%s3040 + $0x8] sm:$0xff] %v3039
    %v3043 = vld [vmem:[%s1605] sm:$0xff]
    %v3044 = vld [vmem:[%s1605 + $0x8] sm:$0xff]
    %v3045 = vmul.f32 %v3043, %v3008
    %v3046 = vmul.f32 %v3044, %v3009
    %s3047 = scalar_lea.vmem [#allocation4], 208
    %3048 = vst [vmem:[%s3047] sm:$0xff] %v3045
    %3049 = vst [vmem:[%s3047 + $0x8] sm:$0xff] %v3046
    %v3050 = vld [vmem:[%s1612] sm:$0xff]
    %v3051 = vld [vmem:[%s1612 + $0x8] sm:$0xff]
    %v3052 = vmul.f32 %v3050, %v3008
    %v3053 = vmul.f32 %v3051, %v3009
    %s3054 = scalar_lea.vmem [#allocation4], 224
    %3055 = vst [vmem:[%s3054] sm:$0xff] %v3052
    %3056 = vst [vmem:[%s3054 + $0x8] sm:$0xff] %v3053
    %v3057 = vld [vmem:[%s1619] sm:$0xff]
    %v3058 = vld [vmem:[%s1619 + $0x8] sm:$0xff]
    %v3059 = vmul.f32 %v3057, %v3008
    %v3060 = vmul.f32 %v3058, %v3009
    %s3061 = scalar_lea.vmem [#allocation4], 240
    %3062 = vst [vmem:[%s3061] sm:$0xff] %v3059
    %3063 = vst [vmem:[%s3061 + $0x8] sm:$0xff] %v3060
    // Predicated region
    $region10: #{spatial_gate_forward.1} parent=1 // pred_check
      _
    $region11: #{spatial_gate_forward.1} parent=1 // pred_check_branch
      %3065 = sbr.rel (0) target = $region13
    $region12: #{spatial_gate_forward.1} parent=1 // pred_region
      %s3067 = ssub.s32 4096, 4096
      %3068 = vsyncadd [#allocation5], %s3067
      %s3069 = sshll.u32 [#allocation4], 4
      %s3070 = int_to_ptr.vmem [resolvable:$true] %s3069
      %3075 = dma.vmem_to_hbm [thread:$0]  %s3070, 4096, %s3, [#allocation5], 128, 128, 8
    $region13: #{spatial_gate_forward.1} parent=1 // pred_fallthru
      _
    // Predicated region
    $region14: #{spatial_gate_forward.1} parent=1 // pred_check
      _
    $region15: #{spatial_gate_forward.1} parent=1 // pred_check_branch
      %3077 = sbr.rel (0) target = $region17
    $region16: #{spatial_gate_forward.1} parent=1 // pred_region
      %3078 = dma.done [#allocation5], 4096
    $region17: #{spatial_gate_forward.1} parent=1 // pred_fallthru
      _
    %3079 = vsyncpa [#allocation5], 1

</llo_original>
